<compile_context>
chip_gen: v7x
topology: tpu7x:2x2x1
jax: 0.10.0
libtpu: 0.0.40
codegen_flags: <defaults>
</compile_context>

<pallas_src>
import functools

import jax
import jax.numpy as jnp
from jax.experimental import pallas as pl
from jax.experimental.pallas import tpu as pltpu


def _round_up(x, m):
    return (x + m - 1) // m * m


def _bn_act_conv_kernel(x_ref, scale_ref, bias_ref, w_ref, out_ref,
                        xp_ref, slab_ref, *,
                        H, W, KH, KW, OH, OW, stride, padding):
    Hp, Wp = H + 2 * padding, W + 2 * padding
    cin_pad = xp_ref.shape[-1]

    # ---- BatchNorm (folded scale/bias) + ReLU: f32 math on the VPU ---------
    # Input arrives as bf16 (halved HBM DMA / VMEM); upcast for the VPU math.
    x = x_ref[0, 0].astype(jnp.float32)                       # (H, W, cin_pad)
    a = jnp.maximum(x * scale_ref[0] + bias_ref[0], 0.0)

    # Conv zero-padding: the halo of the staging scratch must be exact zeros
    # (ReLU(BN(0)) != 0 in general).  The scratch persists across grid steps
    # and is per-TensorCore under megacore, so the (cheap, border-only) halo
    # zeroing is done every step instead of being gated on the first step.
    if padding > 0:
        xp_ref[pl.ds(0, padding), :, :] = jnp.zeros(
            (padding, Wp, cin_pad), xp_ref.dtype)
        xp_ref[pl.ds(Hp - padding, padding), :, :] = jnp.zeros(
            (padding, Wp, cin_pad), xp_ref.dtype)
        xp_ref[:, pl.ds(0, padding), :] = jnp.zeros(
            (Hp, padding, cin_pad), xp_ref.dtype)
        xp_ref[:, pl.ds(Wp - padding, padding), :] = jnp.zeros(
            (Hp, padding, cin_pad), xp_ref.dtype)

    # Stage the activated interior in bf16 (MXU-native operand).
    xp_ref[pl.ds(padding, H), pl.ds(padding, W), :] = a.astype(xp_ref.dtype)

    # ---- Convolution: KH GEMMs, KW folded into the MXU contraction depth ---
    # Per kh, assemble an (OH*OW, KW*cin_pad) LHS slab (lane offsets are
    # multiples of 128 -> aligned stores) and run one GEMM with K = KW*cin_pad,
    # accumulating directly into the VMEM-resident output block.
    # TODO(synk): on v5e the kw>0 patch reads are sublane-misaligned; a
    #             pltpu.roll-based shift per kh would move that to the XLU.
    for kh in range(KH):
        for kw in range(KW):
            if stride == 1:
                patch = xp_ref[pl.ds(kh, OH), pl.ds(kw, OW), :]
            else:
                patch = xp_ref[pl.ds(kh, OH, stride), pl.ds(kw, OW, stride), :]
            slab_ref[:, pl.ds(kw * cin_pad, cin_pad)] = patch.reshape(
                OH * OW, cin_pad)
        contrib = jnp.dot(slab_ref[...], w_ref[0, kh],
                          preferred_element_type=jnp.float32)
        if kh == 0:
            out_ref[0, 0] = contrib
        else:
            out_ref[0, 0] += contrib


def bn_act_conv2d(x_nchw, gamma, beta, run_mean, run_var, w_oihw,
                  *, stride=1, padding=0, groups=1, eps=1e-3):
    """Pallas equivalent of BnActConv2d.forward (eval-mode BN)."""
    N, Cin, H, W = x_nchw.shape
    Cout, cin_g, KH, KW = w_oihw.shape
    assert cin_g * groups == Cin and Cout % groups == 0
    G = groups
    cout_g = Cout // G
    OH = (H + 2 * padding - KH) // stride + 1
    OW = (W + 2 * padding - KW) // stride + 1
    Hp, Wp = H + 2 * padding, W + 2 * padding

    # ---- group packing: pack `gp` groups into one 128-lane tile ------------
    # (block-diagonal weight inside the tile; zeros inside a padded 128-lane
    # tile cost nothing extra, while x DMA/VMEM shrink by gp x).
    gp = 1
    if cin_g < 128:
        cap = max(1, 128 // cin_g)
        for d in range(min(G, cap), 0, -1):
            if G % d == 0:
                gp = d
                break
    SG = G // gp                                   # number of super-groups
    cin_sg, cout_sg = gp * cin_g, gp * cout_g
    cin_pad = _round_up(cin_sg, 128)
    cout_pad = _round_up(cout_sg, 128)

    # ---- glue: fold BN into per-channel scale/bias (zero on padded lanes) --
    scale = gamma.astype(jnp.float32) / jnp.sqrt(run_var.astype(jnp.float32) + eps)
    bias = beta.astype(jnp.float32) - run_mean.astype(jnp.float32) * scale
    scale_sg = jnp.pad(scale.reshape(SG, cin_sg),
                       ((0, 0), (0, cin_pad - cin_sg))).reshape(SG, 1, cin_pad)
    bias_sg = jnp.pad(bias.reshape(SG, cin_sg),
                      ((0, 0), (0, cin_pad - cin_sg))).reshape(SG, 1, cin_pad)

    # ---- glue: NCHW -> (N, SG, H, W, cin_pad) bf16 (no spatial pad) --------
    x_g = x_nchw.astype(jnp.bfloat16).reshape(N, SG, cin_sg, H, W)
    x_g = jnp.transpose(x_g, (0, 1, 3, 4, 2))               # (N, SG, H, W, cin_sg)
    x_g = jnp.pad(x_g, ((0, 0), (0, 0), (0, 0), (0, 0), (0, cin_pad - cin_sg)))

    # ---- glue: OIHW -> block-diagonal (SG, KH, KW*cin_pad, cout_pad) bf16 --
    w_f = w_oihw.astype(jnp.float32).reshape(SG, gp, cout_g, cin_g, KH, KW)
    eye = jnp.eye(gp, dtype=jnp.float32)
    # w_bd[s,kh,kw, g*cin_g+i, j*cout_g+o] = w[s,g,o,i,kh,kw] * (g == j)
    w_bd = jnp.einsum('sgoihw,gj->shwgijo', w_f, eye)
    w_bd = w_bd.reshape(SG, KH, KW, cin_sg, cout_sg)
    w_bd = jnp.pad(w_bd, ((0, 0), (0, 0), (0, 0),
                          (0, cin_pad - cin_sg), (0, cout_pad - cout_sg)))
    # fold KW into the contraction axis:  K index = kw*cin_pad + c
    w_bd = w_bd.reshape(SG, KH, KW * cin_pad, cout_pad).astype(jnp.bfloat16)

    kernel = functools.partial(
        _bn_act_conv_kernel,
        H=H, W=W, KH=KH, KW=KW, OH=OH, OW=OW, stride=stride, padding=padding)

    cost = pl.CostEstimate(
        flops=2 * N * OH * OW * Cout * KH * KW * cin_g,
        transcendentals=0,
        bytes_accessed=int(x_g.size * 2 + w_bd.size * 2
                           + N * SG * OH * OW * cout_pad * 4
                           + (scale_sg.size + bias_sg.size) * 4))

    # Explicit scoped-VMEM budget (blocks are double-buffered by the pipeline).
    x_blk = H * W * cin_pad * 2
    w_blk = KH * KW * cin_pad * cout_pad * 2
    o_blk = OH * OW * cout_pad * 4
    sb_blk = 2 * cin_pad * 4
    scratch_bytes = Hp * Wp * cin_pad * 2 + OH * OW * KW * cin_pad * 2
    vmem_bytes = 2 * (x_blk + w_blk + o_blk + sb_blk) + scratch_bytes
    vmem_limit = int(min(100 * 2 ** 20, max(32 * 2 ** 20, int(vmem_bytes * 1.5))))

    out_g = pl.pallas_call(
        kernel,
        out_shape=jax.ShapeDtypeStruct((N, SG, OH * OW, cout_pad), jnp.float32),
        # super-group outermost, batch innermost -> weight block index is
        # unchanged across consecutive steps and is not re-DMA'd per image.
        grid=(SG, N),
        in_specs=[
            pl.BlockSpec((1, 1, H, W, cin_pad), lambda sg, n: (n, sg, 0, 0, 0)),
            pl.BlockSpec((1, 1, cin_pad), lambda sg, n: (sg, 0, 0)),
            pl.BlockSpec((1, 1, cin_pad), lambda sg, n: (sg, 0, 0)),
            pl.BlockSpec((1, KH, KW * cin_pad, cout_pad),
                         lambda sg, n: (sg, 0, 0, 0)),
        ],
        out_specs=pl.BlockSpec((1, 1, OH * OW, cout_pad),
                               lambda sg, n: (n, sg, 0, 0)),
        scratch_shapes=[
            pltpu.VMEM((Hp, Wp, cin_pad), jnp.bfloat16),       # staged activation
            pltpu.VMEM((OH * OW, KW * cin_pad), jnp.bfloat16),  # per-kh GEMM LHS
        ],
        compiler_params=pltpu.CompilerParams(
            dimension_semantics=("parallel", "parallel"),
            vmem_limit_bytes=vmem_limit),
        cost_estimate=cost,
    )(x_g, scale_sg, bias_sg, w_bd)

    # (N, SG, OH*OW, cout_pad) -> NCHW, dropping padded output lanes and
    # un-packing the gp groups of each super-group.
    out = out_g.reshape(N, SG, OH, OW, cout_pad)[..., :cout_sg]
    out = out.reshape(N, SG, OH, OW, gp, cout_g)
    out = jnp.transpose(out, (0, 1, 4, 5, 2, 3)).reshape(N, Cout, OH, OW)
    return out


def _reference(x_nchw, gamma, beta, run_mean, run_var, w_oihw,
               *, stride, padding, groups, eps=1e-3,
               gemm_dtype=jnp.float32, quantize_input=False):
    xr = x_nchw
    if quantize_input:
        xr = xr.astype(jnp.bfloat16).astype(jnp.float32)
    inv = gamma / jnp.sqrt(run_var + eps)
    bn = (xr - run_mean[None, :, None, None]) * inv[None, :, None, None] \
        + beta[None, :, None, None]
    act = jnp.maximum(bn, 0.0).astype(gemm_dtype)
    return jax.lax.conv_general_dilated(
        act, w_oihw.astype(gemm_dtype), window_strides=(stride, stride),
        padding=[(padding, padding), (padding, padding)],
        feature_group_count=groups,
        dimension_numbers=("NCHW", "OIHW", "NCHW"),
        preferred_element_type=jnp.float32)


if __name__ == "__main__":
    # BnActConv2d(in_chs=4, out_chs=8, kernel_size=3, stride=1, padding=1, groups=2)
    N, Cin, H, W = 2, 4, 16, 16
    Cout, K, S, P, G = 8, 3, 1, 1, 2
    eps = 1e-3

    key = jax.random.PRNGKey(0)
    kx, kg, kb, km, kv, kw = jax.random.split(key, 6)
    x = jax.random.normal(kx, (N, Cin, H, W), jnp.float32)
    gamma = jax.random.uniform(kg, (Cin,), jnp.float32, 0.5, 1.5)
    beta = jax.random.normal(kb, (Cin,), jnp.float32) * 0.1
    run_mean = jax.random.normal(km, (Cin,), jnp.float32) * 0.1
    run_var = jax.random.uniform(kv, (Cin,), jnp.float32, 0.5, 1.5)
    w = jax.random.normal(kw, (Cout, Cin // G, K, K), jnp.float32) * 0.1

    out = bn_act_conv2d(x, gamma, beta, run_mean, run_var, w,
                        stride=S, padding=P, groups=G, eps=eps)
    out = jax.block_until_ready(out)
    assert out.shape == (N, Cout, H, W), out.shape

    # Tight check vs a reference with the same quantization points (bf16 input,
    # f32 BN+ReLU, bf16 GEMM operands, f32 accumulation).
    ref_bf16 = _reference(x, gamma, beta, run_mean, run_var, w,
                          stride=S, padding=P, groups=G, eps=eps,
                          gemm_dtype=jnp.bfloat16, quantize_input=True)
    assert jnp.allclose(out, ref_bf16, atol=2e-3, rtol=2e-3), \
        float(jnp.max(jnp.abs(out - ref_bf16)))

    # Loose sanity check vs the full-f32 reference (bf16 quantization noise).
    ref_f32 = _reference(x, gamma, beta, run_mean, run_var, w,
                         stride=S, padding=P, groups=G, eps=eps)
    assert jnp.allclose(out, ref_f32, atol=5e-2, rtol=5e-2), \
        float(jnp.max(jnp.abs(out - ref_f32)))

    print("KERNEL_OK")
</pallas_src>

<mosaic_0001>
module attributes {stable_mosaic.version = 11 : i64} {
  func.func @_bn_act_conv_kernel(%arg0: i32, %arg1: i32, %arg2: memref<1x1x16x16x128xbf16, #tpu.memory_space<vmem>>, %arg3: memref<1x1x128xf32, #tpu.memory_space<vmem>>, %arg4: memref<1x1x128xf32, #tpu.memory_space<vmem>>, %arg5: memref<1x3x384x128xbf16, #tpu.memory_space<vmem>>, %arg6: memref<1x1x256x128xf32, #tpu.memory_space<vmem>>, %arg7: memref<18x18x128xbf16, #tpu.memory_space<vmem>>, %arg8: memref<256x384xbf16, #tpu.memory_space<vmem>>) attributes {dimension_semantics = [#tpu.dimension_semantics<parallel>, #tpu.dimension_semantics<parallel>], iteration_bounds = array<i64: 1, 2>, scalar_prefetch = 0 : i64, scratch_operands = 2 : i64, tpu.core_type = #tpu.core_type<tc>, window_params = [{transform_indices = @transform_0, window_bounds = array<i64: 1, 1, 16, 16, 128>}, {transform_indices = @transform_1, window_bounds = array<i64: 1, 1, 128>}, {transform_indices = @transform_2, window_bounds = array<i64: 1, 1, 128>}, {transform_indices = @transform_3, window_bounds = array<i64: 1, 3, 384, 128>}, {transform_indices = @transform_4, window_bounds = array<i64: 1, 1, 256, 128>}]} {
    %c0 = arith.constant 0 : index
    %c0_0 = arith.constant 0 : index
    %c0_1 = arith.constant 0 : index
    %c0_2 = arith.constant 0 : index
    %c0_3 = arith.constant 0 : index
    %0 = vector.load %arg2[%c0, %c0_0, %c0_1, %c0_2, %c0_3] : memref<1x1x16x16x128xbf16, #tpu.memory_space<vmem>>, vector<1x1x16x16x128xbf16>
    %1 = vector.shape_cast %0 : vector<1x1x16x16x128xbf16> to vector<16x16x128xbf16>
    %2 = arith.extf %1 : vector<16x16x128xbf16> to vector<16x16x128xf32>
    %c0_4 = arith.constant 0 : index
    %c0_5 = arith.constant 0 : index
    %c0_6 = arith.constant 0 : index
    %3 = vector.load %arg3[%c0_4, %c0_5, %c0_6] : memref<1x1x128xf32, #tpu.memory_space<vmem>>, vector<1x1x128xf32>
    %4 = vector.shape_cast %3 : vector<1x1x128xf32> to vector<1x128xf32>
    %5 = vector.shape_cast %4 : vector<1x128xf32> to vector<1x1x128xf32>
    %6 = vector.broadcast %5 : vector<1x1x128xf32> to vector<16x16x128xf32>
    %7 = arith.mulf %2, %6 : vector<16x16x128xf32>
    %c0_7 = arith.constant 0 : index
    %c0_8 = arith.constant 0 : index
    %c0_9 = arith.constant 0 : index
    %8 = vector.load %arg4[%c0_7, %c0_8, %c0_9] : memref<1x1x128xf32, #tpu.memory_space<vmem>>, vector<1x1x128xf32>
    %9 = vector.shape_cast %8 : vector<1x1x128xf32> to vector<1x128xf32>
    %10 = vector.shape_cast %9 : vector<1x128xf32> to vector<1x1x128xf32>
    %11 = vector.broadcast %10 : vector<1x1x128xf32> to vector<16x16x128xf32>
    %12 = arith.addf %7, %11 : vector<16x16x128xf32>
    %cst = arith.constant 0.000000e+00 : f32
    %13 = vector.broadcast %cst : f32 to vector<16x16x128xf32>
    %14 = arith.maximumf %12, %13 : vector<16x16x128xf32>
    %cst_10 = arith.constant 0.000000e+00 : bf16
    %15 = vector.broadcast %cst_10 : bf16 to vector<1x18x128xbf16>
    %c0_11 = arith.constant 0 : index
    %c0_12 = arith.constant 0 : index
    %c0_13 = arith.constant 0 : index
    %16 = vector.load %arg7[%c0_11, %c0_12, %c0_13] : memref<18x18x128xbf16, #tpu.memory_space<vmem>>, vector<1x18x128xbf16>
    tpu.vector_store %arg7[%c0_11, %c0_12, %c0_13], %15 {strides = array<i32>} : memref<18x18x128xbf16, #tpu.memory_space<vmem>>, vector<1x18x128xbf16>,
    %cst_14 = arith.constant 0.000000e+00 : bf16
    %17 = vector.broadcast %cst_14 : bf16 to vector<1x18x128xbf16>
    %c17 = arith.constant 17 : index
    %c0_15 = arith.constant 0 : index
    %c0_16 = arith.constant 0 : index
    %18 = vector.load %arg7[%c17, %c0_15, %c0_16] : memref<18x18x128xbf16, #tpu.memory_space<vmem>>, vector<1x18x128xbf16>
    tpu.vector_store %arg7[%c17, %c0_15, %c0_16], %17 {strides = array<i32>} : memref<18x18x128xbf16, #tpu.memory_space<vmem>>, vector<1x18x128xbf16>,
    %cst_17 = arith.constant 0.000000e+00 : bf16
    %19 = vector.broadcast %cst_17 : bf16 to vector<18x1x128xbf16>
    %c0_18 = arith.constant 0 : index
    %c0_19 = arith.constant 0 : index
    %c0_20 = arith.constant 0 : index
    %20 = vector.load %arg7[%c0_18, %c0_19, %c0_20] : memref<18x18x128xbf16, #tpu.memory_space<vmem>>, vector<18x1x128xbf16>
    tpu.vector_store %arg7[%c0_18, %c0_19, %c0_20], %19 {strides = array<i32>} : memref<18x18x128xbf16, #tpu.memory_space<vmem>>, vector<18x1x128xbf16>,
    %cst_21 = arith.constant 0.000000e+00 : bf16
    %21 = vector.broadcast %cst_21 : bf16 to vector<18x1x128xbf16>
    %c0_22 = arith.constant 0 : index
    %c17_23 = arith.constant 17 : index
    %c0_24 = arith.constant 0 : index
    %22 = vector.load %arg7[%c0_22, %c17_23, %c0_24] : memref<18x18x128xbf16, #tpu.memory_space<vmem>>, vector<18x1x128xbf16>
    tpu.vector_store %arg7[%c0_22, %c17_23, %c0_24], %21 {strides = array<i32>} : memref<18x18x128xbf16, #tpu.memory_space<vmem>>, vector<18x1x128xbf16>,
    %23 = arith.truncf %14 : vector<16x16x128xf32> to vector<16x16x128xbf16>
    %c1 = arith.constant 1 : index
    %c1_25 = arith.constant 1 : index
    %c0_26 = arith.constant 0 : index
    %24 = vector.load %arg7[%c1, %c1_25, %c0_26] : memref<18x18x128xbf16, #tpu.memory_space<vmem>>, vector<16x16x128xbf16>
    tpu.vector_store %arg7[%c1, %c1_25, %c0_26], %23 {strides = array<i32>} : memref<18x18x128xbf16, #tpu.memory_space<vmem>>, vector<16x16x128xbf16>,
    %c0_27 = arith.constant 0 : index
    %c0_28 = arith.constant 0 : index
    %c0_29 = arith.constant 0 : index
    %25 = vector.load %arg7[%c0_27, %c0_28, %c0_29] : memref<18x18x128xbf16, #tpu.memory_space<vmem>>, vector<16x16x128xbf16>
    %26 = vector.shape_cast %25 : vector<16x16x128xbf16> to vector<256x128xbf16>
    %c0_30 = arith.constant 0 : index
    %c0_31 = arith.constant 0 : index
    %27 = vector.load %arg8[%c0_30, %c0_31] : memref<256x384xbf16, #tpu.memory_space<vmem>>, vector<256x128xbf16>
    tpu.vector_store %arg8[%c0_30, %c0_31], %26 {strides = array<i32>} : memref<256x384xbf16, #tpu.memory_space<vmem>>, vector<256x128xbf16>,
    %c0_32 = arith.constant 0 : index
    %c1_33 = arith.constant 1 : index
    %c0_34 = arith.constant 0 : index
    %28 = vector.load %arg7[%c0_32, %c1_33, %c0_34] : memref<18x18x128xbf16, #tpu.memory_space<vmem>>, vector<16x16x128xbf16>
    %29 = vector.shape_cast %28 : vector<16x16x128xbf16> to vector<256x128xbf16>
    %c0_35 = arith.constant 0 : index
    %c128 = arith.constant 128 : index
    %30 = vector.load %arg8[%c0_35, %c128] : memref<256x384xbf16, #tpu.memory_space<vmem>>, vector<256x128xbf16>
    tpu.vector_store %arg8[%c0_35, %c128], %29 {strides = array<i32>} : memref<256x384xbf16, #tpu.memory_space<vmem>>, vector<256x128xbf16>,
    %c0_36 = arith.constant 0 : index
    %c2 = arith.constant 2 : index
    %c0_37 = arith.constant 0 : index
    %31 = vector.load %arg7[%c0_36, %c2, %c0_37] : memref<18x18x128xbf16, #tpu.memory_space<vmem>>, vector<16x16x128xbf16>
    %32 = vector.shape_cast %31 : vector<16x16x128xbf16> to vector<256x128xbf16>
    %c0_38 = arith.constant 0 : index
    %c256 = arith.constant 256 : index
    %33 = vector.load %arg8[%c0_38, %c256] : memref<256x384xbf16, #tpu.memory_space<vmem>>, vector<256x128xbf16>
    tpu.vector_store %arg8[%c0_38, %c256], %32 {strides = array<i32>} : memref<256x384xbf16, #tpu.memory_space<vmem>>, vector<256x128xbf16>,
    %c0_39 = arith.constant 0 : index
    %c0_40 = arith.constant 0 : index
    %34 = vector.load %arg8[%c0_39, %c0_40] : memref<256x384xbf16, #tpu.memory_space<vmem>>, vector<256x384xbf16>
    %c0_41 = arith.constant 0 : index
    %c0_42 = arith.constant 0 : index
    %c0_43 = arith.constant 0 : index
    %c0_44 = arith.constant 0 : index
    %35 = vector.load %arg5[%c0_41, %c0_42, %c0_43, %c0_44] : memref<1x3x384x128xbf16, #tpu.memory_space<vmem>>, vector<1x1x384x128xbf16>
    %36 = vector.shape_cast %35 : vector<1x1x384x128xbf16> to vector<384x128xbf16>
    %cst_45 = arith.constant dense<0.000000e+00> : vector<256x128xf32>
    %37 = tpu.matmul %34, %36, %cst_45 {dimension_numbers = #tpu.dot_dimension_numbers<[1], [0], [0], [1], [0, 0, 1, 1], [], []>} : vector<256x384xbf16>, vector<384x128xbf16>, vector<256x128xf32> -> vector<256x128xf32>
    %c0_46 = arith.constant 0 : index
    %c0_47 = arith.constant 0 : index
    %c0_48 = arith.constant 0 : index
    %c0_49 = arith.constant 0 : index
    %38 = vector.load %arg6[%c0_46, %c0_47, %c0_48, %c0_49] : memref<1x1x256x128xf32, #tpu.memory_space<vmem>>, vector<1x1x256x128xf32>
    %39 = vector.shape_cast %38 : vector<1x1x256x128xf32> to vector<256x128xf32>
    %40 = vector.shape_cast %37 : vector<256x128xf32> to vector<1x1x256x128xf32>
    tpu.vector_store %arg6[%c0_46, %c0_47, %c0_48, %c0_49], %40 {strides = array<i32>} : memref<1x1x256x128xf32, #tpu.memory_space<vmem>>, vector<1x1x256x128xf32>,
    %c1_50 = arith.constant 1 : index
    %c0_51 = arith.constant 0 : index
    %c0_52 = arith.constant 0 : index
    %41 = vector.load %arg7[%c1_50, %c0_51, %c0_52] : memref<18x18x128xbf16, #tpu.memory_space<vmem>>, vector<16x16x128xbf16>
    %42 = vector.shape_cast %41 : vector<16x16x128xbf16> to vector<256x128xbf16>
    %c0_53 = arith.constant 0 : index
    %c0_54 = arith.constant 0 : index
    %43 = vector.load %arg8[%c0_53, %c0_54] : memref<256x384xbf16, #tpu.memory_space<vmem>>, vector<256x128xbf16>
    tpu.vector_store %arg8[%c0_53, %c0_54], %42 {strides = array<i32>} : memref<256x384xbf16, #tpu.memory_space<vmem>>, vector<256x128xbf16>,
    %c1_55 = arith.constant 1 : index
    %c1_56 = arith.constant 1 : index
    %c0_57 = arith.constant 0 : index
    %44 = vector.load %arg7[%c1_55, %c1_56, %c0_57] : memref<18x18x128xbf16, #tpu.memory_space<vmem>>, vector<16x16x128xbf16>
    %45 = vector.shape_cast %44 : vector<16x16x128xbf16> to vector<256x128xbf16>
    %c0_58 = arith.constant 0 : index
    %c128_59 = arith.constant 128 : index
    %46 = vector.load %arg8[%c0_58, %c128_59] : memref<256x384xbf16, #tpu.memory_space<vmem>>, vector<256x128xbf16>
    tpu.vector_store %arg8[%c0_58, %c128_59], %45 {strides = array<i32>} : memref<256x384xbf16, #tpu.memory_space<vmem>>, vector<256x128xbf16>,
    %c1_60 = arith.constant 1 : index
    %c2_61 = arith.constant 2 : index
    %c0_62 = arith.constant 0 : index
    %47 = vector.load %arg7[%c1_60, %c2_61, %c0_62] : memref<18x18x128xbf16, #tpu.memory_space<vmem>>, vector<16x16x128xbf16>
    %48 = vector.shape_cast %47 : vector<16x16x128xbf16> to vector<256x128xbf16>
    %c0_63 = arith.constant 0 : index
    %c256_64 = arith.constant 256 : index
    %49 = vector.load %arg8[%c0_63, %c256_64] : memref<256x384xbf16, #tpu.memory_space<vmem>>, vector<256x128xbf16>
    tpu.vector_store %arg8[%c0_63, %c256_64], %48 {strides = array<i32>} : memref<256x384xbf16, #tpu.memory_space<vmem>>, vector<256x128xbf16>,
    %c0_65 = arith.constant 0 : index
    %c0_66 = arith.constant 0 : index
    %50 = vector.load %arg8[%c0_65, %c0_66] : memref<256x384xbf16, #tpu.memory_space<vmem>>, vector<256x384xbf16>
    %c0_67 = arith.constant 0 : index
    %c1_68 = arith.constant 1 : index
    %c0_69 = arith.constant 0 : index
    %c0_70 = arith.constant 0 : index
    %51 = vector.load %arg5[%c0_67, %c1_68, %c0_69, %c0_70] : memref<1x3x384x128xbf16, #tpu.memory_space<vmem>>, vector<1x1x384x128xbf16>
    %52 = vector.shape_cast %51 : vector<1x1x384x128xbf16> to vector<384x128xbf16>
    %cst_71 = arith.constant dense<0.000000e+00> : vector<256x128xf32>
    %53 = tpu.matmul %50, %52, %cst_71 {dimension_numbers = #tpu.dot_dimension_numbers<[1], [0], [0], [1], [0, 0, 1, 1], [], []>} : vector<256x384xbf16>, vector<384x128xbf16>, vector<256x128xf32> -> vector<256x128xf32>
    %c0_72 = arith.constant 0 : index
    %c0_73 = arith.constant 0 : index
    %c0_74 = arith.constant 0 : index
    %c0_75 = arith.constant 0 : index
    %54 = vector.load %arg6[%c0_72, %c0_73, %c0_74, %c0_75] : memref<1x1x256x128xf32, #tpu.memory_space<vmem>>, vector<1x1x256x128xf32>
    %55 = vector.shape_cast %54 : vector<1x1x256x128xf32> to vector<256x128xf32>
    %56 = arith.addf %55, %53 : vector<256x128xf32>
    %c0_76 = arith.constant 0 : index
    %c0_77 = arith.constant 0 : index
    %c0_78 = arith.constant 0 : index
    %c0_79 = arith.constant 0 : index
    %57 = vector.load %arg6[%c0_76, %c0_77, %c0_78, %c0_79] : memref<1x1x256x128xf32, #tpu.memory_space<vmem>>, vector<1x1x256x128xf32>
    %58 = vector.shape_cast %57 : vector<1x1x256x128xf32> to vector<256x128xf32>
    %59 = vector.shape_cast %56 : vector<256x128xf32> to vector<1x1x256x128xf32>
    tpu.vector_store %arg6[%c0_76, %c0_77, %c0_78, %c0_79], %59 {strides = array<i32>} : memref<1x1x256x128xf32, #tpu.memory_space<vmem>>, vector<1x1x256x128xf32>,
    %c2_80 = arith.constant 2 : index
    %c0_81 = arith.constant 0 : index
    %c0_82 = arith.constant 0 : index
    %60 = vector.load %arg7[%c2_80, %c0_81, %c0_82] : memref<18x18x128xbf16, #tpu.memory_space<vmem>>, vector<16x16x128xbf16>
    %61 = vector.shape_cast %60 : vector<16x16x128xbf16> to vector<256x128xbf16>
    %c0_83 = arith.constant 0 : index
    %c0_84 = arith.constant 0 : index
    %62 = vector.load %arg8[%c0_83, %c0_84] : memref<256x384xbf16, #tpu.memory_space<vmem>>, vector<256x128xbf16>
    tpu.vector_store %arg8[%c0_83, %c0_84], %61 {strides = array<i32>} : memref<256x384xbf16, #tpu.memory_space<vmem>>, vector<256x128xbf16>,
    %c2_85 = arith.constant 2 : index
    %c1_86 = arith.constant 1 : index
    %c0_87 = arith.constant 0 : index
    %63 = vector.load %arg7[%c2_85, %c1_86, %c0_87] : memref<18x18x128xbf16, #tpu.memory_space<vmem>>, vector<16x16x128xbf16>
    %64 = vector.shape_cast %63 : vector<16x16x128xbf16> to vector<256x128xbf16>
    %c0_88 = arith.constant 0 : index
    %c128_89 = arith.constant 128 : index
    %65 = vector.load %arg8[%c0_88, %c128_89] : memref<256x384xbf16, #tpu.memory_space<vmem>>, vector<256x128xbf16>
    tpu.vector_store %arg8[%c0_88, %c128_89], %64 {strides = array<i32>} : memref<256x384xbf16, #tpu.memory_space<vmem>>, vector<256x128xbf16>,
    %c2_90 = arith.constant 2 : index
    %c2_91 = arith.constant 2 : index
    %c0_92 = arith.constant 0 : index
    %66 = vector.load %arg7[%c2_90, %c2_91, %c0_92] : memref<18x18x128xbf16, #tpu.memory_space<vmem>>, vector<16x16x128xbf16>
    %67 = vector.shape_cast %66 : vector<16x16x128xbf16> to vector<256x128xbf16>
    %c0_93 = arith.constant 0 : index
    %c256_94 = arith.constant 256 : index
    %68 = vector.load %arg8[%c0_93, %c256_94] : memref<256x384xbf16, #tpu.memory_space<vmem>>, vector<256x128xbf16>
    tpu.vector_store %arg8[%c0_93, %c256_94], %67 {strides = array<i32>} : memref<256x384xbf16, #tpu.memory_space<vmem>>, vector<256x128xbf16>,
    %c0_95 = arith.constant 0 : index
    %c0_96 = arith.constant 0 : index
    %69 = vector.load %arg8[%c0_95, %c0_96] : memref<256x384xbf16, #tpu.memory_space<vmem>>, vector<256x384xbf16>
    %c0_97 = arith.constant 0 : index
    %c2_98 = arith.constant 2 : index
    %c0_99 = arith.constant 0 : index
    %c0_100 = arith.constant 0 : index
    %70 = vector.load %arg5[%c0_97, %c2_98, %c0_99, %c0_100] : memref<1x3x384x128xbf16, #tpu.memory_space<vmem>>, vector<1x1x384x128xbf16>
    %71 = vector.shape_cast %70 : vector<1x1x384x128xbf16> to vector<384x128xbf16>
    %cst_101 = arith.constant dense<0.000000e+00> : vector<256x128xf32>
    %72 = tpu.matmul %69, %71, %cst_101 {dimension_numbers = #tpu.dot_dimension_numbers<[1], [0], [0], [1], [0, 0, 1, 1], [], []>} : vector<256x384xbf16>, vector<384x128xbf16>, vector<256x128xf32> -> vector<256x128xf32>
    %c0_102 = arith.constant 0 : index
    %c0_103 = arith.constant 0 : index
    %c0_104 = arith.constant 0 : index
    %c0_105 = arith.constant 0 : index
    %73 = vector.load %arg6[%c0_102, %c0_103, %c0_104, %c0_105] : memref<1x1x256x128xf32, #tpu.memory_space<vmem>>, vector<1x1x256x128xf32>
    %74 = vector.shape_cast %73 : vector<1x1x256x128xf32> to vector<256x128xf32>
    %75 = arith.addf %74, %72 : vector<256x128xf32>
    %c0_106 = arith.constant 0 : index
    %c0_107 = arith.constant 0 : index
    %c0_108 = arith.constant 0 : index
    %c0_109 = arith.constant 0 : index
    %76 = vector.load %arg6[%c0_106, %c0_107, %c0_108, %c0_109] : memref<1x1x256x128xf32, #tpu.memory_space<vmem>>, vector<1x1x256x128xf32>
    %77 = vector.shape_cast %76 : vector<1x1x256x128xf32> to vector<256x128xf32>
    %78 = vector.shape_cast %75 : vector<256x128xf32> to vector<1x1x256x128xf32>
    tpu.vector_store %arg6[%c0_106, %c0_107, %c0_108, %c0_109], %78 {strides = array<i32>} : memref<1x1x256x128xf32, #tpu.memory_space<vmem>>, vector<1x1x256x128xf32>,
    return
  }
  func.func @transform_0(%arg0: i32, %arg1: i32) -> (i32, i32, i32, i32, i32) {
    %c0_i32 = arith.constant 0 : i32
    %c0_i32_0 = arith.constant 0 : i32
    %c0_i32_1 = arith.constant 0 : i32
    %c0_i32_2 = arith.constant 0 : i32
    return %arg1, %arg0, %c0_i32, %c0_i32_0, %c0_i32_1 : i32, i32, i32, i32, i32
  }
  func.func @transform_1(%arg0: i32, %arg1: i32) -> (i32, i32, i32) {
    %c0_i32 = arith.constant 0 : i32
    %c0_i32_0 = arith.constant 0 : i32
    %c0_i32_1 = arith.constant 0 : i32
    return %arg0, %c0_i32, %c0_i32_0 : i32, i32, i32
  }
  func.func @transform_2(%arg0: i32, %arg1: i32) -> (i32, i32, i32) {
    %c0_i32 = arith.constant 0 : i32
    %c0_i32_0 = arith.constant 0 : i32
    %c0_i32_1 = arith.constant 0 : i32
    return %arg0, %c0_i32, %c0_i32_0 : i32, i32, i32
  }
  func.func @transform_3(%arg0: i32, %arg1: i32) -> (i32, i32, i32, i32) {
    %c0_i32 = arith.constant 0 : i32
    %c0_i32_0 = arith.constant 0 : i32
    %c0_i32_1 = arith.constant 0 : i32
    %c0_i32_2 = arith.constant 0 : i32
    return %arg0, %c0_i32, %c0_i32_0, %c0_i32_1 : i32, i32, i32, i32
  }
  func.func @transform_4(%arg0: i32, %arg1: i32) -> (i32, i32, i32, i32) {
    %c0_i32 = arith.constant 0 : i32
    %c0_i32_0 = arith.constant 0 : i32
    %c0_i32_1 = arith.constant 0 : i32
    return %arg1, %arg0, %c0_i32, %c0_i32_0 : i32, i32, i32, i32
  }
}

</mosaic_0001>

<llo_original>
// kernel: tpu_custom_call.1
$region0: #{tpu_custom_call.1}
  #allocation0 [shape = 'u32[]', space=smem, size = 0x4, offset = 0x4, fixed_abs, tag = 'smem constant byte address 0x4 - core index']
  #allocation1 [shape = 'u32[144,128]{1,0:T(1,128)}', space=vmem, size = 0x12000, scoped, tag = 'internal scratch']
  #allocation2 [shape = 'bf16[18,18,128]{2,1,0:T(8,128)(2,1)}', space=vmem, size = 0x1b000, scoped, tag = 'scratch operand']
  #allocation3 [shape = 'bf16[256,384]{1,0:T(16,128)(2,1)}', space=vmem, size = 0x30000, scoped, tag = 'scratch operand']
  %s0 = inlined_call_operand.hbm [shape: bf16[2,1,16,16,128], index: 0, kind: input, shape index: {}]
  %s1 = inlined_call_operand.vmem [shape: f32[1,1,128], index: 1, kind: input, shape index: {}]
  %s2 = inlined_call_operand.vmem [shape: f32[1,1,128], index: 2, kind: input, shape index: {}]
  %s3 = inlined_call_operand.hbm [shape: bf16[1,3,384,128], index: 3, kind: input, shape index: {}]
  %s4 = inlined_call_operand.hbm [shape: f32[2,1,256,128], index: 4, kind: output, shape index: {}]
  %s5 = sld [smem:[#allocation0]]
  $region57: #{tpu_custom_call.1} parent=0
    _
  %s7 = ssub.s32 1, %s5
  %s8 = scalar_select 0, %s7, %s5
  $region1: #{tpu_custom_call.1} parent=0
    #allocation4 [shape = 'u8[131072]{0}', space=vmem, size = 0x20000, scoped, tag = 'input window, operand 0']
    #allocation5 [shape = 's32[2]{0}', space=sflag, size = 0x8, scoped, tag = 'scoped memory for tpu_custom_call.1']
    #allocation6 [shape = 's32[2]{0}', space=sflag, size = 0x8, scoped, tag = 'scoped memory for tpu_custom_call.1']
    #allocation7 [shape = 'u8[294912]{0}', space=vmem, size = 0x48000, scoped, tag = 'input window, operand 3, single buffered']
    #allocation8 [shape = 's32[1]{0}', space=sflag, size = 0x4, scoped, tag = 'scoped memory for tpu_custom_call.1']
    #allocation9 [shape = 'u8[262144]{0}', space=vmem, size = 0x40000, scoped, tag = 'output window, operand 0']
    %9 = vsyncpa [#allocation5], 0
    %s10 = scalar_lea.sflag [#allocation5], 1
    %11 = vsyncpa %s10, 0
    %12 = vsyncpa [#allocation8], 0
    %13 = vsyncpa [#allocation6], 0
    %s14 = scalar_lea.sflag [#allocation6], 1
    %15 = vsyncpa %s14, 0
    loop: start=0, step=1, limit=4
    $region2: #{tpu_custom_call.1} parent=1 // loop_pre_header
      _
    $region3: #{tpu_custom_call.1} parent=1 // loop_header
      %s17 = sphi 0, %s21
      %p18 = scmp.ge.s32.totalorder %s17, 4
      %s24 = sphi 0, %s36
      %s25 = sphi 0, %s32
      %s26 = sphi 0, %s24
      %s27 = sphi 0, %s25
      %s28 = sphi 0, %s26
      %s29 = sphi 0, %s27
      %s41 = sphi 0, %s43
      %s44 = sphi 0, %s41
      %s45 = sphi 0, %s44
      %s61 = sphi 0, %s45
      %s67 = sphi 0, %s69
      %s70 = sphi 0, %s67
      %s71 = sphi 0, %s70
      %s87 = sphi 0, %s71
      %s93 = sphi 0, %s95
      %s96 = sphi 0, %s93
      %s97 = sphi 0, %s96
      %s113 = sphi 0, %s97
      %s119 = sphi 0, %s121
      %s122 = sphi 0, %s119
      %s123 = sphi 0, %s122
      %s139 = sphi 0, %s123
      %s147 = sphi 0, %s149
      %s150 = sphi 0, %s147
      %s151 = sphi 0, %s150
      %s167 = sphi 0, %s151
    $region4: #{tpu_custom_call.1} parent=1 // loop_header_branch
      %20 = sbr.rel (%p18) target = $region8
    $region5: #{tpu_custom_call.1} parent=1 // loop_body
      %s22 = ssub.s32 %s17, 1
      %s23 = ssub.s32 %s17, 2
      %s30 = sadd.s32 1, %s25
      %p31 = scmp.ge.s32.totalorder %s30, 2
      %s32 = scalar_select %p31, 0, %s30
      %s33 = sadd.s32 1, %s24
      %s34 = scalar_select %p31, %s33, %s24
      %p35 = scmp.ge.s32.totalorder %s34, 1
      %s36 = scalar_select %p35, 0, %s34
      %s37 = ssub.s32 %s25, %s32
      %s38 = ssub.s32 %s24, %s36
      %s39 = sor.u32 %s37, %s38
      %p40 = scmp.eq.s32.totalorder %s39, 0
      %s42 = sadd.s32 %s41, 1
      %s43 = scalar_select %p40, %s41, %s42
      %p46 = pneg %p40
      %p47 = scmp.eq.s32.totalorder %s17, 1
      %p48 = por %p46, %p47
      %p49 = scmp.ne.s32.totalorder %s41, %s44
      %p50 = scmp.eq.s32.totalorder %s17, 0
      %p51 = por %p49, %p50
      %p52 = scmp.ne.s32.totalorder %s41, %s44
      %p53 = scmp.eq.s32.totalorder %s22, 1
      %p54 = por %p52, %p53
      %p55 = scmp.ne.s32.totalorder %s44, %s45
      %p56 = scmp.eq.s32.totalorder %s22, 0
      %p57 = por %p55, %p56
      %p58 = scmp.ne.s32.totalorder %s44, %s45
      %p59 = scmp.eq.s32.totalorder %s23, 1
      %p60 = por %p58, %p59
      %p62 = scmp.ne.s32.totalorder %s45, %s61
      %p63 = scmp.eq.s32.totalorder %s23, 0
      %p64 = por %p62, %p63
      %s65 = ssub.s32 %s24, %s36
      %p66 = scmp.eq.s32.totalorder %s65, 0
      %s68 = sadd.s32 %s67, 1
      %s69 = scalar_select %p66, %s67, %s68
      %p72 = pneg %p66
      %p73 = scmp.eq.s32.totalorder %s17, 1
      %p74 = por %p72, %p73
      %p75 = scmp.ne.s32.totalorder %s67, %s70
      %p76 = scmp.eq.s32.totalorder %s17, 0
      %p77 = por %p75, %p76
      %p78 = scmp.ne.s32.totalorder %s67, %s70
      %p79 = scmp.eq.s32.totalorder %s22, 1
      %p80 = por %p78, %p79
      %p81 = scmp.ne.s32.totalorder %s70, %s71
      %p82 = scmp.eq.s32.totalorder %s22, 0
      %p83 = por %p81, %p82
      %p84 = scmp.ne.s32.totalorder %s70, %s71
      %p85 = scmp.eq.s32.totalorder %s23, 1
      %p86 = por %p84, %p85
      %p88 = scmp.ne.s32.totalorder %s71, %s87
      %p89 = scmp.eq.s32.totalorder %s23, 0
      %p90 = por %p88, %p89
      %s91 = ssub.s32 %s24, %s36
      %p92 = scmp.eq.s32.totalorder %s91, 0
      %s94 = sadd.s32 %s93, 1
      %s95 = scalar_select %p92, %s93, %s94
      %p98 = pneg %p92
      %p99 = scmp.eq.s32.totalorder %s17, 1
      %p100 = por %p98, %p99
      %p101 = scmp.ne.s32.totalorder %s93, %s96
      %p102 = scmp.eq.s32.totalorder %s17, 0
      %p103 = por %p101, %p102
      %p104 = scmp.ne.s32.totalorder %s93, %s96
      %p105 = scmp.eq.s32.totalorder %s22, 1
      %p106 = por %p104, %p105
      %p107 = scmp.ne.s32.totalorder %s96, %s97
      %p108 = scmp.eq.s32.totalorder %s22, 0
      %p109 = por %p107, %p108
      %p110 = scmp.ne.s32.totalorder %s96, %s97
      %p111 = scmp.eq.s32.totalorder %s23, 1
      %p112 = por %p110, %p111
      %p114 = scmp.ne.s32.totalorder %s97, %s113
      %p115 = scmp.eq.s32.totalorder %s23, 0
      %p116 = por %p114, %p115
      %s117 = ssub.s32 %s24, %s36
      %p118 = scmp.eq.s32.totalorder %s117, 0
      %s120 = sadd.s32 %s119, 1
      %s121 = scalar_select %p118, %s119, %s120
      %p124 = pneg %p118
      %p125 = scmp.eq.s32.totalorder %s17, 1
      %p126 = por %p124, %p125
      %p127 = scmp.ne.s32.totalorder %s119, %s122
      %p128 = scmp.eq.s32.totalorder %s17, 0
      %p129 = por %p127, %p128
      %p130 = scmp.ne.s32.totalorder %s119, %s122
      %p131 = scmp.eq.s32.totalorder %s22, 1
      %p132 = por %p130, %p131
      %p133 = scmp.ne.s32.totalorder %s122, %s123
      %p134 = scmp.eq.s32.totalorder %s22, 0
      %p135 = por %p133, %p134
      %p136 = scmp.ne.s32.totalorder %s122, %s123
      %p137 = scmp.eq.s32.totalorder %s23, 1
      %p138 = por %p136, %p137
      %p140 = scmp.ne.s32.totalorder %s123, %s139
      %p141 = scmp.eq.s32.totalorder %s23, 0
      %p142 = por %p140, %p141
      %s143 = ssub.s32 %s25, %s32
      %s144 = ssub.s32 %s24, %s36
      %s145 = sor.u32 %s143, %s144
      %p146 = scmp.eq.s32.totalorder %s145, 0
      %s148 = sadd.s32 %s147, 1
      %s149 = scalar_select %p146, %s147, %s148
      %p152 = pneg %p146
      %p153 = scmp.eq.s32.totalorder %s17, 1
      %p154 = por %p152, %p153
      %p155 = scmp.ne.s32.totalorder %s147, %s150
      %p156 = scmp.eq.s32.totalorder %s17, 0
      %p157 = por %p155, %p156
      %p158 = scmp.ne.s32.totalorder %s147, %s150
      %p159 = scmp.eq.s32.totalorder %s22, 1
      %p160 = por %p158, %p159
      %p161 = scmp.ne.s32.totalorder %s150, %s151
      %p162 = scmp.eq.s32.totalorder %s22, 0
      %p163 = por %p161, %p162
      %p164 = scmp.ne.s32.totalorder %s150, %s151
      %p165 = scmp.eq.s32.totalorder %s23, 1
      %p166 = por %p164, %p165
      %p168 = scmp.ne.s32.totalorder %s151, %s167
      %p169 = scmp.eq.s32.totalorder %s23, 0
      %p170 = por %p168, %p169
      %p171 = scmp.le.s32.totalorder 1, %s17
      %p172 = scmp.lt.s32.totalorder %s17, 3
      %p173 = pnand %p171, %p172
      %p174 = pneg %p173
      // Predicated region
      $region9: #{tpu_custom_call.1} parent=5 // pred_check
        _
      $region10: #{tpu_custom_call.1} parent=5 // pred_check_branch
        %176 = sbr.rel (%p173) target = $region12
      $region11: #{tpu_custom_call.1} parent=5 // pred_region
        %s177 = ssub.s32 %s17, 1
        // Predicated region
        $region13: #{tpu_custom_call.1} parent=11 // pred_check
          %p178 = pneg %p83
        $region14: #{tpu_custom_call.1} parent=11 // pred_check_branch
          %180 = sbr.rel (%p178) target = $region16
        $region15: #{tpu_custom_call.1} parent=11 // pred_region
          %p181 = scmp.lt.s32.totalorder %s26, 0
          %s182 = scalar_select %p181, %s26, 0
          %s183 = scalar_lea.vmem %s1, %s182
        $region16: #{tpu_custom_call.1} parent=11 // pred_fallthru
          _
        // Predicated region
        $region17: #{tpu_custom_call.1} parent=11 // pred_check
          %p184 = pneg %p109
        $region18: #{tpu_custom_call.1} parent=11 // pred_check_branch
          %186 = sbr.rel (%p184) target = $region20
        $region19: #{tpu_custom_call.1} parent=11 // pred_region
          %p187 = scmp.lt.s32.totalorder %s26, 0
          %s188 = scalar_select %p187, %s26, 0
          %s189 = scalar_lea.vmem %s2, %s188
        $region20: #{tpu_custom_call.1} parent=11 // pred_fallthru
          _
        // Predicated region
        $region21: #{tpu_custom_call.1} parent=11 // pred_check
          %p190 = pneg %p135
        $region22: #{tpu_custom_call.1} parent=11 // pred_check_branch
          %192 = sbr.rel (%p190) target = $region24
        $region23: #{tpu_custom_call.1} parent=11 // pred_region
          %s194 = ssub.s32 9216, 9216
          %195 = vsyncadd [#allocation8], %s194
          %s196 = smul.addr %s26, 144
          %s197 = smul.addr %s196, 64
          %s198 = scalar_lea.hbm %s3, %s197
          %s199 = sshll.u32 [#allocation7], 4
          %s200 = int_to_ptr.vmem [resolvable:$true] %s199
          %205 = dma.hbm_to_vmem [thread:$0]  %s198, 9216, %s200, [#allocation8], 64, 64, 4
        $region24: #{tpu_custom_call.1} parent=11 // pred_fallthru
          _
      $region12: #{tpu_custom_call.1} parent=5 // pred_fallthru
        _
      %p206 = scmp.lt.s32.totalorder %s17, 2
      // Predicated region
      $region25: #{tpu_custom_call.1} parent=5 // pred_check
        %p207 = pneg %p206
      $region26: #{tpu_custom_call.1} parent=5 // pred_check_branch
        %209 = sbr.rel (%p207) target = $region28
      $region27: #{tpu_custom_call.1} parent=5 // pred_region
        // Predicated region
        $region29: #{tpu_custom_call.1} parent=27 // pred_check
          %p210 = pneg %p51
        $region30: #{tpu_custom_call.1} parent=27 // pred_check_branch
          %212 = sbr.rel (%p210) target = $region32
        $region31: #{tpu_custom_call.1} parent=27 // pred_region
          %s213 = sand.u32 %s41, 1
          %s214 = scalar_lea.sflag [#allocation5], %s213
          %s215 = sand.u32 %s41, 1
          %s216 = smul.addr %s215, 128
          %s217 = scalar_lea.vmem [#allocation4], %s216
          %s219 = ssub.s32 2048, 2048
          %220 = vsyncadd %s214, %s219
          %s221 = smul.addr %s24, 32
          %s222 = smul.addr %s25, 32
          %s223 = sadd.s32 %s221, %s222
          %s224 = smul.addr %s223, 64
          %s225 = scalar_lea.hbm %s0, %s224
          %s226 = sshll.u32 %s217, 4
          %s227 = int_to_ptr.vmem [resolvable:$true] %s226
          %232 = dma.hbm_to_vmem [thread:$0]  %s225, 2048, %s227, %s214, 64, 64, 4
        $region32: #{tpu_custom_call.1} parent=27 // pred_fallthru
          _
      $region28: #{tpu_custom_call.1} parent=5 // pred_fallthru
        _
      %p233 = scmp.le.s32.totalorder 1, %s17
      %p234 = scmp.lt.s32.totalorder %s17, 3
      %p235 = pnand %p233, %p234
      %p236 = pneg %p235
      // Predicated region
      $region33: #{tpu_custom_call.1} parent=5 // pred_check
        _
      $region34: #{tpu_custom_call.1} parent=5 // pred_check_branch
        %238 = sbr.rel (%p235) target = $region36
      $region35: #{tpu_custom_call.1} parent=5 // pred_region
        %s239 = ssub.s32 %s17, 1
        %s240 = sand.u32 %s44, 1
        %s241 = scalar_lea.sflag [#allocation5], %s240
        %s242 = sand.u32 %s44, 1
        %s243 = smul.addr %s242, 128
        %s244 = scalar_lea.vmem [#allocation4], %s243
        // Predicated region
        $region37: #{tpu_custom_call.1} parent=35 // pred_check
          %p245 = pneg %p57
        $region38: #{tpu_custom_call.1} parent=35 // pred_check_branch
          %247 = sbr.rel (%p245) target = $region40
        $region39: #{tpu_custom_call.1} parent=35 // pred_region
          %248 = dma.done %s241, 2048
        $region40: #{tpu_custom_call.1} parent=35 // pred_fallthru
          _
        // Predicated region
        $region41: #{tpu_custom_call.1} parent=35 // pred_check
          %p249 = pneg %p135
        $region42: #{tpu_custom_call.1} parent=35 // pred_check_branch
          %251 = sbr.rel (%p249) target = $region44
        $region43: #{tpu_custom_call.1} parent=35 // pred_region
          %252 = dma.done [#allocation8], 9216
        $region44: #{tpu_custom_call.1} parent=35 // pred_fallthru
          _
        %s253 = sand.u32 %s44, 1
        %s254 = scalar_lea.sflag [#allocation5], %s253
        %s255 = sand.u32 %s44, 1
        %s256 = smul.addr %s255, 128
        %s257 = scalar_lea.vmem [#allocation4], %s256
        %p258 = pneg %p57
        %p259 = pneg %p54
        %p260 = scmp.lt.s32.totalorder %s26, 0
        %s261 = scalar_select %p260, %s26, 0
        %s262 = scalar_lea.vmem %s1, %s261
        %p263 = pneg %p83
        %p264 = pneg %p80
        %p265 = scmp.lt.s32.totalorder %s26, 0
        %s266 = scalar_select %p265, %s26, 0
        %s267 = scalar_lea.vmem %s2, %s266
        %p268 = pneg %p109
        %p269 = pneg %p106
        %p270 = pneg %p135
        %p271 = pneg %p132
        %p272 = pneg %p163
        %p273 = pneg %p160
        %s274 = sand.u32 %s150, 1
        %s275 = scalar_lea.sflag [#allocation6], %s274
        %s276 = sand.u32 %s150, 1
        %s277 = smul.addr %s276, 256
        %s278 = scalar_lea.vmem [#allocation9], %s277
        %p279 = scmp.lt.s32.totalorder %s26, 0
        %s280 = scalar_select %p279, %s26, 0
        %s281 = scalar_lea.vmem %s1, %s280
        %p282 = scmp.lt.s32.totalorder %s26, 0
        %s283 = scalar_select %p282, %s26, 0
        %s284 = scalar_lea.vmem %s2, %s283
        %v286 = vld [vmem:[%s244] sm:$0xf]
        %v287 = vld [vmem:[%s244 + $0x4] sm:$0xf]
        %v288 = vld [vmem:[%s244 + $0x8] sm:$0xf]
        %v289 = vld [vmem:[%s244 + $0xc] sm:$0xf]
        %v290 = vld [vmem:[%s244 + $0x10] sm:$0xf]
        %v291 = vld [vmem:[%s244 + $0x14] sm:$0xf]
        %v292 = vld [vmem:[%s244 + $0x18] sm:$0xf]
        %v293 = vld [vmem:[%s244 + $0x1c] sm:$0xf]
        %v294 = vld [vmem:[%s244 + $0x20] sm:$0xf]
        %v295 = vld [vmem:[%s244 + $0x24] sm:$0xf]
        %v296 = vld [vmem:[%s244 + $0x28] sm:$0xf]
        %v297 = vld [vmem:[%s244 + $0x2c] sm:$0xf]
        %v298 = vld [vmem:[%s244 + $0x30] sm:$0xf]
        %v299 = vld [vmem:[%s244 + $0x34] sm:$0xf]
        %v300 = vld [vmem:[%s244 + $0x38] sm:$0xf]
        %v301 = vld [vmem:[%s244 + $0x3c] sm:$0xf]
        %v302 = vld [vmem:[%s244 + $0x40] sm:$0xf]
        %v303 = vld [vmem:[%s244 + $0x44] sm:$0xf]
        %v304 = vld [vmem:[%s244 + $0x48] sm:$0xf]
        %v305 = vld [vmem:[%s244 + $0x4c] sm:$0xf]
        %v306 = vld [vmem:[%s244 + $0x50] sm:$0xf]
        %v307 = vld [vmem:[%s244 + $0x54] sm:$0xf]
        %v308 = vld [vmem:[%s244 + $0x58] sm:$0xf]
        %v309 = vld [vmem:[%s244 + $0x5c] sm:$0xf]
        %v310 = vld [vmem:[%s244 + $0x60] sm:$0xf]
        %v311 = vld [vmem:[%s244 + $0x64] sm:$0xf]
        %v312 = vld [vmem:[%s244 + $0x68] sm:$0xf]
        %v313 = vld [vmem:[%s244 + $0x6c] sm:$0xf]
        %v314 = vld [vmem:[%s244 + $0x70] sm:$0xf]
        %v315 = vld [vmem:[%s244 + $0x74] sm:$0xf]
        %v316 = vld [vmem:[%s244 + $0x78] sm:$0xf]
        %v317 = vld [vmem:[%s244 + $0x7c] sm:$0xf]
        %v318 = vunpack.c.l.bf16 %v286
        %v319 = vunpack.c.l.bf16 %v287
        %v320 = vunpack.c.l.bf16 %v288
        %v321 = vunpack.c.l.bf16 %v289
        %v322 = vunpack.c.l.bf16 %v290
        %v323 = vunpack.c.l.bf16 %v291
        %v324 = vunpack.c.l.bf16 %v292
        %v325 = vunpack.c.l.bf16 %v293
        %v326 = vunpack.c.l.bf16 %v294
        %v327 = vunpack.c.l.bf16 %v295
        %v328 = vunpack.c.l.bf16 %v296
        %v329 = vunpack.c.l.bf16 %v297
        %v330 = vunpack.c.l.bf16 %v298
        %v331 = vunpack.c.l.bf16 %v299
        %v332 = vunpack.c.l.bf16 %v300
        %v333 = vunpack.c.l.bf16 %v301
        %v334 = vunpack.c.l.bf16 %v302
        %v335 = vunpack.c.l.bf16 %v303
        %v336 = vunpack.c.l.bf16 %v304
        %v337 = vunpack.c.l.bf16 %v305
        %v338 = vunpack.c.l.bf16 %v306
        %v339 = vunpack.c.l.bf16 %v307
        %v340 = vunpack.c.l.bf16 %v308
        %v341 = vunpack.c.l.bf16 %v309
        %v342 = vunpack.c.l.bf16 %v310
        %v343 = vunpack.c.l.bf16 %v311
        %v344 = vunpack.c.l.bf16 %v312
        %v345 = vunpack.c.l.bf16 %v313
        %v346 = vunpack.c.l.bf16 %v314
        %v347 = vunpack.c.l.bf16 %v315
        %v348 = vunpack.c.l.bf16 %v316
        %v349 = vunpack.c.l.bf16 %v317
        %v350 = vld [vmem:[%s281] sm:$0x1]
        %v352 = vlaneseq
        %v353 = vshrl.u32 %v352, 7
        %v354 = vsub.s32 0, %v353
        %v355 = vrot.slane %v350, %v354
        %v357 = vmul.f32 %v318, %v355
        %v358 = vmul.f32 %v319, %v355
        %v359 = vmul.f32 %v320, %v355
        %v360 = vmul.f32 %v321, %v355
        %v361 = vmul.f32 %v322, %v355
        %v362 = vmul.f32 %v323, %v355
        %v363 = vmul.f32 %v324, %v355
        %v364 = vmul.f32 %v325, %v355
        %v365 = vmul.f32 %v326, %v355
        %v366 = vmul.f32 %v327, %v355
        %v367 = vmul.f32 %v328, %v355
        %v368 = vmul.f32 %v329, %v355
        %v369 = vmul.f32 %v330, %v355
        %v370 = vmul.f32 %v331, %v355
        %v371 = vmul.f32 %v332, %v355
        %v372 = vmul.f32 %v333, %v355
        %v373 = vmul.f32 %v334, %v355
        %v374 = vmul.f32 %v335, %v355
        %v375 = vmul.f32 %v336, %v355
        %v376 = vmul.f32 %v337, %v355
        %v377 = vmul.f32 %v338, %v355
        %v378 = vmul.f32 %v339, %v355
        %v379 = vmul.f32 %v340, %v355
        %v380 = vmul.f32 %v341, %v355
        %v381 = vmul.f32 %v342, %v355
        %v382 = vmul.f32 %v343, %v355
        %v383 = vmul.f32 %v344, %v355
        %v384 = vmul.f32 %v345, %v355
        %v385 = vmul.f32 %v346, %v355
        %v386 = vmul.f32 %v347, %v355
        %v387 = vmul.f32 %v348, %v355
        %v388 = vmul.f32 %v349, %v355
        %v389 = vld [vmem:[%s284] sm:$0x1]
        %v391 = vlaneseq
        %v392 = vshrl.u32 %v391, 7
        %v393 = vsub.s32 0, %v392
        %v394 = vrot.slane %v389, %v393
        %v396 = vadd.f32 %v357, %v394
        %v397 = vadd.f32 %v358, %v394
        %v398 = vadd.f32 %v359, %v394
        %v399 = vadd.f32 %v360, %v394
        %v400 = vadd.f32 %v361, %v394
        %v401 = vadd.f32 %v362, %v394
        %v402 = vadd.f32 %v363, %v394
        %v403 = vadd.f32 %v364, %v394
        %v404 = vadd.f32 %v365, %v394
        %v405 = vadd.f32 %v366, %v394
        %v406 = vadd.f32 %v367, %v394
        %v407 = vadd.f32 %v368, %v394
        %v408 = vadd.f32 %v369, %v394
        %v409 = vadd.f32 %v370, %v394
        %v410 = vadd.f32 %v371, %v394
        %v411 = vadd.f32 %v372, %v394
        %v412 = vadd.f32 %v373, %v394
        %v413 = vadd.f32 %v374, %v394
        %v414 = vadd.f32 %v375, %v394
        %v415 = vadd.f32 %v376, %v394
        %v416 = vadd.f32 %v377, %v394
        %v417 = vadd.f32 %v378, %v394
        %v418 = vadd.f32 %v379, %v394
        %v419 = vadd.f32 %v380, %v394
        %v420 = vadd.f32 %v381, %v394
        %v421 = vadd.f32 %v382, %v394
        %v422 = vadd.f32 %v383, %v394
        %v423 = vadd.f32 %v384, %v394
        %v424 = vadd.f32 %v385, %v394
        %v425 = vadd.f32 %v386, %v394
        %v426 = vadd.f32 %v387, %v394
        %v427 = vadd.f32 %v388, %v394
        %v428 = vmax.f32 %v396, 0.0
        %v429 = vmax.f32 %v397, 0.0
        %v430 = vmax.f32 %v398, 0.0
        %v431 = vmax.f32 %v399, 0.0
        %v432 = vmax.f32 %v400, 0.0
        %v433 = vmax.f32 %v401, 0.0
        %v434 = vmax.f32 %v402, 0.0
        %v435 = vmax.f32 %v403, 0.0
        %v436 = vmax.f32 %v404, 0.0
        %v437 = vmax.f32 %v405, 0.0
        %v438 = vmax.f32 %v406, 0.0
        %v439 = vmax.f32 %v407, 0.0
        %v440 = vmax.f32 %v408, 0.0
        %v441 = vmax.f32 %v409, 0.0
        %v442 = vmax.f32 %v410, 0.0
        %v443 = vmax.f32 %v411, 0.0
        %v444 = vmax.f32 %v412, 0.0
        %v445 = vmax.f32 %v413, 0.0
        %v446 = vmax.f32 %v414, 0.0
        %v447 = vmax.f32 %v415, 0.0
        %v448 = vmax.f32 %v416, 0.0
        %v449 = vmax.f32 %v417, 0.0
        %v450 = vmax.f32 %v418, 0.0
        %v451 = vmax.f32 %v419, 0.0
        %v452 = vmax.f32 %v420, 0.0
        %v453 = vmax.f32 %v421, 0.0
        %v454 = vmax.f32 %v422, 0.0
        %v455 = vmax.f32 %v423, 0.0
        %v456 = vmax.f32 %v424, 0.0
        %v457 = vmax.f32 %v425, 0.0
        %v458 = vmax.f32 %v426, 0.0
        %v459 = vmax.f32 %v427, 0.0
        %460 = vst [vmem:[#allocation2] sm:$0xf] 0
        %461 = vst [vmem:[#allocation2 + $0x4] sm:$0xf] 0
        %462 = vst [vmem:[#allocation2 + $0x8] sm:$0x1] 0
        %s463 = scalar_lea.vmem [#allocation2], 204
        %464 = vst [vmem:[%s463] sm:$0xf] 0
        %465 = vst [vmem:[%s463 + $0x4] sm:$0xf] 0
        %466 = vst [vmem:[%s463 + $0x8] sm:$0x1] 0
        %vm467 = vcmask 1040384
        %vm468 = vsmask.f32 256
        %vm469 = vmand %vm467, %vm468
        %v470 = vld [vmem:[#allocation2] sm:$0x1]
        %v471 = vsel %vm469, 0, %v470
        %472 = vst [vmem:[#allocation2] sm:$0x1] %v471
        %v473 = vld [vmem:[#allocation2 + $0xc] sm:$0x1]
        %v474 = vsel %vm469, 0, %v473
        %475 = vst [vmem:[#allocation2 + $0xc] sm:$0x1] %v474
        %v476 = vld [vmem:[#allocation2 + $0x18] sm:$0x1]
        %v477 = vsel %vm469, 0, %v476
        %478 = vst [vmem:[#allocation2 + $0x18] sm:$0x1] %v477
        %v479 = vld [vmem:[#allocation2 + $0x24] sm:$0x1]
        %v480 = vsel %vm469, 0, %v479
        %481 = vst [vmem:[#allocation2 + $0x24] sm:$0x1] %v480
        %v482 = vld [vmem:[#allocation2 + $0x30] sm:$0x1]
        %v483 = vsel %vm469, 0, %v482
        %484 = vst [vmem:[#allocation2 + $0x30] sm:$0x1] %v483
        %v485 = vld [vmem:[#allocation2 + $0x3c] sm:$0x1]
        %v486 = vsel %vm469, 0, %v485
        %487 = vst [vmem:[#allocation2 + $0x3c] sm:$0x1] %v486
        %v488 = vld [vmem:[#allocation2 + $0x48] sm:$0x1]
        %v489 = vsel %vm469, 0, %v488
        %490 = vst [vmem:[#allocation2 + $0x48] sm:$0x1] %v489
        %v491 = vld [vmem:[#allocation2 + $0x54] sm:$0x1]
        %v492 = vsel %vm469, 0, %v491
        %493 = vst [vmem:[#allocation2 + $0x54] sm:$0x1] %v492
        %v494 = vld [vmem:[#allocation2 + $0x60] sm:$0x1]
        %v495 = vsel %vm469, 0, %v494
        %496 = vst [vmem:[#allocation2 + $0x60] sm:$0x1] %v495
        %v497 = vld [vmem:[#allocation2 + $0x6c] sm:$0x1]
        %v498 = vsel %vm469, 0, %v497
        %499 = vst [vmem:[#allocation2 + $0x6c] sm:$0x1] %v498
        %v500 = vld [vmem:[#allocation2 + $0x78] sm:$0x1]
        %v501 = vsel %vm469, 0, %v500
        %502 = vst [vmem:[#allocation2 + $0x78] sm:$0x1] %v501
        %v503 = vld [vmem:[#allocation2 + $0x84] sm:$0x1]
        %v504 = vsel %vm469, 0, %v503
        %505 = vst [vmem:[#allocation2 + $0x84] sm:$0x1] %v504
        %v506 = vld [vmem:[#allocation2 + $0x90] sm:$0x1]
        %v507 = vsel %vm469, 0, %v506
        %508 = vst [vmem:[#allocation2 + $0x90] sm:$0x1] %v507
        %v509 = vld [vmem:[#allocation2 + $0x9c] sm:$0x1]
        %v510 = vsel %vm469, 0, %v509
        %511 = vst [vmem:[#allocation2 + $0x9c] sm:$0x1] %v510
        %v512 = vld [vmem:[#allocation2 + $0xa8] sm:$0x1]
        %v513 = vsel %vm469, 0, %v512
        %514 = vst [vmem:[#allocation2 + $0xa8] sm:$0x1] %v513
        %v515 = vld [vmem:[#allocation2 + $0xb4] sm:$0x1]
        %v516 = vsel %vm469, 0, %v515
        %517 = vst [vmem:[#allocation2 + $0xb4] sm:$0x1] %v516
        %v518 = vld [vmem:[#allocation2 + $0xc0] sm:$0x1]
        %v519 = vsel %vm469, 0, %v518
        %520 = vst [vmem:[#allocation2 + $0xc0] sm:$0x1] %v519
        %v521 = vld [vmem:[#allocation2 + $0xcc] sm:$0x1]
        %v522 = vsel %vm469, 0, %v521
        %523 = vst [vmem:[#allocation2 + $0xcc] sm:$0x1] %v522
        %vm524 = vsmask.f32 7938
        %vm525 = vmand %vm467, %vm524
        %v526 = vld [vmem:[#allocation2 + $0x8] sm:$0x1]
        %v527 = vsel %vm525, 0, %v526
        %528 = vst [vmem:[#allocation2 + $0x8] sm:$0x1] %v527
        %v529 = vld [vmem:[#allocation2 + $0x14] sm:$0x1]
        %v530 = vsel %vm525, 0, %v529
        %531 = vst [vmem:[#allocation2 + $0x14] sm:$0x1] %v530
        %v532 = vld [vmem:[#allocation2 + $0x20] sm:$0x1]
        %v533 = vsel %vm525, 0, %v532
        %534 = vst [vmem:[#allocation2 + $0x20] sm:$0x1] %v533
        %v535 = vld [vmem:[#allocation2 + $0x2c] sm:$0x1]
        %v536 = vsel %vm525, 0, %v535
        %537 = vst [vmem:[#allocation2 + $0x2c] sm:$0x1] %v536
        %v538 = vld [vmem:[#allocation2 + $0x38] sm:$0x1]
        %v539 = vsel %vm525, 0, %v538
        %540 = vst [vmem:[#allocation2 + $0x38] sm:$0x1] %v539
        %v541 = vld [vmem:[#allocation2 + $0x44] sm:$0x1]
        %v542 = vsel %vm525, 0, %v541
        %543 = vst [vmem:[#allocation2 + $0x44] sm:$0x1] %v542
        %v544 = vld [vmem:[#allocation2 + $0x50] sm:$0x1]
        %v545 = vsel %vm525, 0, %v544
        %546 = vst [vmem:[#allocation2 + $0x50] sm:$0x1] %v545
        %v547 = vld [vmem:[#allocation2 + $0x5c] sm:$0x1]
        %v548 = vsel %vm525, 0, %v547
        %549 = vst [vmem:[#allocation2 + $0x5c] sm:$0x1] %v548
        %v550 = vld [vmem:[#allocation2 + $0x68] sm:$0x1]
        %v551 = vsel %vm525, 0, %v550
        %552 = vst [vmem:[#allocation2 + $0x68] sm:$0x1] %v551
        %v553 = vld [vmem:[#allocation2 + $0x74] sm:$0x1]
        %v554 = vsel %vm525, 0, %v553
        %555 = vst [vmem:[#allocation2 + $0x74] sm:$0x1] %v554
        %v556 = vld [vmem:[#allocation2 + $0x80] sm:$0x1]
        %v557 = vsel %vm525, 0, %v556
        %558 = vst [vmem:[#allocation2 + $0x80] sm:$0x1] %v557
        %v559 = vld [vmem:[#allocation2 + $0x8c] sm:$0x1]
        %v560 = vsel %vm525, 0, %v559
        %561 = vst [vmem:[#allocation2 + $0x8c] sm:$0x1] %v560
        %v562 = vld [vmem:[#allocation2 + $0x98] sm:$0x1]
        %v563 = vsel %vm525, 0, %v562
        %564 = vst [vmem:[#allocation2 + $0x98] sm:$0x1] %v563
        %v565 = vld [vmem:[#allocation2 + $0xa4] sm:$0x1]
        %v566 = vsel %vm525, 0, %v565
        %567 = vst [vmem:[#allocation2 + $0xa4] sm:$0x1] %v566
        %v568 = vld [vmem:[#allocation2 + $0xb0] sm:$0x1]
        %v569 = vsel %vm525, 0, %v568
        %570 = vst [vmem:[#allocation2 + $0xb0] sm:$0x1] %v569
        %v571 = vld [vmem:[#allocation2 + $0xbc] sm:$0x1]
        %v572 = vsel %vm525, 0, %v571
        %573 = vst [vmem:[#allocation2 + $0xbc] sm:$0x1] %v572
        %v574 = vld [vmem:[#allocation2 + $0xc8] sm:$0x1]
        %v575 = vsel %vm525, 0, %v574
        %576 = vst [vmem:[#allocation2 + $0xc8] sm:$0x1] %v575
        %v577 = vld [vmem:[#allocation2 + $0xd4] sm:$0x1]
        %v578 = vsel %vm525, 0, %v577
        %579 = vst [vmem:[#allocation2 + $0xd4] sm:$0x1] %v578
        %v580 = vpack.c.bf16 %v429, %v428
        %v581 = vpack.c.bf16 %v431, %v430
        %v582 = vpack.c.bf16 %v433, %v432
        %v583 = vpack.c.bf16 %v435, %v434
        %v584 = vpack.c.bf16 %v437, %v436
        %v585 = vpack.c.bf16 %v439, %v438
        %v586 = vpack.c.bf16 %v441, %v440
        %v587 = vpack.c.bf16 %v443, %v442
        %v588 = vpack.c.bf16 %v445, %v444
        %v589 = vpack.c.bf16 %v447, %v446
        %v590 = vpack.c.bf16 %v449, %v448
        %v591 = vpack.c.bf16 %v451, %v450
        %v592 = vpack.c.bf16 %v453, %v452
        %v593 = vpack.c.bf16 %v455, %v454
        %v594 = vpack.c.bf16 %v457, %v456
        %v595 = vpack.c.bf16 %v459, %v458
        %v612 = vunpack.c.l.b16 %v580
        %v613 = vunpack.c.h.b16 %v580
        %v614 = vunpack.c.l.b16 %v581
        %v615 = vunpack.c.h.b16 %v581
        %v616 = vunpack.c.l.b16 %v582
        %v617 = vunpack.c.h.b16 %v582
        %v618 = vunpack.c.l.b16 %v583
        %v619 = vunpack.c.h.b16 %v583
        %v620 = vunpack.c.l.b16 %v584
        %v621 = vunpack.c.h.b16 %v584
        %v622 = vunpack.c.l.b16 %v585
        %v623 = vunpack.c.h.b16 %v585
        %v624 = vunpack.c.l.b16 %v586
        %v625 = vunpack.c.h.b16 %v586
        %v626 = vunpack.c.l.b16 %v587
        %v627 = vunpack.c.h.b16 %v587
        %v628 = vunpack.c.l.b16 %v588
        %v629 = vunpack.c.h.b16 %v588
        %v630 = vunpack.c.l.b16 %v589
        %v631 = vunpack.c.h.b16 %v589
        %v632 = vunpack.c.l.b16 %v590
        %v633 = vunpack.c.h.b16 %v590
        %v634 = vunpack.c.l.b16 %v591
        %v635 = vunpack.c.h.b16 %v591
        %v636 = vunpack.c.l.b16 %v592
        %v637 = vunpack.c.h.b16 %v592
        %v638 = vunpack.c.l.b16 %v593
        %v639 = vunpack.c.h.b16 %v593
        %v640 = vunpack.c.l.b16 %v594
        %v641 = vunpack.c.h.b16 %v594
        %v642 = vunpack.c.l.b16 %v595
        %v643 = vunpack.c.h.b16 %v595
        %v644 = vpack.c.b16 %v612, %v612
        %v645 = vpack.c.b16 %v613, %v613
        %v646 = vpack.c.b16 %v614, %v614
        %v647 = vpack.c.b16 %v615, %v615
        %v648 = vpack.c.b16 %v616, %v616
        %v649 = vpack.c.b16 %v617, %v617
        %v650 = vpack.c.b16 %v618, %v618
        %v651 = vpack.c.b16 %v619, %v619
        %v652 = vpack.c.b16 %v620, %v620
        %v653 = vpack.c.b16 %v621, %v621
        %v654 = vpack.c.b16 %v622, %v622
        %v655 = vpack.c.b16 %v623, %v623
        %v656 = vpack.c.b16 %v624, %v624
        %v657 = vpack.c.b16 %v625, %v625
        %v658 = vpack.c.b16 %v626, %v626
        %v659 = vpack.c.b16 %v627, %v627
        %v660 = vpack.c.b16 %v628, %v628
        %v661 = vpack.c.b16 %v629, %v629
        %v662 = vpack.c.b16 %v630, %v630
        %v663 = vpack.c.b16 %v631, %v631
        %v664 = vpack.c.b16 %v632, %v632
        %v665 = vpack.c.b16 %v633, %v633
        %v666 = vpack.c.b16 %v634, %v634
        %v667 = vpack.c.b16 %v635, %v635
        %v668 = vpack.c.b16 %v636, %v636
        %v669 = vpack.c.b16 %v637, %v637
        %v670 = vpack.c.b16 %v638, %v638
        %v671 = vpack.c.b16 %v639, %v639
        %v672 = vpack.c.b16 %v640, %v640
        %v673 = vpack.c.b16 %v641, %v641
        %v674 = vpack.c.b16 %v642, %v642
        %v675 = vpack.c.b16 %v643, %v643
        %vm676 = vsmask.f32 4368
        %vm677 = vmor %vm468, %vm676
        %v679 = vshrl.u32 %v644, 16
        %v681 = vrot.slane %v679, 7
        %v682 = vshll.u32 %v644, 16
        %v684 = vor.u32 %v681, %v682
        %v685 = vrot.slane %v681, 4
        %v687 = vshrl.u32 %v645, 16
        %v689 = vrot.slane %v687, 7
        %v690 = vshll.u32 %v645, 16
        %v692 = vor.u32 %v689, %v690
        %v693 = vsel %vm677, %v685, %v692
        %v694 = vrot.slane %v689, 4
        %v696 = vshrl.u32 %v646, 16
        %v698 = vrot.slane %v696, 7
        %v699 = vshll.u32 %v646, 16
        %v701 = vor.u32 %v698, %v699
        %v702 = vrot.slane %v698, 4
        %v704 = vshrl.u32 %v647, 16
        %v706 = vrot.slane %v704, 7
        %v707 = vshll.u32 %v647, 16
        %v709 = vor.u32 %v706, %v707
        %v710 = vsel %vm677, %v702, %v709
        %v711 = vrot.slane %v706, 4
        %v713 = vshrl.u32 %v648, 16
        %v715 = vrot.slane %v713, 7
        %v716 = vshll.u32 %v648, 16
        %v718 = vor.u32 %v715, %v716
        %v719 = vrot.slane %v715, 4
        %v721 = vshrl.u32 %v649, 16
        %v723 = vrot.slane %v721, 7
        %v724 = vshll.u32 %v649, 16
        %v726 = vor.u32 %v723, %v724
        %v727 = vsel %vm677, %v719, %v726
        %v728 = vrot.slane %v723, 4
        %v730 = vshrl.u32 %v650, 16
        %v732 = vrot.slane %v730, 7
        %v733 = vshll.u32 %v650, 16
        %v735 = vor.u32 %v732, %v733
        %v736 = vrot.slane %v732, 4
        %v738 = vshrl.u32 %v651, 16
        %v740 = vrot.slane %v738, 7
        %v741 = vshll.u32 %v651, 16
        %v743 = vor.u32 %v740, %v741
        %v744 = vsel %vm677, %v736, %v743
        %v745 = vrot.slane %v740, 4
        %v747 = vshrl.u32 %v652, 16
        %v749 = vrot.slane %v747, 7
        %v750 = vshll.u32 %v652, 16
        %v752 = vor.u32 %v749, %v750
        %v753 = vrot.slane %v749, 4
        %v755 = vshrl.u32 %v653, 16
        %v757 = vrot.slane %v755, 7
        %v758 = vshll.u32 %v653, 16
        %v760 = vor.u32 %v757, %v758
        %v761 = vsel %vm677, %v753, %v760
        %v762 = vrot.slane %v757, 4
        %v764 = vshrl.u32 %v654, 16
        %v766 = vrot.slane %v764, 7
        %v767 = vshll.u32 %v654, 16
        %v769 = vor.u32 %v766, %v767
        %v770 = vrot.slane %v766, 4
        %v772 = vshrl.u32 %v655, 16
        %v774 = vrot.slane %v772, 7
        %v775 = vshll.u32 %v655, 16
        %v777 = vor.u32 %v774, %v775
        %v778 = vsel %vm677, %v770, %v777
        %v779 = vrot.slane %v774, 4
        %v781 = vshrl.u32 %v656, 16
        %v783 = vrot.slane %v781, 7
        %v784 = vshll.u32 %v656, 16
        %v786 = vor.u32 %v783, %v784
        %v787 = vrot.slane %v783, 4
        %v789 = vshrl.u32 %v657, 16
        %v791 = vrot.slane %v789, 7
        %v792 = vshll.u32 %v657, 16
        %v794 = vor.u32 %v791, %v792
        %v795 = vsel %vm677, %v787, %v794
        %v796 = vrot.slane %v791, 4
        %v798 = vshrl.u32 %v658, 16
        %v800 = vrot.slane %v798, 7
        %v801 = vshll.u32 %v658, 16
        %v803 = vor.u32 %v800, %v801
        %v804 = vrot.slane %v800, 4
        %v806 = vshrl.u32 %v659, 16
        %v808 = vrot.slane %v806, 7
        %v809 = vshll.u32 %v659, 16
        %v811 = vor.u32 %v808, %v809
        %v812 = vsel %vm677, %v804, %v811
        %v813 = vrot.slane %v808, 4
        %v815 = vshrl.u32 %v660, 16
        %v817 = vrot.slane %v815, 7
        %v818 = vshll.u32 %v660, 16
        %v820 = vor.u32 %v817, %v818
        %v821 = vrot.slane %v817, 4
        %v823 = vshrl.u32 %v661, 16
        %v825 = vrot.slane %v823, 7
        %v826 = vshll.u32 %v661, 16
        %v828 = vor.u32 %v825, %v826
        %v829 = vsel %vm677, %v821, %v828
        %v830 = vrot.slane %v825, 4
        %v832 = vshrl.u32 %v662, 16
        %v834 = vrot.slane %v832, 7
        %v835 = vshll.u32 %v662, 16
        %v837 = vor.u32 %v834, %v835
        %v838 = vrot.slane %v834, 4
        %v840 = vshrl.u32 %v663, 16
        %v842 = vrot.slane %v840, 7
        %v843 = vshll.u32 %v663, 16
        %v845 = vor.u32 %v842, %v843
        %v846 = vsel %vm677, %v838, %v845
        %v847 = vrot.slane %v842, 4
        %v849 = vshrl.u32 %v664, 16
        %v851 = vrot.slane %v849, 7
        %v852 = vshll.u32 %v664, 16
        %v854 = vor.u32 %v851, %v852
        %v855 = vrot.slane %v851, 4
        %v857 = vshrl.u32 %v665, 16
        %v859 = vrot.slane %v857, 7
        %v860 = vshll.u32 %v665, 16
        %v862 = vor.u32 %v859, %v860
        %v863 = vsel %vm677, %v855, %v862
        %v864 = vrot.slane %v859, 4
        %v866 = vshrl.u32 %v666, 16
        %v868 = vrot.slane %v866, 7
        %v869 = vshll.u32 %v666, 16
        %v871 = vor.u32 %v868, %v869
        %v872 = vrot.slane %v868, 4
        %v874 = vshrl.u32 %v667, 16
        %v876 = vrot.slane %v874, 7
        %v877 = vshll.u32 %v667, 16
        %v879 = vor.u32 %v876, %v877
        %v880 = vsel %vm677, %v872, %v879
        %v881 = vrot.slane %v876, 4
        %v883 = vshrl.u32 %v668, 16
        %v885 = vrot.slane %v883, 7
        %v886 = vshll.u32 %v668, 16
        %v888 = vor.u32 %v885, %v886
        %v889 = vrot.slane %v885, 4
        %v891 = vshrl.u32 %v669, 16
        %v893 = vrot.slane %v891, 7
        %v894 = vshll.u32 %v669, 16
        %v896 = vor.u32 %v893, %v894
        %v897 = vsel %vm677, %v889, %v896
        %v898 = vrot.slane %v893, 4
        %v900 = vshrl.u32 %v670, 16
        %v902 = vrot.slane %v900, 7
        %v903 = vshll.u32 %v670, 16
        %v905 = vor.u32 %v902, %v903
        %v906 = vrot.slane %v902, 4
        %v908 = vshrl.u32 %v671, 16
        %v910 = vrot.slane %v908, 7
        %v911 = vshll.u32 %v671, 16
        %v913 = vor.u32 %v910, %v911
        %v914 = vsel %vm677, %v906, %v913
        %v915 = vrot.slane %v910, 4
        %v917 = vshrl.u32 %v672, 16
        %v919 = vrot.slane %v917, 7
        %v920 = vshll.u32 %v672, 16
        %v922 = vor.u32 %v919, %v920
        %v923 = vrot.slane %v919, 4
        %v925 = vshrl.u32 %v673, 16
        %v927 = vrot.slane %v925, 7
        %v928 = vshll.u32 %v673, 16
        %v930 = vor.u32 %v927, %v928
        %v931 = vsel %vm677, %v923, %v930
        %v932 = vrot.slane %v927, 4
        %v934 = vshrl.u32 %v674, 16
        %v936 = vrot.slane %v934, 7
        %v937 = vshll.u32 %v674, 16
        %v939 = vor.u32 %v936, %v937
        %v940 = vrot.slane %v936, 4
        %v942 = vshrl.u32 %v675, 16
        %v944 = vrot.slane %v942, 7
        %v945 = vshll.u32 %v675, 16
        %v947 = vor.u32 %v944, %v945
        %v948 = vsel %vm677, %v940, %v947
        %v949 = vrot.slane %v944, 4
        %s998 = scalar_lea.vmem [#allocation2], 12
        %vm999 = vcmask 1043456
        %vm1000 = vmand %vm999, %vm524
        %v1001 = vld [vmem:[%s998] sm:$0xf]
        %v1002 = vsel %vm1000, %v684, %v1001
        %1003 = vst [vmem:[%s998] sm:$0xf] %v1002
        %1004 = vst [vmem:[%s998 + $0x4] sm:$0xf] %v693
        %v1005 = vld [vmem:[%s998 + $0x8] sm:$0x1]
        %v1006 = vsel %vm469, %v694, %v1005
        %1007 = vst [vmem:[%s998 + $0x8] sm:$0x1] %v1006
        %v1008 = vld [vmem:[%s998 + $0xc] sm:$0xf]
        %v1009 = vsel %vm1000, %v701, %v1008
        %1010 = vst [vmem:[%s998 + $0xc] sm:$0xf] %v1009
        %1011 = vst [vmem:[%s998 + $0x10] sm:$0xf] %v710
        %v1012 = vld [vmem:[%s998 + $0x14] sm:$0x1]
        %v1013 = vsel %vm469, %v711, %v1012
        %1014 = vst [vmem:[%s998 + $0x14] sm:$0x1] %v1013
        %v1015 = vld [vmem:[%s998 + $0x18] sm:$0xf]
        %v1016 = vsel %vm1000, %v718, %v1015
        %1017 = vst [vmem:[%s998 + $0x18] sm:$0xf] %v1016
        %1018 = vst [vmem:[%s998 + $0x1c] sm:$0xf] %v727
        %v1019 = vld [vmem:[%s998 + $0x20] sm:$0x1]
        %v1020 = vsel %vm469, %v728, %v1019
        %1021 = vst [vmem:[%s998 + $0x20] sm:$0x1] %v1020
        %v1022 = vld [vmem:[%s998 + $0x24] sm:$0xf]
        %v1023 = vsel %vm1000, %v735, %v1022
        %1024 = vst [vmem:[%s998 + $0x24] sm:$0xf] %v1023
        %1025 = vst [vmem:[%s998 + $0x28] sm:$0xf] %v744
        %v1026 = vld [vmem:[%s998 + $0x2c] sm:$0x1]
        %v1027 = vsel %vm469, %v745, %v1026
        %1028 = vst [vmem:[%s998 + $0x2c] sm:$0x1] %v1027
        %v1029 = vld [vmem:[%s998 + $0x30] sm:$0xf]
        %v1030 = vsel %vm1000, %v752, %v1029
        %1031 = vst [vmem:[%s998 + $0x30] sm:$0xf] %v1030
        %1032 = vst [vmem:[%s998 + $0x34] sm:$0xf] %v761
        %v1033 = vld [vmem:[%s998 + $0x38] sm:$0x1]
        %v1034 = vsel %vm469, %v762, %v1033
        %1035 = vst [vmem:[%s998 + $0x38] sm:$0x1] %v1034
        %v1036 = vld [vmem:[%s998 + $0x3c] sm:$0xf]
        %v1037 = vsel %vm1000, %v769, %v1036
        %1038 = vst [vmem:[%s998 + $0x3c] sm:$0xf] %v1037
        %1039 = vst [vmem:[%s998 + $0x40] sm:$0xf] %v778
        %v1040 = vld [vmem:[%s998 + $0x44] sm:$0x1]
        %v1041 = vsel %vm469, %v779, %v1040
        %1042 = vst [vmem:[%s998 + $0x44] sm:$0x1] %v1041
        %v1043 = vld [vmem:[%s998 + $0x48] sm:$0xf]
        %v1044 = vsel %vm1000, %v786, %v1043
        %1045 = vst [vmem:[%s998 + $0x48] sm:$0xf] %v1044
        %1046 = vst [vmem:[%s998 + $0x4c] sm:$0xf] %v795
        %v1047 = vld [vmem:[%s998 + $0x50] sm:$0x1]
        %v1048 = vsel %vm469, %v796, %v1047
        %1049 = vst [vmem:[%s998 + $0x50] sm:$0x1] %v1048
        %v1050 = vld [vmem:[%s998 + $0x54] sm:$0xf]
        %v1051 = vsel %vm1000, %v803, %v1050
        %1052 = vst [vmem:[%s998 + $0x54] sm:$0xf] %v1051
        %1053 = vst [vmem:[%s998 + $0x58] sm:$0xf] %v812
        %v1054 = vld [vmem:[%s998 + $0x5c] sm:$0x1]
        %v1055 = vsel %vm469, %v813, %v1054
        %1056 = vst [vmem:[%s998 + $0x5c] sm:$0x1] %v1055
        %v1057 = vld [vmem:[%s998 + $0x60] sm:$0xf]
        %v1058 = vsel %vm1000, %v820, %v1057
        %1059 = vst [vmem:[%s998 + $0x60] sm:$0xf] %v1058
        %1060 = vst [vmem:[%s998 + $0x64] sm:$0xf] %v829
        %v1061 = vld [vmem:[%s998 + $0x68] sm:$0x1]
        %v1062 = vsel %vm469, %v830, %v1061
        %1063 = vst [vmem:[%s998 + $0x68] sm:$0x1] %v1062
        %v1064 = vld [vmem:[%s998 + $0x6c] sm:$0xf]
        %v1065 = vsel %vm1000, %v837, %v1064
        %1066 = vst [vmem:[%s998 + $0x6c] sm:$0xf] %v1065
        %1067 = vst [vmem:[%s998 + $0x70] sm:$0xf] %v846
        %v1068 = vld [vmem:[%s998 + $0x74] sm:$0x1]
        %v1069 = vsel %vm469, %v847, %v1068
        %1070 = vst [vmem:[%s998 + $0x74] sm:$0x1] %v1069
        %v1071 = vld [vmem:[%s998 + $0x78] sm:$0xf]
        %v1072 = vsel %vm1000, %v854, %v1071
        %1073 = vst [vmem:[%s998 + $0x78] sm:$0xf] %v1072
        %1074 = vst [vmem:[%s998 + $0x7c] sm:$0xf] %v863
        %v1075 = vld [vmem:[%s998 + $0x80] sm:$0x1]
        %v1076 = vsel %vm469, %v864, %v1075
        %1077 = vst [vmem:[%s998 + $0x80] sm:$0x1] %v1076
        %v1078 = vld [vmem:[%s998 + $0x84] sm:$0xf]
        %v1079 = vsel %vm1000, %v871, %v1078
        %1080 = vst [vmem:[%s998 + $0x84] sm:$0xf] %v1079
        %1081 = vst [vmem:[%s998 + $0x88] sm:$0xf] %v880
        %v1082 = vld [vmem:[%s998 + $0x8c] sm:$0x1]
        %v1083 = vsel %vm469, %v881, %v1082
        %1084 = vst [vmem:[%s998 + $0x8c] sm:$0x1] %v1083
        %v1085 = vld [vmem:[%s998 + $0x90] sm:$0xf]
        %v1086 = vsel %vm1000, %v888, %v1085
        %1087 = vst [vmem:[%s998 + $0x90] sm:$0xf] %v1086
        %1088 = vst [vmem:[%s998 + $0x94] sm:$0xf] %v897
        %v1089 = vld [vmem:[%s998 + $0x98] sm:$0x1]
        %v1090 = vsel %vm469, %v898, %v1089
        %1091 = vst [vmem:[%s998 + $0x98] sm:$0x1] %v1090
        %v1092 = vld [vmem:[%s998 + $0x9c] sm:$0xf]
        %v1093 = vsel %vm1000, %v905, %v1092
        %1094 = vst [vmem:[%s998 + $0x9c] sm:$0xf] %v1093
        %1095 = vst [vmem:[%s998 + $0xa0] sm:$0xf] %v914
        %v1096 = vld [vmem:[%s998 + $0xa4] sm:$0x1]
        %v1097 = vsel %vm469, %v915, %v1096
        %1098 = vst [vmem:[%s998 + $0xa4] sm:$0x1] %v1097
        %v1099 = vld [vmem:[%s998 + $0xa8] sm:$0xf]
        %v1100 = vsel %vm1000, %v922, %v1099
        %1101 = vst [vmem:[%s998 + $0xa8] sm:$0xf] %v1100
        %1102 = vst [vmem:[%s998 + $0xac] sm:$0xf] %v931
        %v1103 = vld [vmem:[%s998 + $0xb0] sm:$0x1]
        %v1104 = vsel %vm469, %v932, %v1103
        %1105 = vst [vmem:[%s998 + $0xb0] sm:$0x1] %v1104
        %v1106 = vld [vmem:[%s998 + $0xb4] sm:$0xf]
        %v1107 = vsel %vm1000, %v939, %v1106
        %1108 = vst [vmem:[%s998 + $0xb4] sm:$0xf] %v1107
        %1109 = vst [vmem:[%s998 + $0xb8] sm:$0xf] %v948
        %v1110 = vld [vmem:[%s998 + $0xbc] sm:$0x1]
        %v1111 = vsel %vm469, %v949, %v1110
        %1112 = vst [vmem:[%s998 + $0xbc] sm:$0x1] %v1111
        %v1113 = vld [vmem:[#allocation2] sm:$0xf]
        %v1114 = vld [vmem:[#allocation2 + $0x4] sm:$0xf]
        %v1115 = vld [vmem:[#allocation2 + $0xc] sm:$0xf]
        %v1116 = vld [vmem:[#allocation2 + $0x10] sm:$0xf]
        %v1117 = vld [vmem:[#allocation2 + $0x18] sm:$0xf]
        %v1118 = vld [vmem:[#allocation2 + $0x1c] sm:$0xf]
        %v1119 = vld [vmem:[#allocation2 + $0x24] sm:$0xf]
        %v1120 = vld [vmem:[#allocation2 + $0x28] sm:$0xf]
        %v1121 = vld [vmem:[#allocation2 + $0x30] sm:$0xf]
        %v1122 = vld [vmem:[#allocation2 + $0x34] sm:$0xf]
        %v1123 = vld [vmem:[#allocation2 + $0x3c] sm:$0xf]
        %v1124 = vld [vmem:[#allocation2 + $0x40] sm:$0xf]
        %v1125 = vld [vmem:[#allocation2 + $0x48] sm:$0xf]
        %v1126 = vld [vmem:[#allocation2 + $0x4c] sm:$0xf]
        %v1127 = vld [vmem:[#allocation2 + $0x54] sm:$0xf]
        %v1128 = vld [vmem:[#allocation2 + $0x58] sm:$0xf]
        %v1129 = vld [vmem:[#allocation2 + $0x60] sm:$0xf]
        %v1130 = vld [vmem:[#allocation2 + $0x64] sm:$0xf]
        %v1131 = vld [vmem:[#allocation2 + $0x6c] sm:$0xf]
        %v1132 = vld [vmem:[#allocation2 + $0x70] sm:$0xf]
        %v1133 = vld [vmem:[#allocation2 + $0x78] sm:$0xf]
        %v1134 = vld [vmem:[#allocation2 + $0x7c] sm:$0xf]
        %v1135 = vld [vmem:[#allocation2 + $0x84] sm:$0xf]
        %v1136 = vld [vmem:[#allocation2 + $0x88] sm:$0xf]
        %v1137 = vld [vmem:[#allocation2 + $0x90] sm:$0xf]
        %v1138 = vld [vmem:[#allocation2 + $0x94] sm:$0xf]
        %v1139 = vld [vmem:[#allocation2 + $0x9c] sm:$0xf]
        %v1140 = vld [vmem:[#allocation2 + $0xa0] sm:$0xf]
        %v1141 = vld [vmem:[#allocation2 + $0xa8] sm:$0xf]
        %v1142 = vld [vmem:[#allocation2 + $0xac] sm:$0xf]
        %v1143 = vld [vmem:[#allocation2 + $0xb4] sm:$0xf]
        %v1144 = vld [vmem:[#allocation2 + $0xb8] sm:$0xf]
        %v1177 = vunpack.c.l.b16 %v1113
        %v1178 = vunpack.c.l.b16 %v1114
        %v1179 = vunpack.c.l.b16 %v1115
        %v1180 = vunpack.c.l.b16 %v1116
        %v1181 = vunpack.c.l.b16 %v1117
        %v1182 = vunpack.c.l.b16 %v1118
        %v1183 = vunpack.c.l.b16 %v1119
        %v1184 = vunpack.c.l.b16 %v1120
        %v1185 = vunpack.c.l.b16 %v1121
        %v1186 = vunpack.c.l.b16 %v1122
        %v1187 = vunpack.c.l.b16 %v1123
        %v1188 = vunpack.c.l.b16 %v1124
        %v1189 = vunpack.c.l.b16 %v1125
        %v1190 = vunpack.c.l.b16 %v1126
        %v1191 = vunpack.c.l.b16 %v1127
        %v1192 = vunpack.c.l.b16 %v1128
        %v1193 = vunpack.c.l.b16 %v1129
        %v1194 = vunpack.c.l.b16 %v1130
        %v1195 = vunpack.c.l.b16 %v1131
        %v1196 = vunpack.c.l.b16 %v1132
        %v1197 = vunpack.c.l.b16 %v1133
        %v1198 = vunpack.c.l.b16 %v1134
        %v1199 = vunpack.c.l.b16 %v1135
        %v1200 = vunpack.c.l.b16 %v1136
        %v1201 = vunpack.c.l.b16 %v1137
        %v1202 = vunpack.c.l.b16 %v1138
        %v1203 = vunpack.c.l.b16 %v1139
        %v1204 = vunpack.c.l.b16 %v1140
        %v1205 = vunpack.c.l.b16 %v1141
        %v1206 = vunpack.c.l.b16 %v1142
        %v1207 = vunpack.c.l.b16 %v1143
        %v1208 = vunpack.c.l.b16 %v1144
        %v1209 = vpack.c.b16 %v1178, %v1177
        %v1210 = vpack.c.b16 %v1180, %v1179
        %v1211 = vpack.c.b16 %v1182, %v1181
        %v1212 = vpack.c.b16 %v1184, %v1183
        %v1213 = vpack.c.b16 %v1186, %v1185
        %v1214 = vpack.c.b16 %v1188, %v1187
        %v1215 = vpack.c.b16 %v1190, %v1189
        %v1216 = vpack.c.b16 %v1192, %v1191
        %v1217 = vpack.c.b16 %v1194, %v1193
        %v1218 = vpack.c.b16 %v1196, %v1195
        %v1219 = vpack.c.b16 %v1198, %v1197
        %v1220 = vpack.c.b16 %v1200, %v1199
        %v1221 = vpack.c.b16 %v1202, %v1201
        %v1222 = vpack.c.b16 %v1204, %v1203
        %v1223 = vpack.c.b16 %v1206, %v1205
        %v1224 = vpack.c.b16 %v1208, %v1207
        %1241 = vst [vmem:[#allocation3] sm:$0xff] %v1209
        %1242 = vst [vmem:[#allocation3 + $0x18] sm:$0xff] %v1210
        %1243 = vst [vmem:[#allocation3 + $0x30] sm:$0xff] %v1211
        %1244 = vst [vmem:[#allocation3 + $0x48] sm:$0xff] %v1212
        %1245 = vst [vmem:[#allocation3 + $0x60] sm:$0xff] %v1213
        %1246 = vst [vmem:[#allocation3 + $0x78] sm:$0xff] %v1214
        %1247 = vst [vmem:[#allocation3 + $0x90] sm:$0xff] %v1215
        %1248 = vst [vmem:[#allocation3 + $0xa8] sm:$0xff] %v1216
        %1249 = vst [vmem:[#allocation3 + $0xc0] sm:$0xff] %v1217
        %1250 = vst [vmem:[#allocation3 + $0xd8] sm:$0xff] %v1218
        %1251 = vst [vmem:[#allocation3 + $0xf0] sm:$0xff] %v1219
        %1252 = vst [vmem:[#allocation3 + $0x108] sm:$0xff] %v1220
        %1253 = vst [vmem:[#allocation3 + $0x120] sm:$0xff] %v1221
        %1254 = vst [vmem:[#allocation3 + $0x138] sm:$0xff] %v1222
        %1255 = vst [vmem:[#allocation3 + $0x150] sm:$0xff] %v1223
        %1256 = vst [vmem:[#allocation3 + $0x168] sm:$0xff] %v1224
        %v1257 = vld [vmem:[#allocation2] sm:$0xf]
        %v1258 = vld [vmem:[#allocation2 + $0x4] sm:$0xf]
        %v1259 = vld [vmem:[#allocation2 + $0x8] sm:$0x1]
        %v1260 = vld [vmem:[#allocation2 + $0xc] sm:$0xf]
        %v1261 = vld [vmem:[#allocation2 + $0x10] sm:$0xf]
        %v1262 = vld [vmem:[#allocation2 + $0x14] sm:$0x1]
        %v1263 = vld [vmem:[#allocation2 + $0x18] sm:$0xf]
        %v1264 = vld [vmem:[#allocation2 + $0x1c] sm:$0xf]
        %v1265 = vld [vmem:[#allocation2 + $0x20] sm:$0x1]
        %v1266 = vld [vmem:[#allocation2 + $0x24] sm:$0xf]
        %v1267 = vld [vmem:[#allocation2 + $0x28] sm:$0xf]
        %v1268 = vld [vmem:[#allocation2 + $0x2c] sm:$0x1]
        %v1269 = vld [vmem:[#allocation2 + $0x30] sm:$0xf]
        %v1270 = vld [vmem:[#allocation2 + $0x34] sm:$0xf]
        %v1271 = vld [vmem:[#allocation2 + $0x38] sm:$0x1]
        %v1272 = vld [vmem:[#allocation2 + $0x3c] sm:$0xf]
        %v1273 = vld [vmem:[#allocation2 + $0x40] sm:$0xf]
        %v1274 = vld [vmem:[#allocation2 + $0x44] sm:$0x1]
        %v1275 = vld [vmem:[#allocation2 + $0x48] sm:$0xf]
        %v1276 = vld [vmem:[#allocation2 + $0x4c] sm:$0xf]
        %v1277 = vld [vmem:[#allocation2 + $0x50] sm:$0x1]
        %v1278 = vld [vmem:[#allocation2 + $0x54] sm:$0xf]
        %v1279 = vld [vmem:[#allocation2 + $0x58] sm:$0xf]
        %v1280 = vld [vmem:[#allocation2 + $0x5c] sm:$0x1]
        %v1281 = vld [vmem:[#allocation2 + $0x60] sm:$0xf]
        %v1282 = vld [vmem:[#allocation2 + $0x64] sm:$0xf]
        %v1283 = vld [vmem:[#allocation2 + $0x68] sm:$0x1]
        %v1284 = vld [vmem:[#allocation2 + $0x6c] sm:$0xf]
        %v1285 = vld [vmem:[#allocation2 + $0x70] sm:$0xf]
        %v1286 = vld [vmem:[#allocation2 + $0x74] sm:$0x1]
        %v1287 = vld [vmem:[#allocation2 + $0x78] sm:$0xf]
        %v1288 = vld [vmem:[#allocation2 + $0x7c] sm:$0xf]
        %v1289 = vld [vmem:[#allocation2 + $0x80] sm:$0x1]
        %v1290 = vld [vmem:[#allocation2 + $0x84] sm:$0xf]
        %v1291 = vld [vmem:[#allocation2 + $0x88] sm:$0xf]
        %v1292 = vld [vmem:[#allocation2 + $0x8c] sm:$0x1]
        %v1293 = vld [vmem:[#allocation2 + $0x90] sm:$0xf]
        %v1294 = vld [vmem:[#allocation2 + $0x94] sm:$0xf]
        %v1295 = vld [vmem:[#allocation2 + $0x98] sm:$0x1]
        %v1296 = vld [vmem:[#allocation2 + $0x9c] sm:$0xf]
        %v1297 = vld [vmem:[#allocation2 + $0xa0] sm:$0xf]
        %v1298 = vld [vmem:[#allocation2 + $0xa4] sm:$0x1]
        %v1299 = vld [vmem:[#allocation2 + $0xa8] sm:$0xf]
        %v1300 = vld [vmem:[#allocation2 + $0xac] sm:$0xf]
        %v1301 = vld [vmem:[#allocation2 + $0xb0] sm:$0x1]
        %v1302 = vld [vmem:[#allocation2 + $0xb4] sm:$0xf]
        %v1303 = vld [vmem:[#allocation2 + $0xb8] sm:$0xf]
        %v1304 = vld [vmem:[#allocation2 + $0xbc] sm:$0x1]
        %vm1305 = vsmask.f32 3328
        %vm1306 = vsmask.f32 7440
        %vm1307 = vmor %vm1305, %vm1306
        %v1309 = vshrl.u32 %v1257, 16
        %v1311 = vrot.slane %v1309, 4
        %v1312 = vshll.u32 %v1257, 16
        %v1314 = vrot.slane %v1312, 5
        %v1315 = vor.u32 %v1311, %v1314
        %v1316 = vrot.slane %v1315, 4
        %v1318 = vshll.u32 %v1258, 16
        %v1320 = vrot.slane %v1318, 5
        %v1321 = vsel %vm1307, %v1316, %v1320
        %v1322 = vshrl.u32 %v1258, 16
        %v1324 = vrot.slane %v1322, 4
        %v1325 = vor.u32 %v1324, %v1320
        %v1326 = vrot.slane %v1325, 4
        %v1328 = vshll.u32 %v1259, 16
        %v1330 = vrot.slane %v1328, 5
        %v1331 = vsel %vm1307, %v1326, %v1330
        %v1333 = vshrl.u32 %v1260, 16
        %v1335 = vrot.slane %v1333, 4
        %v1336 = vshll.u32 %v1260, 16
        %v1338 = vrot.slane %v1336, 5
        %v1339 = vor.u32 %v1335, %v1338
        %v1340 = vrot.slane %v1339, 4
        %v1342 = vshll.u32 %v1261, 16
        %v1344 = vrot.slane %v1342, 5
        %v1345 = vsel %vm1307, %v1340, %v1344
        %v1346 = vshrl.u32 %v1261, 16
        %v1348 = vrot.slane %v1346, 4
        %v1349 = vor.u32 %v1348, %v1344
        %v1350 = vrot.slane %v1349, 4
        %v1352 = vshll.u32 %v1262, 16
        %v1354 = vrot.slane %v1352, 5
        %v1355 = vsel %vm1307, %v1350, %v1354
        %v1357 = vshrl.u32 %v1263, 16
        %v1359 = vrot.slane %v1357, 4
        %v1360 = vshll.u32 %v1263, 16
        %v1362 = vrot.slane %v1360, 5
        %v1363 = vor.u32 %v1359, %v1362
        %v1364 = vrot.slane %v1363, 4
        %v1366 = vshll.u32 %v1264, 16
        %v1368 = vrot.slane %v1366, 5
        %v1369 = vsel %vm1307, %v1364, %v1368
        %v1370 = vshrl.u32 %v1264, 16
        %v1372 = vrot.slane %v1370, 4
        %v1373 = vor.u32 %v1372, %v1368
        %v1374 = vrot.slane %v1373, 4
        %v1376 = vshll.u32 %v1265, 16
        %v1378 = vrot.slane %v1376, 5
        %v1379 = vsel %vm1307, %v1374, %v1378
        %v1381 = vshrl.u32 %v1266, 16
        %v1383 = vrot.slane %v1381, 4
        %v1384 = vshll.u32 %v1266, 16
        %v1386 = vrot.slane %v1384, 5
        %v1387 = vor.u32 %v1383, %v1386
        %v1388 = vrot.slane %v1387, 4
        %v1390 = vshll.u32 %v1267, 16
        %v1392 = vrot.slane %v1390, 5
        %v1393 = vsel %vm1307, %v1388, %v1392
        %v1394 = vshrl.u32 %v1267, 16
        %v1396 = vrot.slane %v1394, 4
        %v1397 = vor.u32 %v1396, %v1392
        %v1398 = vrot.slane %v1397, 4
        %v1400 = vshll.u32 %v1268, 16
        %v1402 = vrot.slane %v1400, 5
        %v1403 = vsel %vm1307, %v1398, %v1402
        %v1405 = vshrl.u32 %v1269, 16
        %v1407 = vrot.slane %v1405, 4
        %v1408 = vshll.u32 %v1269, 16
        %v1410 = vrot.slane %v1408, 5
        %v1411 = vor.u32 %v1407, %v1410
        %v1412 = vrot.slane %v1411, 4
        %v1414 = vshll.u32 %v1270, 16
        %v1416 = vrot.slane %v1414, 5
        %v1417 = vsel %vm1307, %v1412, %v1416
        %v1418 = vshrl.u32 %v1270, 16
        %v1420 = vrot.slane %v1418, 4
        %v1421 = vor.u32 %v1420, %v1416
        %v1422 = vrot.slane %v1421, 4
        %v1424 = vshll.u32 %v1271, 16
        %v1426 = vrot.slane %v1424, 5
        %v1427 = vsel %vm1307, %v1422, %v1426
        %v1429 = vshrl.u32 %v1272, 16
        %v1431 = vrot.slane %v1429, 4
        %v1432 = vshll.u32 %v1272, 16
        %v1434 = vrot.slane %v1432, 5
        %v1435 = vor.u32 %v1431, %v1434
        %v1436 = vrot.slane %v1435, 4
        %v1438 = vshll.u32 %v1273, 16
        %v1440 = vrot.slane %v1438, 5
        %v1441 = vsel %vm1307, %v1436, %v1440
        %v1442 = vshrl.u32 %v1273, 16
        %v1444 = vrot.slane %v1442, 4
        %v1445 = vor.u32 %v1444, %v1440
        %v1446 = vrot.slane %v1445, 4
        %v1448 = vshll.u32 %v1274, 16
        %v1450 = vrot.slane %v1448, 5
        %v1451 = vsel %vm1307, %v1446, %v1450
        %v1453 = vshrl.u32 %v1275, 16
        %v1455 = vrot.slane %v1453, 4
        %v1456 = vshll.u32 %v1275, 16
        %v1458 = vrot.slane %v1456, 5
        %v1459 = vor.u32 %v1455, %v1458
        %v1460 = vrot.slane %v1459, 4
        %v1462 = vshll.u32 %v1276, 16
        %v1464 = vrot.slane %v1462, 5
        %v1465 = vsel %vm1307, %v1460, %v1464
        %v1466 = vshrl.u32 %v1276, 16
        %v1468 = vrot.slane %v1466, 4
        %v1469 = vor.u32 %v1468, %v1464
        %v1470 = vrot.slane %v1469, 4
        %v1472 = vshll.u32 %v1277, 16
        %v1474 = vrot.slane %v1472, 5
        %v1475 = vsel %vm1307, %v1470, %v1474
        %v1477 = vshrl.u32 %v1278, 16
        %v1479 = vrot.slane %v1477, 4
        %v1480 = vshll.u32 %v1278, 16
        %v1482 = vrot.slane %v1480, 5
        %v1483 = vor.u32 %v1479, %v1482
        %v1484 = vrot.slane %v1483, 4
        %v1486 = vshll.u32 %v1279, 16
        %v1488 = vrot.slane %v1486, 5
        %v1489 = vsel %vm1307, %v1484, %v1488
        %v1490 = vshrl.u32 %v1279, 16
        %v1492 = vrot.slane %v1490, 4
        %v1493 = vor.u32 %v1492, %v1488
        %v1494 = vrot.slane %v1493, 4
        %v1496 = vshll.u32 %v1280, 16
        %v1498 = vrot.slane %v1496, 5
        %v1499 = vsel %vm1307, %v1494, %v1498
        %v1501 = vshrl.u32 %v1281, 16
        %v1503 = vrot.slane %v1501, 4
        %v1504 = vshll.u32 %v1281, 16
        %v1506 = vrot.slane %v1504, 5
        %v1507 = vor.u32 %v1503, %v1506
        %v1508 = vrot.slane %v1507, 4
        %v1510 = vshll.u32 %v1282, 16
        %v1512 = vrot.slane %v1510, 5
        %v1513 = vsel %vm1307, %v1508, %v1512
        %v1514 = vshrl.u32 %v1282, 16
        %v1516 = vrot.slane %v1514, 4
        %v1517 = vor.u32 %v1516, %v1512
        %v1518 = vrot.slane %v1517, 4
        %v1520 = vshll.u32 %v1283, 16
        %v1522 = vrot.slane %v1520, 5
        %v1523 = vsel %vm1307, %v1518, %v1522
        %v1525 = vshrl.u32 %v1284, 16
        %v1527 = vrot.slane %v1525, 4
        %v1528 = vshll.u32 %v1284, 16
        %v1530 = vrot.slane %v1528, 5
        %v1531 = vor.u32 %v1527, %v1530
        %v1532 = vrot.slane %v1531, 4
        %v1534 = vshll.u32 %v1285, 16
        %v1536 = vrot.slane %v1534, 5
        %v1537 = vsel %vm1307, %v1532, %v1536
        %v1538 = vshrl.u32 %v1285, 16
        %v1540 = vrot.slane %v1538, 4
        %v1541 = vor.u32 %v1540, %v1536
        %v1542 = vrot.slane %v1541, 4
        %v1544 = vshll.u32 %v1286, 16
        %v1546 = vrot.slane %v1544, 5
        %v1547 = vsel %vm1307, %v1542, %v1546
        %v1549 = vshrl.u32 %v1287, 16
        %v1551 = vrot.slane %v1549, 4
        %v1552 = vshll.u32 %v1287, 16
        %v1554 = vrot.slane %v1552, 5
        %v1555 = vor.u32 %v1551, %v1554
        %v1556 = vrot.slane %v1555, 4
        %v1558 = vshll.u32 %v1288, 16
        %v1560 = vrot.slane %v1558, 5
        %v1561 = vsel %vm1307, %v1556, %v1560
        %v1562 = vshrl.u32 %v1288, 16
        %v1564 = vrot.slane %v1562, 4
        %v1565 = vor.u32 %v1564, %v1560
        %v1566 = vrot.slane %v1565, 4
        %v1568 = vshll.u32 %v1289, 16
        %v1570 = vrot.slane %v1568, 5
        %v1571 = vsel %vm1307, %v1566, %v1570
        %v1573 = vshrl.u32 %v1290, 16
        %v1575 = vrot.slane %v1573, 4
        %v1576 = vshll.u32 %v1290, 16
        %v1578 = vrot.slane %v1576, 5
        %v1579 = vor.u32 %v1575, %v1578
        %v1580 = vrot.slane %v1579, 4
        %v1582 = vshll.u32 %v1291, 16
        %v1584 = vrot.slane %v1582, 5
        %v1585 = vsel %vm1307, %v1580, %v1584
        %v1586 = vshrl.u32 %v1291, 16
        %v1588 = vrot.slane %v1586, 4
        %v1589 = vor.u32 %v1588, %v1584
        %v1590 = vrot.slane %v1589, 4
        %v1592 = vshll.u32 %v1292, 16
        %v1594 = vrot.slane %v1592, 5
        %v1595 = vsel %vm1307, %v1590, %v1594
        %v1597 = vshrl.u32 %v1293, 16
        %v1599 = vrot.slane %v1597, 4
        %v1600 = vshll.u32 %v1293, 16
        %v1602 = vrot.slane %v1600, 5
        %v1603 = vor.u32 %v1599, %v1602
        %v1604 = vrot.slane %v1603, 4
        %v1606 = vshll.u32 %v1294, 16
        %v1608 = vrot.slane %v1606, 5
        %v1609 = vsel %vm1307, %v1604, %v1608
        %v1610 = vshrl.u32 %v1294, 16
        %v1612 = vrot.slane %v1610, 4
        %v1613 = vor.u32 %v1612, %v1608
        %v1614 = vrot.slane %v1613, 4
        %v1616 = vshll.u32 %v1295, 16
        %v1618 = vrot.slane %v1616, 5
        %v1619 = vsel %vm1307, %v1614, %v1618
        %v1621 = vshrl.u32 %v1296, 16
        %v1623 = vrot.slane %v1621, 4
        %v1624 = vshll.u32 %v1296, 16
        %v1626 = vrot.slane %v1624, 5
        %v1627 = vor.u32 %v1623, %v1626
        %v1628 = vrot.slane %v1627, 4
        %v1630 = vshll.u32 %v1297, 16
        %v1632 = vrot.slane %v1630, 5
        %v1633 = vsel %vm1307, %v1628, %v1632
        %v1634 = vshrl.u32 %v1297, 16
        %v1636 = vrot.slane %v1634, 4
        %v1637 = vor.u32 %v1636, %v1632
        %v1638 = vrot.slane %v1637, 4
        %v1640 = vshll.u32 %v1298, 16
        %v1642 = vrot.slane %v1640, 5
        %v1643 = vsel %vm1307, %v1638, %v1642
        %v1645 = vshrl.u32 %v1299, 16
        %v1647 = vrot.slane %v1645, 4
        %v1648 = vshll.u32 %v1299, 16
        %v1650 = vrot.slane %v1648, 5
        %v1651 = vor.u32 %v1647, %v1650
        %v1652 = vrot.slane %v1651, 4
        %v1654 = vshll.u32 %v1300, 16
        %v1656 = vrot.slane %v1654, 5
        %v1657 = vsel %vm1307, %v1652, %v1656
        %v1658 = vshrl.u32 %v1300, 16
        %v1660 = vrot.slane %v1658, 4
        %v1661 = vor.u32 %v1660, %v1656
        %v1662 = vrot.slane %v1661, 4
        %v1664 = vshll.u32 %v1301, 16
        %v1666 = vrot.slane %v1664, 5
        %v1667 = vsel %vm1307, %v1662, %v1666
        %v1669 = vshrl.u32 %v1302, 16
        %v1671 = vrot.slane %v1669, 4
        %v1672 = vshll.u32 %v1302, 16
        %v1674 = vrot.slane %v1672, 5
        %v1675 = vor.u32 %v1671, %v1674
        %v1676 = vrot.slane %v1675, 4
        %v1678 = vshll.u32 %v1303, 16
        %v1680 = vrot.slane %v1678, 5
        %v1681 = vsel %vm1307, %v1676, %v1680
        %v1682 = vshrl.u32 %v1303, 16
        %v1684 = vrot.slane %v1682, 4
        %v1685 = vor.u32 %v1684, %v1680
        %v1686 = vrot.slane %v1685, 4
        %v1688 = vshll.u32 %v1304, 16
        %v1690 = vrot.slane %v1688, 5
        %v1691 = vsel %vm1307, %v1686, %v1690
        %v1692 = vunpack.c.l.b16 %v1321
        %v1693 = vunpack.c.l.b16 %v1331
        %v1694 = vunpack.c.l.b16 %v1345
        %v1695 = vunpack.c.l.b16 %v1355
        %v1696 = vunpack.c.l.b16 %v1369
        %v1697 = vunpack.c.l.b16 %v1379
        %v1698 = vunpack.c.l.b16 %v1393
        %v1699 = vunpack.c.l.b16 %v1403
        %v1700 = vunpack.c.l.b16 %v1417
        %v1701 = vunpack.c.l.b16 %v1427
        %v1702 = vunpack.c.l.b16 %v1441
        %v1703 = vunpack.c.l.b16 %v1451
        %v1704 = vunpack.c.l.b16 %v1465
        %v1705 = vunpack.c.l.b16 %v1475
        %v1706 = vunpack.c.l.b16 %v1489
        %v1707 = vunpack.c.l.b16 %v1499
        %v1708 = vunpack.c.l.b16 %v1513
        %v1709 = vunpack.c.l.b16 %v1523
        %v1710 = vunpack.c.l.b16 %v1537
        %v1711 = vunpack.c.l.b16 %v1547
        %v1712 = vunpack.c.l.b16 %v1561
        %v1713 = vunpack.c.l.b16 %v1571
        %v1714 = vunpack.c.l.b16 %v1585
        %v1715 = vunpack.c.l.b16 %v1595
        %v1716 = vunpack.c.l.b16 %v1609
        %v1717 = vunpack.c.l.b16 %v1619
        %v1718 = vunpack.c.l.b16 %v1633
        %v1719 = vunpack.c.l.b16 %v1643
        %v1720 = vunpack.c.l.b16 %v1657
        %v1721 = vunpack.c.l.b16 %v1667
        %v1722 = vunpack.c.l.b16 %v1681
        %v1723 = vunpack.c.l.b16 %v1691
        %v1724 = vpack.c.b16 %v1693, %v1692
        %v1725 = vpack.c.b16 %v1695, %v1694
        %v1726 = vpack.c.b16 %v1697, %v1696
        %v1727 = vpack.c.b16 %v1699, %v1698
        %v1728 = vpack.c.b16 %v1701, %v1700
        %v1729 = vpack.c.b16 %v1703, %v1702
        %v1730 = vpack.c.b16 %v1705, %v1704
        %v1731 = vpack.c.b16 %v1707, %v1706
        %v1732 = vpack.c.b16 %v1709, %v1708
        %v1733 = vpack.c.b16 %v1711, %v1710
        %v1734 = vpack.c.b16 %v1713, %v1712
        %v1735 = vpack.c.b16 %v1715, %v1714
        %v1736 = vpack.c.b16 %v1717, %v1716
        %v1737 = vpack.c.b16 %v1719, %v1718
        %v1738 = vpack.c.b16 %v1721, %v1720
        %v1739 = vpack.c.b16 %v1723, %v1722
        %1756 = vst [vmem:[#allocation3 + $0x8] sm:$0xff] %v1724
        %1757 = vst [vmem:[#allocation3 + $0x20] sm:$0xff] %v1725
        %1758 = vst [vmem:[#allocation3 + $0x38] sm:$0xff] %v1726
        %1759 = vst [vmem:[#allocation3 + $0x50] sm:$0xff] %v1727
        %1760 = vst [vmem:[#allocation3 + $0x68] sm:$0xff] %v1728
        %1761 = vst [vmem:[#allocation3 + $0x80] sm:$0xff] %v1729
        %1762 = vst [vmem:[#allocation3 + $0x98] sm:$0xff] %v1730
        %1763 = vst [vmem:[#allocation3 + $0xb0] sm:$0xff] %v1731
        %1764 = vst [vmem:[#allocation3 + $0xc8] sm:$0xff] %v1732
        %1765 = vst [vmem:[#allocation3 + $0xe0] sm:$0xff] %v1733
        %1766 = vst [vmem:[#allocation3 + $0xf8] sm:$0xff] %v1734
        %1767 = vst [vmem:[#allocation3 + $0x110] sm:$0xff] %v1735
        %1768 = vst [vmem:[#allocation3 + $0x128] sm:$0xff] %v1736
        %1769 = vst [vmem:[#allocation3 + $0x140] sm:$0xff] %v1737
        %1770 = vst [vmem:[#allocation3 + $0x158] sm:$0xff] %v1738
        %1771 = vst [vmem:[#allocation3 + $0x170] sm:$0xff] %v1739
        %v1772 = vld [vmem:[#allocation2] sm:$0xe]
        %v1773 = vld [vmem:[#allocation2 + $0x4] sm:$0xf]
        %v1774 = vld [vmem:[#allocation2 + $0x8] sm:$0x1]
        %v1775 = vld [vmem:[#allocation2 + $0xc] sm:$0xe]
        %v1776 = vld [vmem:[#allocation2 + $0x10] sm:$0xf]
        %v1777 = vld [vmem:[#allocation2 + $0x14] sm:$0x1]
        %v1778 = vld [vmem:[#allocation2 + $0x18] sm:$0xe]
        %v1779 = vld [vmem:[#allocation2 + $0x1c] sm:$0xf]
        %v1780 = vld [vmem:[#allocation2 + $0x20] sm:$0x1]
        %v1781 = vld [vmem:[#allocation2 + $0x24] sm:$0xe]
        %v1782 = vld [vmem:[#allocation2 + $0x28] sm:$0xf]
        %v1783 = vld [vmem:[#allocation2 + $0x2c] sm:$0x1]
        %v1784 = vld [vmem:[#allocation2 + $0x30] sm:$0xe]
        %v1785 = vld [vmem:[#allocation2 + $0x34] sm:$0xf]
        %v1786 = vld [vmem:[#allocation2 + $0x38] sm:$0x1]
        %v1787 = vld [vmem:[#allocation2 + $0x3c] sm:$0xe]
        %v1788 = vld [vmem:[#allocation2 + $0x40] sm:$0xf]
        %v1789 = vld [vmem:[#allocation2 + $0x44] sm:$0x1]
        %v1790 = vld [vmem:[#allocation2 + $0x48] sm:$0xe]
        %v1791 = vld [vmem:[#allocation2 + $0x4c] sm:$0xf]
        %v1792 = vld [vmem:[#allocation2 + $0x50] sm:$0x1]
        %v1793 = vld [vmem:[#allocation2 + $0x54] sm:$0xe]
        %v1794 = vld [vmem:[#allocation2 + $0x58] sm:$0xf]
        %v1795 = vld [vmem:[#allocation2 + $0x5c] sm:$0x1]
        %v1796 = vld [vmem:[#allocation2 + $0x60] sm:$0xe]
        %v1797 = vld [vmem:[#allocation2 + $0x64] sm:$0xf]
        %v1798 = vld [vmem:[#allocation2 + $0x68] sm:$0x1]
        %v1799 = vld [vmem:[#allocation2 + $0x6c] sm:$0xe]
        %v1800 = vld [vmem:[#allocation2 + $0x70] sm:$0xf]
        %v1801 = vld [vmem:[#allocation2 + $0x74] sm:$0x1]
        %v1802 = vld [vmem:[#allocation2 + $0x78] sm:$0xe]
        %v1803 = vld [vmem:[#allocation2 + $0x7c] sm:$0xf]
        %v1804 = vld [vmem:[#allocation2 + $0x80] sm:$0x1]
        %v1805 = vld [vmem:[#allocation2 + $0x84] sm:$0xe]
        %v1806 = vld [vmem:[#allocation2 + $0x88] sm:$0xf]
        %v1807 = vld [vmem:[#allocation2 + $0x8c] sm:$0x1]
        %v1808 = vld [vmem:[#allocation2 + $0x90] sm:$0xe]
        %v1809 = vld [vmem:[#allocation2 + $0x94] sm:$0xf]
        %v1810 = vld [vmem:[#allocation2 + $0x98] sm:$0x1]
        %v1811 = vld [vmem:[#allocation2 + $0x9c] sm:$0xe]
        %v1812 = vld [vmem:[#allocation2 + $0xa0] sm:$0xf]
        %v1813 = vld [vmem:[#allocation2 + $0xa4] sm:$0x1]
        %v1814 = vld [vmem:[#allocation2 + $0xa8] sm:$0xe]
        %v1815 = vld [vmem:[#allocation2 + $0xac] sm:$0xf]
        %v1816 = vld [vmem:[#allocation2 + $0xb0] sm:$0x1]
        %v1817 = vld [vmem:[#allocation2 + $0xb4] sm:$0xe]
        %v1818 = vld [vmem:[#allocation2 + $0xb8] sm:$0xf]
        %v1819 = vld [vmem:[#allocation2 + $0xbc] sm:$0x1]
        %vm1868 = vcmask 1042432
        %vm1869 = vcmask 1046532
        %vm1870 = vmor %vm1868, %vm1869
        %v1871 = vrot.slane %v1772, 5
        %v1872 = vrot.slane %v1871, 4
        %v1873 = vrot.slane %v1773, 5
        %v1874 = vsel %vm1870, %v1872, %v1873
        %v1875 = vrot.slane %v1873, 4
        %v1876 = vrot.slane %v1774, 5
        %v1877 = vsel %vm1870, %v1875, %v1876
        %v1878 = vrot.slane %v1775, 5
        %v1879 = vrot.slane %v1878, 4
        %v1880 = vrot.slane %v1776, 5
        %v1881 = vsel %vm1870, %v1879, %v1880
        %v1882 = vrot.slane %v1880, 4
        %v1883 = vrot.slane %v1777, 5
        %v1884 = vsel %vm1870, %v1882, %v1883
        %v1885 = vrot.slane %v1778, 5
        %v1886 = vrot.slane %v1885, 4
        %v1887 = vrot.slane %v1779, 5
        %v1888 = vsel %vm1870, %v1886, %v1887
        %v1889 = vrot.slane %v1887, 4
        %v1890 = vrot.slane %v1780, 5
        %v1891 = vsel %vm1870, %v1889, %v1890
        %v1892 = vrot.slane %v1781, 5
        %v1893 = vrot.slane %v1892, 4
        %v1894 = vrot.slane %v1782, 5
        %v1895 = vsel %vm1870, %v1893, %v1894
        %v1896 = vrot.slane %v1894, 4
        %v1897 = vrot.slane %v1783, 5
        %v1898 = vsel %vm1870, %v1896, %v1897
        %v1899 = vrot.slane %v1784, 5
        %v1900 = vrot.slane %v1899, 4
        %v1901 = vrot.slane %v1785, 5
        %v1902 = vsel %vm1870, %v1900, %v1901
        %v1903 = vrot.slane %v1901, 4
        %v1904 = vrot.slane %v1786, 5
        %v1905 = vsel %vm1870, %v1903, %v1904
        %v1906 = vrot.slane %v1787, 5
        %v1907 = vrot.slane %v1906, 4
        %v1908 = vrot.slane %v1788, 5
        %v1909 = vsel %vm1870, %v1907, %v1908
        %v1910 = vrot.slane %v1908, 4
        %v1911 = vrot.slane %v1789, 5
        %v1912 = vsel %vm1870, %v1910, %v1911
        %v1913 = vrot.slane %v1790, 5
        %v1914 = vrot.slane %v1913, 4
        %v1915 = vrot.slane %v1791, 5
        %v1916 = vsel %vm1870, %v1914, %v1915
        %v1917 = vrot.slane %v1915, 4
        %v1918 = vrot.slane %v1792, 5
        %v1919 = vsel %vm1870, %v1917, %v1918
        %v1920 = vrot.slane %v1793, 5
        %v1921 = vrot.slane %v1920, 4
        %v1922 = vrot.slane %v1794, 5
        %v1923 = vsel %vm1870, %v1921, %v1922
        %v1924 = vrot.slane %v1922, 4
        %v1925 = vrot.slane %v1795, 5
        %v1926 = vsel %vm1870, %v1924, %v1925
        %v1927 = vrot.slane %v1796, 5
        %v1928 = vrot.slane %v1927, 4
        %v1929 = vrot.slane %v1797, 5
        %v1930 = vsel %vm1870, %v1928, %v1929
        %v1931 = vrot.slane %v1929, 4
        %v1932 = vrot.slane %v1798, 5
        %v1933 = vsel %vm1870, %v1931, %v1932
        %v1934 = vrot.slane %v1799, 5
        %v1935 = vrot.slane %v1934, 4
        %v1936 = vrot.slane %v1800, 5
        %v1937 = vsel %vm1870, %v1935, %v1936
        %v1938 = vrot.slane %v1936, 4
        %v1939 = vrot.slane %v1801, 5
        %v1940 = vsel %vm1870, %v1938, %v1939
        %v1941 = vrot.slane %v1802, 5
        %v1942 = vrot.slane %v1941, 4
        %v1943 = vrot.slane %v1803, 5
        %v1944 = vsel %vm1870, %v1942, %v1943
        %v1945 = vrot.slane %v1943, 4
        %v1946 = vrot.slane %v1804, 5
        %v1947 = vsel %vm1870, %v1945, %v1946
        %v1948 = vrot.slane %v1805, 5
        %v1949 = vrot.slane %v1948, 4
        %v1950 = vrot.slane %v1806, 5
        %v1951 = vsel %vm1870, %v1949, %v1950
        %v1952 = vrot.slane %v1950, 4
        %v1953 = vrot.slane %v1807, 5
        %v1954 = vsel %vm1870, %v1952, %v1953
        %v1955 = vrot.slane %v1808, 5
        %v1956 = vrot.slane %v1955, 4
        %v1957 = vrot.slane %v1809, 5
        %v1958 = vsel %vm1870, %v1956, %v1957
        %v1959 = vrot.slane %v1957, 4
        %v1960 = vrot.slane %v1810, 5
        %v1961 = vsel %vm1870, %v1959, %v1960
        %v1962 = vrot.slane %v1811, 5
        %v1963 = vrot.slane %v1962, 4
        %v1964 = vrot.slane %v1812, 5
        %v1965 = vsel %vm1870, %v1963, %v1964
        %v1966 = vrot.slane %v1964, 4
        %v1967 = vrot.slane %v1813, 5
        %v1968 = vsel %vm1870, %v1966, %v1967
        %v1969 = vrot.slane %v1814, 5
        %v1970 = vrot.slane %v1969, 4
        %v1971 = vrot.slane %v1815, 5
        %v1972 = vsel %vm1870, %v1970, %v1971
        %v1973 = vrot.slane %v1971, 4
        %v1974 = vrot.slane %v1816, 5
        %v1975 = vsel %vm1870, %v1973, %v1974
        %v1976 = vrot.slane %v1817, 5
        %v1977 = vrot.slane %v1976, 4
        %v1978 = vrot.slane %v1818, 5
        %v1979 = vsel %vm1870, %v1977, %v1978
        %v1980 = vrot.slane %v1978, 4
        %v1981 = vrot.slane %v1819, 5
        %v1982 = vsel %vm1870, %v1980, %v1981
        %v1983 = vunpack.c.l.b16 %v1874
        %v1984 = vunpack.c.l.b16 %v1877
        %v1985 = vunpack.c.l.b16 %v1881
        %v1986 = vunpack.c.l.b16 %v1884
        %v1987 = vunpack.c.l.b16 %v1888
        %v1988 = vunpack.c.l.b16 %v1891
        %v1989 = vunpack.c.l.b16 %v1895
        %v1990 = vunpack.c.l.b16 %v1898
        %v1991 = vunpack.c.l.b16 %v1902
        %v1992 = vunpack.c.l.b16 %v1905
        %v1993 = vunpack.c.l.b16 %v1909
        %v1994 = vunpack.c.l.b16 %v1912
        %v1995 = vunpack.c.l.b16 %v1916
        %v1996 = vunpack.c.l.b16 %v1919
        %v1997 = vunpack.c.l.b16 %v1923
        %v1998 = vunpack.c.l.b16 %v1926
        %v1999 = vunpack.c.l.b16 %v1930
        %v2000 = vunpack.c.l.b16 %v1933
        %v2001 = vunpack.c.l.b16 %v1937
        %v2002 = vunpack.c.l.b16 %v1940
        %v2003 = vunpack.c.l.b16 %v1944
        %v2004 = vunpack.c.l.b16 %v1947
        %v2005 = vunpack.c.l.b16 %v1951
        %v2006 = vunpack.c.l.b16 %v1954
        %v2007 = vunpack.c.l.b16 %v1958
        %v2008 = vunpack.c.l.b16 %v1961
        %v2009 = vunpack.c.l.b16 %v1965
        %v2010 = vunpack.c.l.b16 %v1968
        %v2011 = vunpack.c.l.b16 %v1972
        %v2012 = vunpack.c.l.b16 %v1975
        %v2013 = vunpack.c.l.b16 %v1979
        %v2014 = vunpack.c.l.b16 %v1982
        %v2015 = vpack.c.b16 %v1984, %v1983
        %v2016 = vpack.c.b16 %v1986, %v1985
        %v2017 = vpack.c.b16 %v1988, %v1987
        %v2018 = vpack.c.b16 %v1990, %v1989
        %v2019 = vpack.c.b16 %v1992, %v1991
        %v2020 = vpack.c.b16 %v1994, %v1993
        %v2021 = vpack.c.b16 %v1996, %v1995
        %v2022 = vpack.c.b16 %v1998, %v1997
        %v2023 = vpack.c.b16 %v2000, %v1999
        %v2024 = vpack.c.b16 %v2002, %v2001
        %v2025 = vpack.c.b16 %v2004, %v2003
        %v2026 = vpack.c.b16 %v2006, %v2005
        %v2027 = vpack.c.b16 %v2008, %v2007
        %v2028 = vpack.c.b16 %v2010, %v2009
        %v2029 = vpack.c.b16 %v2012, %v2011
        %v2030 = vpack.c.b16 %v2014, %v2013
        %2047 = vst [vmem:[#allocation3 + $0x10] sm:$0xff] %v2015
        %2048 = vst [vmem:[#allocation3 + $0x28] sm:$0xff] %v2016
        %2049 = vst [vmem:[#allocation3 + $0x40] sm:$0xff] %v2017
        %2050 = vst [vmem:[#allocation3 + $0x58] sm:$0xff] %v2018
        %2051 = vst [vmem:[#allocation3 + $0x70] sm:$0xff] %v2019
        %2052 = vst [vmem:[#allocation3 + $0x88] sm:$0xff] %v2020
        %2053 = vst [vmem:[#allocation3 + $0xa0] sm:$0xff] %v2021
        %2054 = vst [vmem:[#allocation3 + $0xb8] sm:$0xff] %v2022
        %2055 = vst [vmem:[#allocation3 + $0xd0] sm:$0xff] %v2023
        %2056 = vst [vmem:[#allocation3 + $0xe8] sm:$0xff] %v2024
        %2057 = vst [vmem:[#allocation3 + $0x100] sm:$0xff] %v2025
        %2058 = vst [vmem:[#allocation3 + $0x118] sm:$0xff] %v2026
        %2059 = vst [vmem:[#allocation3 + $0x130] sm:$0xff] %v2027
        %2060 = vst [vmem:[#allocation3 + $0x148] sm:$0xff] %v2028
        %2061 = vst [vmem:[#allocation3 + $0x160] sm:$0xff] %v2029
        %2062 = vst [vmem:[#allocation3 + $0x178] sm:$0xff] %v2030
        %v2063 = vld [vmem:[#allocation3] sm:$0xff]
        %v2064 = vld [vmem:[#allocation3 + $0x8] sm:$0xff]
        %v2065 = vld [vmem:[#allocation3 + $0x10] sm:$0xff]
        %v2066 = vld [vmem:[#allocation3 + $0x18] sm:$0xff]
        %v2067 = vld [vmem:[#allocation3 + $0x20] sm:$0xff]
        %v2068 = vld [vmem:[#allocation3 + $0x28] sm:$0xff]
        %v2069 = vld [vmem:[#allocation3 + $0x30] sm:$0xff]
        %v2070 = vld [vmem:[#allocation3 + $0x38] sm:$0xff]
        %v2071 = vld [vmem:[#allocation3 + $0x40] sm:$0xff]
        %v2072 = vld [vmem:[#allocation3 + $0x48] sm:$0xff]
        %v2073 = vld [vmem:[#allocation3 + $0x50] sm:$0xff]
        %v2074 = vld [vmem:[#allocation3 + $0x58] sm:$0xff]
        %v2075 = vld [vmem:[#allocation3 + $0x60] sm:$0xff]
        %v2076 = vld [vmem:[#allocation3 + $0x68] sm:$0xff]
        %v2077 = vld [vmem:[#allocation3 + $0x70] sm:$0xff]
        %v2078 = vld [vmem:[#allocation3 + $0x78] sm:$0xff]
        %v2079 = vld [vmem:[#allocation3 + $0x80] sm:$0xff]
        %v2080 = vld [vmem:[#allocation3 + $0x88] sm:$0xff]
        %v2081 = vld [vmem:[#allocation3 + $0x90] sm:$0xff]
        %v2082 = vld [vmem:[#allocation3 + $0x98] sm:$0xff]
        %v2083 = vld [vmem:[#allocation3 + $0xa0] sm:$0xff]
        %v2084 = vld [vmem:[#allocation3 + $0xa8] sm:$0xff]
        %v2085 = vld [vmem:[#allocation3 + $0xb0] sm:$0xff]
        %v2086 = vld [vmem:[#allocation3 + $0xb8] sm:$0xff]
        %v2087 = vld [vmem:[#allocation3 + $0xc0] sm:$0xff]
        %v2088 = vld [vmem:[#allocation3 + $0xc8] sm:$0xff]
        %v2089 = vld [vmem:[#allocation3 + $0xd0] sm:$0xff]
        %v2090 = vld [vmem:[#allocation3 + $0xd8] sm:$0xff]
        %v2091 = vld [vmem:[#allocation3 + $0xe0] sm:$0xff]
        %v2092 = vld [vmem:[#allocation3 + $0xe8] sm:$0xff]
        %v2093 = vld [vmem:[#allocation3 + $0xf0] sm:$0xff]
        %v2094 = vld [vmem:[#allocation3 + $0xf8] sm:$0xff]
        %v2095 = vld [vmem:[#allocation3 + $0x100] sm:$0xff]
        %v2096 = vld [vmem:[#allocation3 + $0x108] sm:$0xff]
        %v2097 = vld [vmem:[#allocation3 + $0x110] sm:$0xff]
        %v2098 = vld [vmem:[#allocation3 + $0x118] sm:$0xff]
        %v2099 = vld [vmem:[#allocation3 + $0x120] sm:$0xff]
        %v2100 = vld [vmem:[#allocation3 + $0x128] sm:$0xff]
        %v2101 = vld [vmem:[#allocation3 + $0x130] sm:$0xff]
        %v2102 = vld [vmem:[#allocation3 + $0x138] sm:$0xff]
        %v2103 = vld [vmem:[#allocation3 + $0x140] sm:$0xff]
        %v2104 = vld [vmem:[#allocation3 + $0x148] sm:$0xff]
        %v2105 = vld [vmem:[#allocation3 + $0x150] sm:$0xff]
        %v2106 = vld [vmem:[#allocation3 + $0x158] sm:$0xff]
        %v2107 = vld [vmem:[#allocation3 + $0x160] sm:$0xff]
        %v2108 = vld [vmem:[#allocation3 + $0x168] sm:$0xff]
        %v2109 = vld [vmem:[#allocation3 + $0x170] sm:$0xff]
        %v2110 = vld [vmem:[#allocation3 + $0x178] sm:$0xff]
        %v2111 = vld [vmem:[#allocation7] sm:$0xf]
        %v2112 = vld [vmem:[#allocation7 + $0x4] sm:$0xf]
        %v2113 = vld [vmem:[#allocation7 + $0x8] sm:$0xf]
        %v2114 = vld [vmem:[#allocation7 + $0xc] sm:$0xf]
        %v2115 = vld [vmem:[#allocation7 + $0x10] sm:$0xf]
        %v2116 = vld [vmem:[#allocation7 + $0x14] sm:$0xf]
        %v2117 = vld [vmem:[#allocation7 + $0x18] sm:$0xf]
        %v2118 = vld [vmem:[#allocation7 + $0x1c] sm:$0xf]
        %v2119 = vld [vmem:[#allocation7 + $0x20] sm:$0xf]
        %v2120 = vld [vmem:[#allocation7 + $0x24] sm:$0xf]
        %v2121 = vld [vmem:[#allocation7 + $0x28] sm:$0xf]
        %v2122 = vld [vmem:[#allocation7 + $0x2c] sm:$0xf]
        %v2123 = vld [vmem:[#allocation7 + $0x30] sm:$0xf]
        %v2124 = vld [vmem:[#allocation7 + $0x34] sm:$0xf]
        %v2125 = vld [vmem:[#allocation7 + $0x38] sm:$0xf]
        %v2126 = vld [vmem:[#allocation7 + $0x3c] sm:$0xf]
        %v2127 = vld [vmem:[#allocation7 + $0x40] sm:$0xf]
        %v2128 = vld [vmem:[#allocation7 + $0x44] sm:$0xf]
        %v2129 = vld [vmem:[#allocation7 + $0x48] sm:$0xf]
        %v2130 = vld [vmem:[#allocation7 + $0x4c] sm:$0xf]
        %v2131 = vld [vmem:[#allocation7 + $0x50] sm:$0xf]
        %v2132 = vld [vmem:[#allocation7 + $0x54] sm:$0xf]
        %v2133 = vld [vmem:[#allocation7 + $0x58] sm:$0xf]
        %v2134 = vld [vmem:[#allocation7 + $0x5c] sm:$0xf]
        %v2135 = vld [vmem:[#allocation7 + $0x60] sm:$0xf]
        %v2136 = vld [vmem:[#allocation7 + $0x64] sm:$0xf]
        %v2137 = vld [vmem:[#allocation7 + $0x68] sm:$0xf]
        %v2138 = vld [vmem:[#allocation7 + $0x6c] sm:$0xf]
        %v2139 = vld [vmem:[#allocation7 + $0x70] sm:$0xf]
        %v2140 = vld [vmem:[#allocation7 + $0x74] sm:$0xf]
        %v2141 = vld [vmem:[#allocation7 + $0x78] sm:$0xf]
        %v2142 = vld [vmem:[#allocation7 + $0x7c] sm:$0xf]
        %v2143 = vld [vmem:[#allocation7 + $0x80] sm:$0xf]
        %v2144 = vld [vmem:[#allocation7 + $0x84] sm:$0xf]
        %v2145 = vld [vmem:[#allocation7 + $0x88] sm:$0xf]
        %v2146 = vld [vmem:[#allocation7 + $0x8c] sm:$0xf]
        %v2147 = vld [vmem:[#allocation7 + $0x90] sm:$0xf]
        %v2148 = vld [vmem:[#allocation7 + $0x94] sm:$0xf]
        %v2149 = vld [vmem:[#allocation7 + $0x98] sm:$0xf]
        %v2150 = vld [vmem:[#allocation7 + $0x9c] sm:$0xf]
        %v2151 = vld [vmem:[#allocation7 + $0xa0] sm:$0xf]
        %v2152 = vld [vmem:[#allocation7 + $0xa4] sm:$0xf]
        %v2153 = vld [vmem:[#allocation7 + $0xa8] sm:$0xf]
        %v2154 = vld [vmem:[#allocation7 + $0xac] sm:$0xf]
        %v2155 = vld [vmem:[#allocation7 + $0xb0] sm:$0xf]
        %v2156 = vld [vmem:[#allocation7 + $0xb4] sm:$0xf]
        %v2157 = vld [vmem:[#allocation7 + $0xb8] sm:$0xf]
        %v2158 = vld [vmem:[#allocation7 + $0xbc] sm:$0xf]
        %v2207 = vunpack.c.l.b16 %v2111
        %v2208 = vunpack.c.l.b16 %v2112
        %v2209 = vunpack.c.l.b16 %v2113
        %v2210 = vunpack.c.l.b16 %v2114
        %v2211 = vunpack.c.l.b16 %v2115
        %v2212 = vunpack.c.l.b16 %v2116
        %v2213 = vunpack.c.l.b16 %v2117
        %v2214 = vunpack.c.l.b16 %v2118
        %v2215 = vunpack.c.l.b16 %v2119
        %v2216 = vunpack.c.l.b16 %v2120
        %v2217 = vunpack.c.l.b16 %v2121
        %v2218 = vunpack.c.l.b16 %v2122
        %v2219 = vunpack.c.l.b16 %v2123
        %v2220 = vunpack.c.l.b16 %v2124
        %v2221 = vunpack.c.l.b16 %v2125
        %v2222 = vunpack.c.l.b16 %v2126
        %v2223 = vunpack.c.l.b16 %v2127
        %v2224 = vunpack.c.l.b16 %v2128
        %v2225 = vunpack.c.l.b16 %v2129
        %v2226 = vunpack.c.l.b16 %v2130
        %v2227 = vunpack.c.l.b16 %v2131
        %v2228 = vunpack.c.l.b16 %v2132
        %v2229 = vunpack.c.l.b16 %v2133
        %v2230 = vunpack.c.l.b16 %v2134
        %v2231 = vunpack.c.l.b16 %v2135
        %v2232 = vunpack.c.l.b16 %v2136
        %v2233 = vunpack.c.l.b16 %v2137
        %v2234 = vunpack.c.l.b16 %v2138
        %v2235 = vunpack.c.l.b16 %v2139
        %v2236 = vunpack.c.l.b16 %v2140
        %v2237 = vunpack.c.l.b16 %v2141
        %v2238 = vunpack.c.l.b16 %v2142
        %v2239 = vunpack.c.l.b16 %v2143
        %v2240 = vunpack.c.l.b16 %v2144
        %v2241 = vunpack.c.l.b16 %v2145
        %v2242 = vunpack.c.l.b16 %v2146
        %v2243 = vunpack.c.l.b16 %v2147
        %v2244 = vunpack.c.l.b16 %v2148
        %v2245 = vunpack.c.l.b16 %v2149
        %v2246 = vunpack.c.l.b16 %v2150
        %v2247 = vunpack.c.l.b16 %v2151
        %v2248 = vunpack.c.l.b16 %v2152
        %v2249 = vunpack.c.l.b16 %v2153
        %v2250 = vunpack.c.l.b16 %v2154
        %v2251 = vunpack.c.l.b16 %v2155
        %v2252 = vunpack.c.l.b16 %v2156
        %v2253 = vunpack.c.l.b16 %v2157
        %v2254 = vunpack.c.l.b16 %v2158
        %v2255 = vpack.c.b16 %v2208, %v2207
        %v2256 = vpack.c.b16 %v2210, %v2209
        %v2257 = vpack.c.b16 %v2212, %v2211
        %v2258 = vpack.c.b16 %v2214, %v2213
        %v2259 = vpack.c.b16 %v2216, %v2215
        %v2260 = vpack.c.b16 %v2218, %v2217
        %v2261 = vpack.c.b16 %v2220, %v2219
        %v2262 = vpack.c.b16 %v2222, %v2221
        %v2263 = vpack.c.b16 %v2224, %v2223
        %v2264 = vpack.c.b16 %v2226, %v2225
        %v2265 = vpack.c.b16 %v2228, %v2227
        %v2266 = vpack.c.b16 %v2230, %v2229
        %v2267 = vpack.c.b16 %v2232, %v2231
        %v2268 = vpack.c.b16 %v2234, %v2233
        %v2269 = vpack.c.b16 %v2236, %v2235
        %v2270 = vpack.c.b16 %v2238, %v2237
        %v2271 = vpack.c.b16 %v2240, %v2239
        %v2272 = vpack.c.b16 %v2242, %v2241
        %v2273 = vpack.c.b16 %v2244, %v2243
        %v2274 = vpack.c.b16 %v2246, %v2245
        %v2275 = vpack.c.b16 %v2248, %v2247
        %v2276 = vpack.c.b16 %v2250, %v2249
        %v2277 = vpack.c.b16 %v2252, %v2251
        %v2278 = vpack.c.b16 %v2254, %v2253
        %2303 = vmatprep.subr.bf16.mxu0 0
        %2304 = vmatpush1.bf16.msra.mxu0 %v2255
        %2305 = vmatprep.subr.bf16.mxu0 0
        %2306 = vmatpush1.bf16.msra.mxu0 %v2256
        %2307 = vmatprep.subr.bf16.mxu0 0
        %2308 = vmatpush1.bf16.msra.mxu0 %v2257
        %2309 = vmatprep.subr.bf16.mxu0 0
        %2310 = vmatpush1.bf16.msra.mxu0 %v2258
        %2311 = vmatprep.subr.bf16.mxu0 0
        %2312 = vmatpush1.bf16.msra.mxu0 %v2259
        %2313 = vmatprep.subr.bf16.mxu0 0
        %2314 = vmatpush1.bf16.msra.mxu0 %v2260
        %2315 = vmatprep.subr.bf16.mxu0 0
        %2316 = vmatpush1.bf16.msra.mxu0 %v2261
        %2317 = vmatprep.subr.bf16.mxu0 0
        %2318 = vmatpush1.bf16.msra.mxu0 %v2262
        %2319 = vmatprep.subr.bf16.mxu0 0
        %2320 = vmatpush1.bf16.msra.mxu0 %v2263
        %2321 = vmatprep.subr.bf16.mxu0 0
        %2322 = vmatpush1.bf16.msra.mxu0 %v2264
        %2323 = vmatprep.subr.bf16.mxu0 0
        %2324 = vmatpush1.bf16.msra.mxu0 %v2265
        %2325 = vmatprep.subr.bf16.mxu0 0
        %2326 = vmatpush1.bf16.msra.mxu0 %v2266
        %2327 = vmatprep.subr.bf16.mxu0 0
        %2328 = vmatpush1.bf16.msra.mxu0 %v2267
        %2329 = vmatprep.subr.bf16.mxu0 0
        %2330 = vmatpush1.bf16.msra.mxu0 %v2268
        %2331 = vmatprep.subr.bf16.mxu0 0
        %2332 = vmatpush1.bf16.msra.mxu0 %v2269
        %2333 = vmatprep.subr.bf16.mxu0 0
        %2334 = vmatpush1.bf16.msra.mxu0 %v2270
        %2335 = vmatprep.mubr.bf16.mxu0 %v2064
        %2336 = vmatmul.mubr.bf16.gmra.mrb[0].mxu0 %v2063
        %v2337 = vpop.f32.mrb[0].mxu0
        %v2338 = vadd.f32 0.0, %v2337
        %v2339 = vpop.f32.mrb[0].mxu0
        %v2340 = vpop.f32.mrb[0].mxu0
        %v2341 = vadd.f32 0.0, %v2340
        %v2342 = vpop.f32.mrb[0].mxu0
        %2343 = vmatprep.mubr.bf16.mxu0 %v2067
        %2344 = vmatmul.mubr.bf16.gmra.mrb[0].mxu0 %v2066
        %v2345 = vpop.f32.mrb[0].mxu0
        %v2346 = vadd.f32 0.0, %v2345
        %v2347 = vpop.f32.mrb[0].mxu0
        %v2348 = vpop.f32.mrb[0].mxu0
        %v2349 = vadd.f32 0.0, %v2348
        %v2350 = vpop.f32.mrb[0].mxu0
        %2351 = vmatprep.mubr.bf16.mxu0 %v2070
        %2352 = vmatmul.mubr.bf16.gmra.mrb[0].mxu0 %v2069
        %v2353 = vpop.f32.mrb[0].mxu0
        %v2354 = vadd.f32 0.0, %v2353
        %v2355 = vpop.f32.mrb[0].mxu0
        %v2356 = vpop.f32.mrb[0].mxu0
        %v2357 = vadd.f32 0.0, %v2356
        %v2358 = vpop.f32.mrb[0].mxu0
        %2359 = vmatprep.mubr.bf16.mxu0 %v2073
        %2360 = vmatmul.mubr.bf16.gmra.mrb[0].mxu0 %v2072
        %v2361 = vpop.f32.mrb[0].mxu0
        %v2362 = vadd.f32 0.0, %v2361
        %v2363 = vpop.f32.mrb[0].mxu0
        %v2364 = vpop.f32.mrb[0].mxu0
        %v2365 = vadd.f32 0.0, %v2364
        %v2366 = vpop.f32.mrb[0].mxu0
        %2367 = vmatprep.mubr.bf16.mxu0 %v2076
        %2368 = vmatmul.mubr.bf16.gmra.mrb[0].mxu0 %v2075
        %v2369 = vpop.f32.mrb[0].mxu0
        %v2370 = vadd.f32 0.0, %v2369
        %v2371 = vpop.f32.mrb[0].mxu0
        %v2372 = vpop.f32.mrb[0].mxu0
        %v2373 = vadd.f32 0.0, %v2372
        %v2374 = vpop.f32.mrb[0].mxu0
        %2375 = vmatprep.mubr.bf16.mxu0 %v2079
        %2376 = vmatmul.mubr.bf16.gmra.mrb[0].mxu0 %v2078
        %v2377 = vpop.f32.mrb[0].mxu0
        %v2378 = vadd.f32 0.0, %v2377
        %v2379 = vpop.f32.mrb[0].mxu0
        %v2380 = vpop.f32.mrb[0].mxu0
        %v2381 = vadd.f32 0.0, %v2380
        %v2382 = vpop.f32.mrb[0].mxu0
        %2383 = vmatprep.mubr.bf16.mxu0 %v2082
        %2384 = vmatmul.mubr.bf16.gmra.mrb[0].mxu0 %v2081
        %v2385 = vpop.f32.mrb[0].mxu0
        %v2386 = vadd.f32 0.0, %v2385
        %v2387 = vpop.f32.mrb[0].mxu0
        %v2388 = vpop.f32.mrb[0].mxu0
        %v2389 = vadd.f32 0.0, %v2388
        %v2390 = vpop.f32.mrb[0].mxu0
        %2391 = vmatprep.mubr.bf16.mxu0 %v2085
        %2392 = vmatmul.mubr.bf16.gmra.mrb[0].mxu0 %v2084
        %v2393 = vpop.f32.mrb[0].mxu0
        %v2394 = vadd.f32 0.0, %v2393
        %v2395 = vpop.f32.mrb[0].mxu0
        %v2396 = vpop.f32.mrb[0].mxu0
        %v2397 = vadd.f32 0.0, %v2396
        %v2398 = vpop.f32.mrb[0].mxu0
        %2399 = vmatprep.mubr.bf16.mxu0 %v2088
        %2400 = vmatmul.mubr.bf16.gmra.mrb[0].mxu0 %v2087
        %v2401 = vpop.f32.mrb[0].mxu0
        %v2402 = vadd.f32 0.0, %v2401
        %v2403 = vpop.f32.mrb[0].mxu0
        %v2404 = vpop.f32.mrb[0].mxu0
        %v2405 = vadd.f32 0.0, %v2404
        %v2406 = vpop.f32.mrb[0].mxu0
        %2407 = vmatprep.mubr.bf16.mxu0 %v2091
        %2408 = vmatmul.mubr.bf16.gmra.mrb[0].mxu0 %v2090
        %v2409 = vpop.f32.mrb[0].mxu0
        %v2410 = vadd.f32 0.0, %v2409
        %v2411 = vpop.f32.mrb[0].mxu0
        %v2412 = vpop.f32.mrb[0].mxu0
        %v2413 = vadd.f32 0.0, %v2412
        %v2414 = vpop.f32.mrb[0].mxu0
        %2415 = vmatprep.mubr.bf16.mxu0 %v2094
        %2416 = vmatmul.mubr.bf16.gmra.mrb[0].mxu0 %v2093
        %v2417 = vpop.f32.mrb[0].mxu0
        %v2418 = vadd.f32 0.0, %v2417
        %v2419 = vpop.f32.mrb[0].mxu0
        %v2420 = vpop.f32.mrb[0].mxu0
        %v2421 = vadd.f32 0.0, %v2420
        %v2422 = vpop.f32.mrb[0].mxu0
        %2423 = vmatprep.mubr.bf16.mxu0 %v2097
        %2424 = vmatmul.mubr.bf16.gmra.mrb[0].mxu0 %v2096
        %v2425 = vpop.f32.mrb[0].mxu0
        %v2426 = vadd.f32 0.0, %v2425
        %v2427 = vpop.f32.mrb[0].mxu0
        %v2428 = vpop.f32.mrb[0].mxu0
        %v2429 = vadd.f32 0.0, %v2428
        %v2430 = vpop.f32.mrb[0].mxu0
        %2431 = vmatprep.mubr.bf16.mxu0 %v2100
        %2432 = vmatmul.mubr.bf16.gmra.mrb[0].mxu0 %v2099
        %v2433 = vpop.f32.mrb[0].mxu0
        %v2434 = vadd.f32 0.0, %v2433
        %v2435 = vpop.f32.mrb[0].mxu0
        %v2436 = vpop.f32.mrb[0].mxu0
        %v2437 = vadd.f32 0.0, %v2436
        %v2438 = vpop.f32.mrb[0].mxu0
        %2439 = vmatprep.mubr.bf16.mxu0 %v2103
        %2440 = vmatmul.mubr.bf16.gmra.mrb[0].mxu0 %v2102
        %v2441 = vpop.f32.mrb[0].mxu0
        %v2442 = vadd.f32 0.0, %v2441
        %v2443 = vpop.f32.mrb[0].mxu0
        %v2444 = vpop.f32.mrb[0].mxu0
        %v2445 = vadd.f32 0.0, %v2444
        %v2446 = vpop.f32.mrb[0].mxu0
        %2447 = vmatprep.mubr.bf16.mxu0 %v2106
        %2448 = vmatmul.mubr.bf16.gmra.mrb[0].mxu0 %v2105
        %v2449 = vpop.f32.mrb[0].mxu0
        %v2450 = vadd.f32 0.0, %v2449
        %v2451 = vpop.f32.mrb[0].mxu0
        %v2452 = vpop.f32.mrb[0].mxu0
        %v2453 = vadd.f32 0.0, %v2452
        %v2454 = vpop.f32.mrb[0].mxu0
        %2455 = vmatprep.mubr.bf16.mxu0 %v2109
        %2456 = vmatmul.mubr.bf16.gmra.mrb[0].mxu0 %v2108
        %v2457 = vpop.f32.mrb[0].mxu0
        %v2458 = vadd.f32 0.0, %v2457
        %v2459 = vpop.f32.mrb[0].mxu0
        %v2460 = vpop.f32.mrb[0].mxu0
        %v2461 = vadd.f32 0.0, %v2460
        %v2462 = vpop.f32.mrb[0].mxu0
        %2463 = vdwg.mxu0
        %2464 = vmatprep.subr.bf16.mxu0 0
        %2465 = vmatpush1.bf16.msra.mxu0 %v2271
        %2466 = vmatprep.subr.bf16.mxu0 0
        %2467 = vmatpush1.bf16.msra.mxu0 %v2272
        %2468 = vmatprep.subr.bf16.mxu0 0
        %2469 = vmatpush1.bf16.msra.mxu0 %v2273
        %2470 = vmatprep.subr.bf16.mxu0 0
        %2471 = vmatpush1.bf16.msra.mxu0 %v2274
        %2472 = vmatprep.subr.bf16.mxu0 0
        %2473 = vmatpush1.bf16.msra.mxu0 %v2275
        %2474 = vmatprep.subr.bf16.mxu0 0
        %2475 = vmatpush1.bf16.msra.mxu0 %v2276
        %2476 = vmatprep.subr.bf16.mxu0 0
        %2477 = vmatpush1.bf16.msra.mxu0 %v2277
        %2478 = vmatprep.subr.bf16.mxu0 0
        %2479 = vmatpush1.bf16.msra.mxu0 %v2278
        %2480 = vmatprep.subr.bf16.mxu0 0
        %2481 = vmatpush1.bf16.msra.mxu0 0
        %2482 = vmatprep.subr.bf16.mxu0 0
        %2483 = vmatpush1.bf16.msra.mxu0 0
        %2484 = vmatprep.subr.bf16.mxu0 0
        %2485 = vmatpush1.bf16.msra.mxu0 0
        %2486 = vmatprep.subr.bf16.mxu0 0
        %2487 = vmatpush1.bf16.msra.mxu0 0
        %2488 = vmatprep.subr.bf16.mxu0 0
        %2489 = vmatpush1.bf16.msra.mxu0 0
        %2490 = vmatprep.subr.bf16.mxu0 0
        %2491 = vmatpush1.bf16.msra.mxu0 0
        %2492 = vmatprep.subr.bf16.mxu0 0
        %2493 = vmatpush1.bf16.msra.mxu0 0
        %2494 = vmatprep.subr.bf16.mxu0 0
        %2495 = vmatpush1.bf16.msra.mxu0 0
        %2496 = vmatprep.mubr.bf16.mxu0 0
        %2497 = vmatmul.mubr.bf16.gmra.mrb[0].mxu0 %v2065
        %v2498 = vpop.f32.mrb[0].mxu0
        %v2499 = vadd.f32 %v2338, %v2498
        %v2500 = vpop.f32.mrb[0].mxu0
        %v2501 = vpop.f32.mrb[0].mxu0
        %v2502 = vadd.f32 %v2341, %v2501
        %v2503 = vpop.f32.mrb[0].mxu0
        %2504 = vmatprep.mubr.bf16.mxu0 0
        %2505 = vmatmul.mubr.bf16.gmra.mrb[0].mxu0 %v2068
        %v2506 = vpop.f32.mrb[0].mxu0
        %v2507 = vadd.f32 %v2346, %v2506
        %v2508 = vpop.f32.mrb[0].mxu0
        %v2509 = vpop.f32.mrb[0].mxu0
        %v2510 = vadd.f32 %v2349, %v2509
        %v2511 = vpop.f32.mrb[0].mxu0
        %2512 = vmatprep.mubr.bf16.mxu0 0
        %2513 = vmatmul.mubr.bf16.gmra.mrb[0].mxu0 %v2071
        %v2514 = vpop.f32.mrb[0].mxu0
        %v2515 = vadd.f32 %v2354, %v2514
        %v2516 = vpop.f32.mrb[0].mxu0
        %v2517 = vpop.f32.mrb[0].mxu0
        %v2518 = vadd.f32 %v2357, %v2517
        %v2519 = vpop.f32.mrb[0].mxu0
        %2520 = vmatprep.mubr.bf16.mxu0 0
        %2521 = vmatmul.mubr.bf16.gmra.mrb[0].mxu0 %v2074
        %v2522 = vpop.f32.mrb[0].mxu0
        %v2523 = vadd.f32 %v2362, %v2522
        %v2524 = vpop.f32.mrb[0].mxu0
        %v2525 = vpop.f32.mrb[0].mxu0
        %v2526 = vadd.f32 %v2365, %v2525
        %v2527 = vpop.f32.mrb[0].mxu0
        %2528 = vmatprep.mubr.bf16.mxu0 0
        %2529 = vmatmul.mubr.bf16.gmra.mrb[0].mxu0 %v2077
        %v2530 = vpop.f32.mrb[0].mxu0
        %v2531 = vadd.f32 %v2370, %v2530
        %v2532 = vpop.f32.mrb[0].mxu0
        %v2533 = vpop.f32.mrb[0].mxu0
        %v2534 = vadd.f32 %v2373, %v2533
        %v2535 = vpop.f32.mrb[0].mxu0
        %2536 = vmatprep.mubr.bf16.mxu0 0
        %2537 = vmatmul.mubr.bf16.gmra.mrb[0].mxu0 %v2080
        %v2538 = vpop.f32.mrb[0].mxu0
        %v2539 = vadd.f32 %v2378, %v2538
        %v2540 = vpop.f32.mrb[0].mxu0
        %v2541 = vpop.f32.mrb[0].mxu0
        %v2542 = vadd.f32 %v2381, %v2541
        %v2543 = vpop.f32.mrb[0].mxu0
        %2544 = vmatprep.mubr.bf16.mxu0 0
        %2545 = vmatmul.mubr.bf16.gmra.mrb[0].mxu0 %v2083
        %v2546 = vpop.f32.mrb[0].mxu0
        %v2547 = vadd.f32 %v2386, %v2546
        %v2548 = vpop.f32.mrb[0].mxu0
        %v2549 = vpop.f32.mrb[0].mxu0
        %v2550 = vadd.f32 %v2389, %v2549
        %v2551 = vpop.f32.mrb[0].mxu0
        %2552 = vmatprep.mubr.bf16.mxu0 0
        %2553 = vmatmul.mubr.bf16.gmra.mrb[0].mxu0 %v2086
        %v2554 = vpop.f32.mrb[0].mxu0
        %v2555 = vadd.f32 %v2394, %v2554
        %v2556 = vpop.f32.mrb[0].mxu0
        %v2557 = vpop.f32.mrb[0].mxu0
        %v2558 = vadd.f32 %v2397, %v2557
        %v2559 = vpop.f32.mrb[0].mxu0
        %2560 = vmatprep.mubr.bf16.mxu0 0
        %2561 = vmatmul.mubr.bf16.gmra.mrb[0].mxu0 %v2089
        %v2562 = vpop.f32.mrb[0].mxu0
        %v2563 = vadd.f32 %v2402, %v2562
        %v2564 = vpop.f32.mrb[0].mxu0
        %v2565 = vpop.f32.mrb[0].mxu0
        %v2566 = vadd.f32 %v2405, %v2565
        %v2567 = vpop.f32.mrb[0].mxu0
        %2568 = vmatprep.mubr.bf16.mxu0 0
        %2569 = vmatmul.mubr.bf16.gmra.mrb[0].mxu0 %v2092
        %v2570 = vpop.f32.mrb[0].mxu0
        %v2571 = vadd.f32 %v2410, %v2570
        %v2572 = vpop.f32.mrb[0].mxu0
        %v2573 = vpop.f32.mrb[0].mxu0
        %v2574 = vadd.f32 %v2413, %v2573
        %v2575 = vpop.f32.mrb[0].mxu0
        %2576 = vmatprep.mubr.bf16.mxu0 0
        %2577 = vmatmul.mubr.bf16.gmra.mrb[0].mxu0 %v2095
        %v2578 = vpop.f32.mrb[0].mxu0
        %v2579 = vadd.f32 %v2418, %v2578
        %v2580 = vpop.f32.mrb[0].mxu0
        %v2581 = vpop.f32.mrb[0].mxu0
        %v2582 = vadd.f32 %v2421, %v2581
        %v2583 = vpop.f32.mrb[0].mxu0
        %2584 = vmatprep.mubr.bf16.mxu0 0
        %2585 = vmatmul.mubr.bf16.gmra.mrb[0].mxu0 %v2098
        %v2586 = vpop.f32.mrb[0].mxu0
        %v2587 = vadd.f32 %v2426, %v2586
        %v2588 = vpop.f32.mrb[0].mxu0
        %v2589 = vpop.f32.mrb[0].mxu0
        %v2590 = vadd.f32 %v2429, %v2589
        %v2591 = vpop.f32.mrb[0].mxu0
        %2592 = vmatprep.mubr.bf16.mxu0 0
        %2593 = vmatmul.mubr.bf16.gmra.mrb[0].mxu0 %v2101
        %v2594 = vpop.f32.mrb[0].mxu0
        %v2595 = vadd.f32 %v2434, %v2594
        %v2596 = vpop.f32.mrb[0].mxu0
        %v2597 = vpop.f32.mrb[0].mxu0
        %v2598 = vadd.f32 %v2437, %v2597
        %v2599 = vpop.f32.mrb[0].mxu0
        %2600 = vmatprep.mubr.bf16.mxu0 0
        %2601 = vmatmul.mubr.bf16.gmra.mrb[0].mxu0 %v2104
        %v2602 = vpop.f32.mrb[0].mxu0
        %v2603 = vadd.f32 %v2442, %v2602
        %v2604 = vpop.f32.mrb[0].mxu0
        %v2605 = vpop.f32.mrb[0].mxu0
        %v2606 = vadd.f32 %v2445, %v2605
        %v2607 = vpop.f32.mrb[0].mxu0
        %2608 = vmatprep.mubr.bf16.mxu0 0
        %2609 = vmatmul.mubr.bf16.gmra.mrb[0].mxu0 %v2107
        %v2610 = vpop.f32.mrb[0].mxu0
        %v2611 = vadd.f32 %v2450, %v2610
        %v2612 = vpop.f32.mrb[0].mxu0
        %v2613 = vpop.f32.mrb[0].mxu0
        %v2614 = vadd.f32 %v2453, %v2613
        %v2615 = vpop.f32.mrb[0].mxu0
        %2616 = vmatprep.mubr.bf16.mxu0 0
        %2617 = vmatmul.mubr.bf16.gmra.mrb[0].mxu0 %v2110
        %v2618 = vpop.f32.mrb[0].mxu0
        %v2619 = vadd.f32 %v2458, %v2618
        %v2620 = vpop.f32.mrb[0].mxu0
        %v2621 = vpop.f32.mrb[0].mxu0
        %v2622 = vadd.f32 %v2461, %v2621
        %v2623 = vpop.f32.mrb[0].mxu0
        %2624 = vdwg.mxu0
        %2625 = vst [vmem:[%s278] sm:$0xff] %v2499
        %2626 = vst [vmem:[%s278 + $0x8] sm:$0xff] %v2502
        %2627 = vst [vmem:[%s278 + $0x10] sm:$0xff] %v2507
        %2628 = vst [vmem:[%s278 + $0x18] sm:$0xff] %v2510
        %2629 = vst [vmem:[%s278 + $0x20] sm:$0xff] %v2515
        %2630 = vst [vmem:[%s278 + $0x28] sm:$0xff] %v2518
        %2631 = vst [vmem:[%s278 + $0x30] sm:$0xff] %v2523
        %2632 = vst [vmem:[%s278 + $0x38] sm:$0xff] %v2526
        %2633 = vst [vmem:[%s278 + $0x40] sm:$0xff] %v2531
        %2634 = vst [vmem:[%s278 + $0x48] sm:$0xff] %v2534
        %2635 = vst [vmem:[%s278 + $0x50] sm:$0xff] %v2539
        %2636 = vst [vmem:[%s278 + $0x58] sm:$0xff] %v2542
        %2637 = vst [vmem:[%s278 + $0x60] sm:$0xff] %v2547
        %2638 = vst [vmem:[%s278 + $0x68] sm:$0xff] %v2550
        %2639 = vst [vmem:[%s278 + $0x70] sm:$0xff] %v2555
        %2640 = vst [vmem:[%s278 + $0x78] sm:$0xff] %v2558
        %2641 = vst [vmem:[%s278 + $0x80] sm:$0xff] %v2563
        %2642 = vst [vmem:[%s278 + $0x88] sm:$0xff] %v2566
        %2643 = vst [vmem:[%s278 + $0x90] sm:$0xff] %v2571
        %2644 = vst [vmem:[%s278 + $0x98] sm:$0xff] %v2574
        %2645 = vst [vmem:[%s278 + $0xa0] sm:$0xff] %v2579
        %2646 = vst [vmem:[%s278 + $0xa8] sm:$0xff] %v2582
        %2647 = vst [vmem:[%s278 + $0xb0] sm:$0xff] %v2587
        %2648 = vst [vmem:[%s278 + $0xb8] sm:$0xff] %v2590
        %2649 = vst [vmem:[%s278 + $0xc0] sm:$0xff] %v2595
        %2650 = vst [vmem:[%s278 + $0xc8] sm:$0xff] %v2598
        %2651 = vst [vmem:[%s278 + $0xd0] sm:$0xff] %v2603
        %2652 = vst [vmem:[%s278 + $0xd8] sm:$0xff] %v2606
        %2653 = vst [vmem:[%s278 + $0xe0] sm:$0xff] %v2611
        %2654 = vst [vmem:[%s278 + $0xe8] sm:$0xff] %v2614
        %2655 = vst [vmem:[%s278 + $0xf0] sm:$0xff] %v2619
        %2656 = vst [vmem:[%s278 + $0xf8] sm:$0xff] %v2622
        %v2657 = vld [vmem:[%s998] sm:$0xf]
        %v2658 = vld [vmem:[%s998 + $0x4] sm:$0xf]
        %v2659 = vld [vmem:[%s998 + $0xc] sm:$0xf]
        %v2660 = vld [vmem:[%s998 + $0x10] sm:$0xf]
        %v2661 = vld [vmem:[%s998 + $0x18] sm:$0xf]
        %v2662 = vld [vmem:[%s998 + $0x1c] sm:$0xf]
        %v2663 = vld [vmem:[%s998 + $0x24] sm:$0xf]
        %v2664 = vld [vmem:[%s998 + $0x28] sm:$0xf]
        %v2665 = vld [vmem:[%s998 + $0x30] sm:$0xf]
        %v2666 = vld [vmem:[%s998 + $0x34] sm:$0xf]
        %v2667 = vld [vmem:[%s998 + $0x3c] sm:$0xf]
        %v2668 = vld [vmem:[%s998 + $0x40] sm:$0xf]
        %v2669 = vld [vmem:[%s998 + $0x48] sm:$0xf]
        %v2670 = vld [vmem:[%s998 + $0x4c] sm:$0xf]
        %v2671 = vld [vmem:[%s998 + $0x54] sm:$0xf]
        %v2672 = vld [vmem:[%s998 + $0x58] sm:$0xf]
        %v2673 = vld [vmem:[%s998 + $0x60] sm:$0xf]
        %v2674 = vld [vmem:[%s998 + $0x64] sm:$0xf]
        %v2675 = vld [vmem:[%s998 + $0x6c] sm:$0xf]
        %v2676 = vld [vmem:[%s998 + $0x70] sm:$0xf]
        %v2677 = vld [vmem:[%s998 + $0x78] sm:$0xf]
        %v2678 = vld [vmem:[%s998 + $0x7c] sm:$0xf]
        %v2679 = vld [vmem:[%s998 + $0x84] sm:$0xf]
        %v2680 = vld [vmem:[%s998 + $0x88] sm:$0xf]
        %v2681 = vld [vmem:[%s998 + $0x90] sm:$0xf]
        %v2682 = vld [vmem:[%s998 + $0x94] sm:$0xf]
        %v2683 = vld [vmem:[%s998 + $0x9c] sm:$0xf]
        %v2684 = vld [vmem:[%s998 + $0xa0] sm:$0xf]
        %v2685 = vld [vmem:[%s998 + $0xa8] sm:$0xf]
        %v2686 = vld [vmem:[%s998 + $0xac] sm:$0xf]
        %v2687 = vld [vmem:[%s998 + $0xb4] sm:$0xf]
        %v2688 = vld [vmem:[%s998 + $0xb8] sm:$0xf]
        %v2721 = vunpack.c.l.b16 %v2657
        %v2722 = vunpack.c.l.b16 %v2658
        %v2723 = vunpack.c.l.b16 %v2659
        %v2724 = vunpack.c.l.b16 %v2660
        %v2725 = vunpack.c.l.b16 %v2661
        %v2726 = vunpack.c.l.b16 %v2662
        %v2727 = vunpack.c.l.b16 %v2663
        %v2728 = vunpack.c.l.b16 %v2664
        %v2729 = vunpack.c.l.b16 %v2665
        %v2730 = vunpack.c.l.b16 %v2666
        %v2731 = vunpack.c.l.b16 %v2667
        %v2732 = vunpack.c.l.b16 %v2668
        %v2733 = vunpack.c.l.b16 %v2669
        %v2734 = vunpack.c.l.b16 %v2670
        %v2735 = vunpack.c.l.b16 %v2671
        %v2736 = vunpack.c.l.b16 %v2672
        %v2737 = vunpack.c.l.b16 %v2673
        %v2738 = vunpack.c.l.b16 %v2674
        %v2739 = vunpack.c.l.b16 %v2675
        %v2740 = vunpack.c.l.b16 %v2676
        %v2741 = vunpack.c.l.b16 %v2677
        %v2742 = vunpack.c.l.b16 %v2678
        %v2743 = vunpack.c.l.b16 %v2679
        %v2744 = vunpack.c.l.b16 %v2680
        %v2745 = vunpack.c.l.b16 %v2681
        %v2746 = vunpack.c.l.b16 %v2682
        %v2747 = vunpack.c.l.b16 %v2683
        %v2748 = vunpack.c.l.b16 %v2684
        %v2749 = vunpack.c.l.b16 %v2685
        %v2750 = vunpack.c.l.b16 %v2686
        %v2751 = vunpack.c.l.b16 %v2687
        %v2752 = vunpack.c.l.b16 %v2688
        %v2753 = vpack.c.b16 %v2722, %v2721
        %v2754 = vpack.c.b16 %v2724, %v2723
        %v2755 = vpack.c.b16 %v2726, %v2725
        %v2756 = vpack.c.b16 %v2728, %v2727
        %v2757 = vpack.c.b16 %v2730, %v2729
        %v2758 = vpack.c.b16 %v2732, %v2731
        %v2759 = vpack.c.b16 %v2734, %v2733
        %v2760 = vpack.c.b16 %v2736, %v2735
        %v2761 = vpack.c.b16 %v2738, %v2737
        %v2762 = vpack.c.b16 %v2740, %v2739
        %v2763 = vpack.c.b16 %v2742, %v2741
        %v2764 = vpack.c.b16 %v2744, %v2743
        %v2765 = vpack.c.b16 %v2746, %v2745
        %v2766 = vpack.c.b16 %v2748, %v2747
        %v2767 = vpack.c.b16 %v2750, %v2749
        %v2768 = vpack.c.b16 %v2752, %v2751
        %2785 = vst [vmem:[#allocation3] sm:$0xff] %v2753
        %2786 = vst [vmem:[#allocation3 + $0x18] sm:$0xff] %v2754
        %2787 = vst [vmem:[#allocation3 + $0x30] sm:$0xff] %v2755
        %2788 = vst [vmem:[#allocation3 + $0x48] sm:$0xff] %v2756
        %2789 = vst [vmem:[#allocation3 + $0x60] sm:$0xff] %v2757
        %2790 = vst [vmem:[#allocation3 + $0x78] sm:$0xff] %v2758
        %2791 = vst [vmem:[#allocation3 + $0x90] sm:$0xff] %v2759
        %2792 = vst [vmem:[#allocation3 + $0xa8] sm:$0xff] %v2760
        %2793 = vst [vmem:[#allocation3 + $0xc0] sm:$0xff] %v2761
        %2794 = vst [vmem:[#allocation3 + $0xd8] sm:$0xff] %v2762
        %2795 = vst [vmem:[#allocation3 + $0xf0] sm:$0xff] %v2763
        %2796 = vst [vmem:[#allocation3 + $0x108] sm:$0xff] %v2764
        %2797 = vst [vmem:[#allocation3 + $0x120] sm:$0xff] %v2765
        %2798 = vst [vmem:[#allocation3 + $0x138] sm:$0xff] %v2766
        %2799 = vst [vmem:[#allocation3 + $0x150] sm:$0xff] %v2767
        %2800 = vst [vmem:[#allocation3 + $0x168] sm:$0xff] %v2768
        %v2801 = vld [vmem:[%s998] sm:$0xf]
        %v2802 = vld [vmem:[%s998 + $0x4] sm:$0xf]
        %v2803 = vld [vmem:[%s998 + $0x8] sm:$0x1]
        %v2804 = vld [vmem:[%s998 + $0xc] sm:$0xf]
        %v2805 = vld [vmem:[%s998 + $0x10] sm:$0xf]
        %v2806 = vld [vmem:[%s998 + $0x14] sm:$0x1]
        %v2807 = vld [vmem:[%s998 + $0x18] sm:$0xf]
        %v2808 = vld [vmem:[%s998 + $0x1c] sm:$0xf]
        %v2809 = vld [vmem:[%s998 + $0x20] sm:$0x1]
        %v2810 = vld [vmem:[%s998 + $0x24] sm:$0xf]
        %v2811 = vld [vmem:[%s998 + $0x28] sm:$0xf]
        %v2812 = vld [vmem:[%s998 + $0x2c] sm:$0x1]
        %v2813 = vld [vmem:[%s998 + $0x30] sm:$0xf]
        %v2814 = vld [vmem:[%s998 + $0x34] sm:$0xf]
        %v2815 = vld [vmem:[%s998 + $0x38] sm:$0x1]
        %v2816 = vld [vmem:[%s998 + $0x3c] sm:$0xf]
        %v2817 = vld [vmem:[%s998 + $0x40] sm:$0xf]
        %v2818 = vld [vmem:[%s998 + $0x44] sm:$0x1]
        %v2819 = vld [vmem:[%s998 + $0x48] sm:$0xf]
        %v2820 = vld [vmem:[%s998 + $0x4c] sm:$0xf]
        %v2821 = vld [vmem:[%s998 + $0x50] sm:$0x1]
        %v2822 = vld [vmem:[%s998 + $0x54] sm:$0xf]
        %v2823 = vld [vmem:[%s998 + $0x58] sm:$0xf]
        %v2824 = vld [vmem:[%s998 + $0x5c] sm:$0x1]
        %v2825 = vld [vmem:[%s998 + $0x60] sm:$0xf]
        %v2826 = vld [vmem:[%s998 + $0x64] sm:$0xf]
        %v2827 = vld [vmem:[%s998 + $0x68] sm:$0x1]
        %v2828 = vld [vmem:[%s998 + $0x6c] sm:$0xf]
        %v2829 = vld [vmem:[%s998 + $0x70] sm:$0xf]
        %v2830 = vld [vmem:[%s998 + $0x74] sm:$0x1]
        %v2831 = vld [vmem:[%s998 + $0x78] sm:$0xf]
        %v2832 = vld [vmem:[%s998 + $0x7c] sm:$0xf]
        %v2833 = vld [vmem:[%s998 + $0x80] sm:$0x1]
        %v2834 = vld [vmem:[%s998 + $0x84] sm:$0xf]
        %v2835 = vld [vmem:[%s998 + $0x88] sm:$0xf]
        %v2836 = vld [vmem:[%s998 + $0x8c] sm:$0x1]
        %v2837 = vld [vmem:[%s998 + $0x90] sm:$0xf]
        %v2838 = vld [vmem:[%s998 + $0x94] sm:$0xf]
        %v2839 = vld [vmem:[%s998 + $0x98] sm:$0x1]
        %v2840 = vld [vmem:[%s998 + $0x9c] sm:$0xf]
        %v2841 = vld [vmem:[%s998 + $0xa0] sm:$0xf]
        %v2842 = vld [vmem:[%s998 + $0xa4] sm:$0x1]
        %v2843 = vld [vmem:[%s998 + $0xa8] sm:$0xf]
        %v2844 = vld [vmem:[%s998 + $0xac] sm:$0xf]
        %v2845 = vld [vmem:[%s998 + $0xb0] sm:$0x1]
        %v2846 = vld [vmem:[%s998 + $0xb4] sm:$0xf]
        %v2847 = vld [vmem:[%s998 + $0xb8] sm:$0xf]
        %v2848 = vld [vmem:[%s998 + $0xbc] sm:$0x1]
        %v2850 = vshrl.u32 %v2801, 16
        %v2852 = vrot.slane %v2850, 4
        %v2853 = vshll.u32 %v2801, 16
        %v2855 = vrot.slane %v2853, 5
        %v2856 = vor.u32 %v2852, %v2855
        %v2857 = vrot.slane %v2856, 4
        %v2859 = vshll.u32 %v2802, 16
        %v2861 = vrot.slane %v2859, 5
        %v2862 = vsel %vm1307, %v2857, %v2861
        %v2863 = vshrl.u32 %v2802, 16
        %v2865 = vrot.slane %v2863, 4
        %v2866 = vor.u32 %v2865, %v2861
        %v2867 = vrot.slane %v2866, 4
        %v2869 = vshll.u32 %v2803, 16
        %v2871 = vrot.slane %v2869, 5
        %v2872 = vsel %vm1307, %v2867, %v2871
        %v2874 = vshrl.u32 %v2804, 16
        %v2876 = vrot.slane %v2874, 4
        %v2877 = vshll.u32 %v2804, 16
        %v2879 = vrot.slane %v2877, 5
        %v2880 = vor.u32 %v2876, %v2879
        %v2881 = vrot.slane %v2880, 4
        %v2883 = vshll.u32 %v2805, 16
        %v2885 = vrot.slane %v2883, 5
        %v2886 = vsel %vm1307, %v2881, %v2885
        %v2887 = vshrl.u32 %v2805, 16
        %v2889 = vrot.slane %v2887, 4
        %v2890 = vor.u32 %v2889, %v2885
        %v2891 = vrot.slane %v2890, 4
        %v2893 = vshll.u32 %v2806, 16
        %v2895 = vrot.slane %v2893, 5
        %v2896 = vsel %vm1307, %v2891, %v2895
        %v2898 = vshrl.u32 %v2807, 16
        %v2900 = vrot.slane %v2898, 4
        %v2901 = vshll.u32 %v2807, 16
        %v2903 = vrot.slane %v2901, 5
        %v2904 = vor.u32 %v2900, %v2903
        %v2905 = vrot.slane %v2904, 4
        %v2907 = vshll.u32 %v2808, 16
        %v2909 = vrot.slane %v2907, 5
        %v2910 = vsel %vm1307, %v2905, %v2909
        %v2911 = vshrl.u32 %v2808, 16
        %v2913 = vrot.slane %v2911, 4
        %v2914 = vor.u32 %v2913, %v2909
        %v2915 = vrot.slane %v2914, 4
        %v2917 = vshll.u32 %v2809, 16
        %v2919 = vrot.slane %v2917, 5
        %v2920 = vsel %vm1307, %v2915, %v2919
        %v2922 = vshrl.u32 %v2810, 16
        %v2924 = vrot.slane %v2922, 4
        %v2925 = vshll.u32 %v2810, 16
        %v2927 = vrot.slane %v2925, 5
        %v2928 = vor.u32 %v2924, %v2927
        %v2929 = vrot.slane %v2928, 4
        %v2931 = vshll.u32 %v2811, 16
        %v2933 = vrot.slane %v2931, 5
        %v2934 = vsel %vm1307, %v2929, %v2933
        %v2935 = vshrl.u32 %v2811, 16
        %v2937 = vrot.slane %v2935, 4
        %v2938 = vor.u32 %v2937, %v2933
        %v2939 = vrot.slane %v2938, 4
        %v2941 = vshll.u32 %v2812, 16
        %v2943 = vrot.slane %v2941, 5
        %v2944 = vsel %vm1307, %v2939, %v2943
        %v2946 = vshrl.u32 %v2813, 16
        %v2948 = vrot.slane %v2946, 4
        %v2949 = vshll.u32 %v2813, 16
        %v2951 = vrot.slane %v2949, 5
        %v2952 = vor.u32 %v2948, %v2951
        %v2953 = vrot.slane %v2952, 4
        %v2955 = vshll.u32 %v2814, 16
        %v2957 = vrot.slane %v2955, 5
        %v2958 = vsel %vm1307, %v2953, %v2957
        %v2959 = vshrl.u32 %v2814, 16
        %v2961 = vrot.slane %v2959, 4
        %v2962 = vor.u32 %v2961, %v2957
        %v2963 = vrot.slane %v2962, 4
        %v2965 = vshll.u32 %v2815, 16
        %v2967 = vrot.slane %v2965, 5
        %v2968 = vsel %vm1307, %v2963, %v2967
        %v2970 = vshrl.u32 %v2816, 16
        %v2972 = vrot.slane %v2970, 4
        %v2973 = vshll.u32 %v2816, 16
        %v2975 = vrot.slane %v2973, 5
        %v2976 = vor.u32 %v2972, %v2975
        %v2977 = vrot.slane %v2976, 4
        %v2979 = vshll.u32 %v2817, 16
        %v2981 = vrot.slane %v2979, 5
        %v2982 = vsel %vm1307, %v2977, %v2981
        %v2983 = vshrl.u32 %v2817, 16
        %v2985 = vrot.slane %v2983, 4
        %v2986 = vor.u32 %v2985, %v2981
        %v2987 = vrot.slane %v2986, 4
        %v2989 = vshll.u32 %v2818, 16
        %v2991 = vrot.slane %v2989, 5
        %v2992 = vsel %vm1307, %v2987, %v2991
        %v2994 = vshrl.u32 %v2819, 16
        %v2996 = vrot.slane %v2994, 4
        %v2997 = vshll.u32 %v2819, 16
        %v2999 = vrot.slane %v2997, 5
        %v3000 = vor.u32 %v2996, %v2999
        %v3001 = vrot.slane %v3000, 4
        %v3003 = vshll.u32 %v2820, 16
        %v3005 = vrot.slane %v3003, 5
        %v3006 = vsel %vm1307, %v3001, %v3005
        %v3007 = vshrl.u32 %v2820, 16
        %v3009 = vrot.slane %v3007, 4
        %v3010 = vor.u32 %v3009, %v3005
        %v3011 = vrot.slane %v3010, 4
        %v3013 = vshll.u32 %v2821, 16
        %v3015 = vrot.slane %v3013, 5
        %v3016 = vsel %vm1307, %v3011, %v3015
        %v3018 = vshrl.u32 %v2822, 16
        %v3020 = vrot.slane %v3018, 4
        %v3021 = vshll.u32 %v2822, 16
        %v3023 = vrot.slane %v3021, 5
        %v3024 = vor.u32 %v3020, %v3023
        %v3025 = vrot.slane %v3024, 4
        %v3027 = vshll.u32 %v2823, 16
        %v3029 = vrot.slane %v3027, 5
        %v3030 = vsel %vm1307, %v3025, %v3029
        %v3031 = vshrl.u32 %v2823, 16
        %v3033 = vrot.slane %v3031, 4
        %v3034 = vor.u32 %v3033, %v3029
        %v3035 = vrot.slane %v3034, 4
        %v3037 = vshll.u32 %v2824, 16
        %v3039 = vrot.slane %v3037, 5
        %v3040 = vsel %vm1307, %v3035, %v3039
        %v3042 = vshrl.u32 %v2825, 16
        %v3044 = vrot.slane %v3042, 4
        %v3045 = vshll.u32 %v2825, 16
        %v3047 = vrot.slane %v3045, 5
        %v3048 = vor.u32 %v3044, %v3047
        %v3049 = vrot.slane %v3048, 4
        %v3051 = vshll.u32 %v2826, 16
        %v3053 = vrot.slane %v3051, 5
        %v3054 = vsel %vm1307, %v3049, %v3053
        %v3055 = vshrl.u32 %v2826, 16
        %v3057 = vrot.slane %v3055, 4
        %v3058 = vor.u32 %v3057, %v3053
        %v3059 = vrot.slane %v3058, 4
        %v3061 = vshll.u32 %v2827, 16
        %v3063 = vrot.slane %v3061, 5
        %v3064 = vsel %vm1307, %v3059, %v3063
        %v3066 = vshrl.u32 %v2828, 16
        %v3068 = vrot.slane %v3066, 4
        %v3069 = vshll.u32 %v2828, 16
        %v3071 = vrot.slane %v3069, 5
        %v3072 = vor.u32 %v3068, %v3071
        %v3073 = vrot.slane %v3072, 4
        %v3075 = vshll.u32 %v2829, 16
        %v3077 = vrot.slane %v3075, 5
        %v3078 = vsel %vm1307, %v3073, %v3077
        %v3079 = vshrl.u32 %v2829, 16
        %v3081 = vrot.slane %v3079, 4
        %v3082 = vor.u32 %v3081, %v3077
        %v3083 = vrot.slane %v3082, 4
        %v3085 = vshll.u32 %v2830, 16
        %v3087 = vrot.slane %v3085, 5
        %v3088 = vsel %vm1307, %v3083, %v3087
        %v3090 = vshrl.u32 %v2831, 16
        %v3092 = vrot.slane %v3090, 4
        %v3093 = vshll.u32 %v2831, 16
        %v3095 = vrot.slane %v3093, 5
        %v3096 = vor.u32 %v3092, %v3095
        %v3097 = vrot.slane %v3096, 4
        %v3099 = vshll.u32 %v2832, 16
        %v3101 = vrot.slane %v3099, 5
        %v3102 = vsel %vm1307, %v3097, %v3101
        %v3103 = vshrl.u32 %v2832, 16
        %v3105 = vrot.slane %v3103, 4
        %v3106 = vor.u32 %v3105, %v3101
        %v3107 = vrot.slane %v3106, 4
        %v3109 = vshll.u32 %v2833, 16
        %v3111 = vrot.slane %v3109, 5
        %v3112 = vsel %vm1307, %v3107, %v3111
        %v3114 = vshrl.u32 %v2834, 16
        %v3116 = vrot.slane %v3114, 4
        %v3117 = vshll.u32 %v2834, 16
        %v3119 = vrot.slane %v3117, 5
        %v3120 = vor.u32 %v3116, %v3119
        %v3121 = vrot.slane %v3120, 4
        %v3123 = vshll.u32 %v2835, 16
        %v3125 = vrot.slane %v3123, 5
        %v3126 = vsel %vm1307, %v3121, %v3125
        %v3127 = vshrl.u32 %v2835, 16
        %v3129 = vrot.slane %v3127, 4
        %v3130 = vor.u32 %v3129, %v3125
        %v3131 = vrot.slane %v3130, 4
        %v3133 = vshll.u32 %v2836, 16
        %v3135 = vrot.slane %v3133, 5
        %v3136 = vsel %vm1307, %v3131, %v3135
        %v3138 = vshrl.u32 %v2837, 16
        %v3140 = vrot.slane %v3138, 4
        %v3141 = vshll.u32 %v2837, 16
        %v3143 = vrot.slane %v3141, 5
        %v3144 = vor.u32 %v3140, %v3143
        %v3145 = vrot.slane %v3144, 4
        %v3147 = vshll.u32 %v2838, 16
        %v3149 = vrot.slane %v3147, 5
        %v3150 = vsel %vm1307, %v3145, %v3149
        %v3151 = vshrl.u32 %v2838, 16
        %v3153 = vrot.slane %v3151, 4
        %v3154 = vor.u32 %v3153, %v3149
        %v3155 = vrot.slane %v3154, 4
        %v3157 = vshll.u32 %v2839, 16
        %v3159 = vrot.slane %v3157, 5
        %v3160 = vsel %vm1307, %v3155, %v3159
        %v3162 = vshrl.u32 %v2840, 16
        %v3164 = vrot.slane %v3162, 4
        %v3165 = vshll.u32 %v2840, 16
        %v3167 = vrot.slane %v3165, 5
        %v3168 = vor.u32 %v3164, %v3167
        %v3169 = vrot.slane %v3168, 4
        %v3171 = vshll.u32 %v2841, 16
        %v3173 = vrot.slane %v3171, 5
        %v3174 = vsel %vm1307, %v3169, %v3173
        %v3175 = vshrl.u32 %v2841, 16
        %v3177 = vrot.slane %v3175, 4
        %v3178 = vor.u32 %v3177, %v3173
        %v3179 = vrot.slane %v3178, 4
        %v3181 = vshll.u32 %v2842, 16
        %v3183 = vrot.slane %v3181, 5
        %v3184 = vsel %vm1307, %v3179, %v3183
        %v3186 = vshrl.u32 %v2843, 16
        %v3188 = vrot.slane %v3186, 4
        %v3189 = vshll.u32 %v2843, 16
        %v3191 = vrot.slane %v3189, 5
        %v3192 = vor.u32 %v3188, %v3191
        %v3193 = vrot.slane %v3192, 4
        %v3195 = vshll.u32 %v2844, 16
        %v3197 = vrot.slane %v3195, 5
        %v3198 = vsel %vm1307, %v3193, %v3197
        %v3199 = vshrl.u32 %v2844, 16
        %v3201 = vrot.slane %v3199, 4
        %v3202 = vor.u32 %v3201, %v3197
        %v3203 = vrot.slane %v3202, 4
        %v3205 = vshll.u32 %v2845, 16
        %v3207 = vrot.slane %v3205, 5
        %v3208 = vsel %vm1307, %v3203, %v3207
        %v3210 = vshrl.u32 %v2846, 16
        %v3212 = vrot.slane %v3210, 4
        %v3213 = vshll.u32 %v2846, 16
        %v3215 = vrot.slane %v3213, 5
        %v3216 = vor.u32 %v3212, %v3215
        %v3217 = vrot.slane %v3216, 4
        %v3219 = vshll.u32 %v2847, 16
        %v3221 = vrot.slane %v3219, 5
        %v3222 = vsel %vm1307, %v3217, %v3221
        %v3223 = vshrl.u32 %v2847, 16
        %v3225 = vrot.slane %v3223, 4
        %v3226 = vor.u32 %v3225, %v3221
        %v3227 = vrot.slane %v3226, 4
        %v3229 = vshll.u32 %v2848, 16
        %v3231 = vrot.slane %v3229, 5
        %v3232 = vsel %vm1307, %v3227, %v3231
        %v3233 = vunpack.c.l.b16 %v2862
        %v3234 = vunpack.c.l.b16 %v2872
        %v3235 = vunpack.c.l.b16 %v2886
        %v3236 = vunpack.c.l.b16 %v2896
        %v3237 = vunpack.c.l.b16 %v2910
        %v3238 = vunpack.c.l.b16 %v2920
        %v3239 = vunpack.c.l.b16 %v2934
        %v3240 = vunpack.c.l.b16 %v2944
        %v3241 = vunpack.c.l.b16 %v2958
        %v3242 = vunpack.c.l.b16 %v2968
        %v3243 = vunpack.c.l.b16 %v2982
        %v3244 = vunpack.c.l.b16 %v2992
        %v3245 = vunpack.c.l.b16 %v3006
        %v3246 = vunpack.c.l.b16 %v3016
        %v3247 = vunpack.c.l.b16 %v3030
        %v3248 = vunpack.c.l.b16 %v3040
        %v3249 = vunpack.c.l.b16 %v3054
        %v3250 = vunpack.c.l.b16 %v3064
        %v3251 = vunpack.c.l.b16 %v3078
        %v3252 = vunpack.c.l.b16 %v3088
        %v3253 = vunpack.c.l.b16 %v3102
        %v3254 = vunpack.c.l.b16 %v3112
        %v3255 = vunpack.c.l.b16 %v3126
        %v3256 = vunpack.c.l.b16 %v3136
        %v3257 = vunpack.c.l.b16 %v3150
        %v3258 = vunpack.c.l.b16 %v3160
        %v3259 = vunpack.c.l.b16 %v3174
        %v3260 = vunpack.c.l.b16 %v3184
        %v3261 = vunpack.c.l.b16 %v3198
        %v3262 = vunpack.c.l.b16 %v3208
        %v3263 = vunpack.c.l.b16 %v3222
        %v3264 = vunpack.c.l.b16 %v3232
        %v3265 = vpack.c.b16 %v3234, %v3233
        %v3266 = vpack.c.b16 %v3236, %v3235
        %v3267 = vpack.c.b16 %v3238, %v3237
        %v3268 = vpack.c.b16 %v3240, %v3239
        %v3269 = vpack.c.b16 %v3242, %v3241
        %v3270 = vpack.c.b16 %v3244, %v3243
        %v3271 = vpack.c.b16 %v3246, %v3245
        %v3272 = vpack.c.b16 %v3248, %v3247
        %v3273 = vpack.c.b16 %v3250, %v3249
        %v3274 = vpack.c.b16 %v3252, %v3251
        %v3275 = vpack.c.b16 %v3254, %v3253
        %v3276 = vpack.c.b16 %v3256, %v3255
        %v3277 = vpack.c.b16 %v3258, %v3257
        %v3278 = vpack.c.b16 %v3260, %v3259
        %v3279 = vpack.c.b16 %v3262, %v3261
        %v3280 = vpack.c.b16 %v3264, %v3263
        %3297 = vst [vmem:[#allocation3 + $0x8] sm:$0xff] %v3265
        %3298 = vst [vmem:[#allocation3 + $0x20] sm:$0xff] %v3266
        %3299 = vst [vmem:[#allocation3 + $0x38] sm:$0xff] %v3267
        %3300 = vst [vmem:[#allocation3 + $0x50] sm:$0xff] %v3268
        %3301 = vst [vmem:[#allocation3 + $0x68] sm:$0xff] %v3269
        %3302 = vst [vmem:[#allocation3 + $0x80] sm:$0xff] %v3270
        %3303 = vst [vmem:[#allocation3 + $0x98] sm:$0xff] %v3271
        %3304 = vst [vmem:[#allocation3 + $0xb0] sm:$0xff] %v3272
        %3305 = vst [vmem:[#allocation3 + $0xc8] sm:$0xff] %v3273
        %3306 = vst [vmem:[#allocation3 + $0xe0] sm:$0xff] %v3274
        %3307 = vst [vmem:[#allocation3 + $0xf8] sm:$0xff] %v3275
        %3308 = vst [vmem:[#allocation3 + $0x110] sm:$0xff] %v3276
        %3309 = vst [vmem:[#allocation3 + $0x128] sm:$0xff] %v3277
        %3310 = vst [vmem:[#allocation3 + $0x140] sm:$0xff] %v3278
        %3311 = vst [vmem:[#allocation3 + $0x158] sm:$0xff] %v3279
        %3312 = vst [vmem:[#allocation3 + $0x170] sm:$0xff] %v3280
        %v3313 = vld [vmem:[%s998] sm:$0xe]
        %v3314 = vld [vmem:[%s998 + $0x4] sm:$0xf]
        %v3315 = vld [vmem:[%s998 + $0x8] sm:$0x1]
        %v3316 = vld [vmem:[%s998 + $0xc] sm:$0xe]
        %v3317 = vld [vmem:[%s998 + $0x10] sm:$0xf]
        %v3318 = vld [vmem:[%s998 + $0x14] sm:$0x1]
        %v3319 = vld [vmem:[%s998 + $0x18] sm:$0xe]
        %v3320 = vld [vmem:[%s998 + $0x1c] sm:$0xf]
        %v3321 = vld [vmem:[%s998 + $0x20] sm:$0x1]
        %v3322 = vld [vmem:[%s998 + $0x24] sm:$0xe]
        %v3323 = vld [vmem:[%s998 + $0x28] sm:$0xf]
        %v3324 = vld [vmem:[%s998 + $0x2c] sm:$0x1]
        %v3325 = vld [vmem:[%s998 + $0x30] sm:$0xe]
        %v3326 = vld [vmem:[%s998 + $0x34] sm:$0xf]
        %v3327 = vld [vmem:[%s998 + $0x38] sm:$0x1]
        %v3328 = vld [vmem:[%s998 + $0x3c] sm:$0xe]
        %v3329 = vld [vmem:[%s998 + $0x40] sm:$0xf]
        %v3330 = vld [vmem:[%s998 + $0x44] sm:$0x1]
        %v3331 = vld [vmem:[%s998 + $0x48] sm:$0xe]
        %v3332 = vld [vmem:[%s998 + $0x4c] sm:$0xf]
        %v3333 = vld [vmem:[%s998 + $0x50] sm:$0x1]
        %v3334 = vld [vmem:[%s998 + $0x54] sm:$0xe]
        %v3335 = vld [vmem:[%s998 + $0x58] sm:$0xf]
        %v3336 = vld [vmem:[%s998 + $0x5c] sm:$0x1]
        %v3337 = vld [vmem:[%s998 + $0x60] sm:$0xe]
        %v3338 = vld [vmem:[%s998 + $0x64] sm:$0xf]
        %v3339 = vld [vmem:[%s998 + $0x68] sm:$0x1]
        %v3340 = vld [vmem:[%s998 + $0x6c] sm:$0xe]
        %v3341 = vld [vmem:[%s998 + $0x70] sm:$0xf]
        %v3342 = vld [vmem:[%s998 + $0x74] sm:$0x1]
        %v3343 = vld [vmem:[%s998 + $0x78] sm:$0xe]
        %v3344 = vld [vmem:[%s998 + $0x7c] sm:$0xf]
        %v3345 = vld [vmem:[%s998 + $0x80] sm:$0x1]
        %v3346 = vld [vmem:[%s998 + $0x84] sm:$0xe]
        %v3347 = vld [vmem:[%s998 + $0x88] sm:$0xf]
        %v3348 = vld [vmem:[%s998 + $0x8c] sm:$0x1]
        %v3349 = vld [vmem:[%s998 + $0x90] sm:$0xe]
        %v3350 = vld [vmem:[%s998 + $0x94] sm:$0xf]
        %v3351 = vld [vmem:[%s998 + $0x98] sm:$0x1]
        %v3352 = vld [vmem:[%s998 + $0x9c] sm:$0xe]
        %v3353 = vld [vmem:[%s998 + $0xa0] sm:$0xf]
        %v3354 = vld [vmem:[%s998 + $0xa4] sm:$0x1]
        %v3355 = vld [vmem:[%s998 + $0xa8] sm:$0xe]
        %v3356 = vld [vmem:[%s998 + $0xac] sm:$0xf]
        %v3357 = vld [vmem:[%s998 + $0xb0] sm:$0x1]
        %v3358 = vld [vmem:[%s998 + $0xb4] sm:$0xe]
        %v3359 = vld [vmem:[%s998 + $0xb8] sm:$0xf]
        %v3360 = vld [vmem:[%s998 + $0xbc] sm:$0x1]
        %v3409 = vrot.slane %v3313, 5
        %v3410 = vrot.slane %v3409, 4
        %v3411 = vrot.slane %v3314, 5
        %v3412 = vsel %vm1870, %v3410, %v3411
        %v3413 = vrot.slane %v3411, 4
        %v3414 = vrot.slane %v3315, 5
        %v3415 = vsel %vm1870, %v3413, %v3414
        %v3416 = vrot.slane %v3316, 5
        %v3417 = vrot.slane %v3416, 4
        %v3418 = vrot.slane %v3317, 5
        %v3419 = vsel %vm1870, %v3417, %v3418
        %v3420 = vrot.slane %v3418, 4
        %v3421 = vrot.slane %v3318, 5
        %v3422 = vsel %vm1870, %v3420, %v3421
        %v3423 = vrot.slane %v3319, 5
        %v3424 = vrot.slane %v3423, 4
        %v3425 = vrot.slane %v3320, 5
        %v3426 = vsel %vm1870, %v3424, %v3425
        %v3427 = vrot.slane %v3425, 4
        %v3428 = vrot.slane %v3321, 5
        %v3429 = vsel %vm1870, %v3427, %v3428
        %v3430 = vrot.slane %v3322, 5
        %v3431 = vrot.slane %v3430, 4
        %v3432 = vrot.slane %v3323, 5
        %v3433 = vsel %vm1870, %v3431, %v3432
        %v3434 = vrot.slane %v3432, 4
        %v3435 = vrot.slane %v3324, 5
        %v3436 = vsel %vm1870, %v3434, %v3435
        %v3437 = vrot.slane %v3325, 5
        %v3438 = vrot.slane %v3437, 4
        %v3439 = vrot.slane %v3326, 5
        %v3440 = vsel %vm1870, %v3438, %v3439
        %v3441 = vrot.slane %v3439, 4
        %v3442 = vrot.slane %v3327, 5
        %v3443 = vsel %vm1870, %v3441, %v3442
        %v3444 = vrot.slane %v3328, 5
        %v3445 = vrot.slane %v3444, 4
        %v3446 = vrot.slane %v3329, 5
        %v3447 = vsel %vm1870, %v3445, %v3446
        %v3448 = vrot.slane %v3446, 4
        %v3449 = vrot.slane %v3330, 5
        %v3450 = vsel %vm1870, %v3448, %v3449
        %v3451 = vrot.slane %v3331, 5
        %v3452 = vrot.slane %v3451, 4
        %v3453 = vrot.slane %v3332, 5
        %v3454 = vsel %vm1870, %v3452, %v3453
        %v3455 = vrot.slane %v3453, 4
        %v3456 = vrot.slane %v3333, 5
        %v3457 = vsel %vm1870, %v3455, %v3456
        %v3458 = vrot.slane %v3334, 5
        %v3459 = vrot.slane %v3458, 4
        %v3460 = vrot.slane %v3335, 5
        %v3461 = vsel %vm1870, %v3459, %v3460
        %v3462 = vrot.slane %v3460, 4
        %v3463 = vrot.slane %v3336, 5
        %v3464 = vsel %vm1870, %v3462, %v3463
        %v3465 = vrot.slane %v3337, 5
        %v3466 = vrot.slane %v3465, 4
        %v3467 = vrot.slane %v3338, 5
        %v3468 = vsel %vm1870, %v3466, %v3467
        %v3469 = vrot.slane %v3467, 4
        %v3470 = vrot.slane %v3339, 5
        %v3471 = vsel %vm1870, %v3469, %v3470
        %v3472 = vrot.slane %v3340, 5
        %v3473 = vrot.slane %v3472, 4
        %v3474 = vrot.slane %v3341, 5
        %v3475 = vsel %vm1870, %v3473, %v3474
        %v3476 = vrot.slane %v3474, 4
        %v3477 = vrot.slane %v3342, 5
        %v3478 = vsel %vm1870, %v3476, %v3477
        %v3479 = vrot.slane %v3343, 5
        %v3480 = vrot.slane %v3479, 4
        %v3481 = vrot.slane %v3344, 5
        %v3482 = vsel %vm1870, %v3480, %v3481
        %v3483 = vrot.slane %v3481, 4
        %v3484 = vrot.slane %v3345, 5
        %v3485 = vsel %vm1870, %v3483, %v3484
        %v3486 = vrot.slane %v3346, 5
        %v3487 = vrot.slane %v3486, 4
        %v3488 = vrot.slane %v3347, 5
        %v3489 = vsel %vm1870, %v3487, %v3488
        %v3490 = vrot.slane %v3488, 4
        %v3491 = vrot.slane %v3348, 5
        %v3492 = vsel %vm1870, %v3490, %v3491
        %v3493 = vrot.slane %v3349, 5
        %v3494 = vrot.slane %v3493, 4
        %v3495 = vrot.slane %v3350, 5
        %v3496 = vsel %vm1870, %v3494, %v3495
        %v3497 = vrot.slane %v3495, 4
        %v3498 = vrot.slane %v3351, 5
        %v3499 = vsel %vm1870, %v3497, %v3498
        %v3500 = vrot.slane %v3352, 5
        %v3501 = vrot.slane %v3500, 4
        %v3502 = vrot.slane %v3353, 5
        %v3503 = vsel %vm1870, %v3501, %v3502
        %v3504 = vrot.slane %v3502, 4
        %v3505 = vrot.slane %v3354, 5
        %v3506 = vsel %vm1870, %v3504, %v3505
        %v3507 = vrot.slane %v3355, 5
        %v3508 = vrot.slane %v3507, 4
        %v3509 = vrot.slane %v3356, 5
        %v3510 = vsel %vm1870, %v3508, %v3509
        %v3511 = vrot.slane %v3509, 4
        %v3512 = vrot.slane %v3357, 5
        %v3513 = vsel %vm1870, %v3511, %v3512
        %v3514 = vrot.slane %v3358, 5
        %v3515 = vrot.slane %v3514, 4
        %v3516 = vrot.slane %v3359, 5
        %v3517 = vsel %vm1870, %v3515, %v3516
        %v3518 = vrot.slane %v3516, 4
        %v3519 = vrot.slane %v3360, 5
        %v3520 = vsel %vm1870, %v3518, %v3519
        %v3521 = vunpack.c.l.b16 %v3412
        %v3522 = vunpack.c.l.b16 %v3415
        %v3523 = vunpack.c.l.b16 %v3419
        %v3524 = vunpack.c.l.b16 %v3422
        %v3525 = vunpack.c.l.b16 %v3426
        %v3526 = vunpack.c.l.b16 %v3429
        %v3527 = vunpack.c.l.b16 %v3433
        %v3528 = vunpack.c.l.b16 %v3436
        %v3529 = vunpack.c.l.b16 %v3440
        %v3530 = vunpack.c.l.b16 %v3443
        %v3531 = vunpack.c.l.b16 %v3447
        %v3532 = vunpack.c.l.b16 %v3450
        %v3533 = vunpack.c.l.b16 %v3454
        %v3534 = vunpack.c.l.b16 %v3457
        %v3535 = vunpack.c.l.b16 %v3461
        %v3536 = vunpack.c.l.b16 %v3464
        %v3537 = vunpack.c.l.b16 %v3468
        %v3538 = vunpack.c.l.b16 %v3471
        %v3539 = vunpack.c.l.b16 %v3475
        %v3540 = vunpack.c.l.b16 %v3478
        %v3541 = vunpack.c.l.b16 %v3482
        %v3542 = vunpack.c.l.b16 %v3485
        %v3543 = vunpack.c.l.b16 %v3489
        %v3544 = vunpack.c.l.b16 %v3492
        %v3545 = vunpack.c.l.b16 %v3496
        %v3546 = vunpack.c.l.b16 %v3499
        %v3547 = vunpack.c.l.b16 %v3503
        %v3548 = vunpack.c.l.b16 %v3506
        %v3549 = vunpack.c.l.b16 %v3510
        %v3550 = vunpack.c.l.b16 %v3513
        %v3551 = vunpack.c.l.b16 %v3517
        %v3552 = vunpack.c.l.b16 %v3520
        %v3553 = vpack.c.b16 %v3522, %v3521
        %v3554 = vpack.c.b16 %v3524, %v3523
        %v3555 = vpack.c.b16 %v3526, %v3525
        %v3556 = vpack.c.b16 %v3528, %v3527
        %v3557 = vpack.c.b16 %v3530, %v3529
        %v3558 = vpack.c.b16 %v3532, %v3531
        %v3559 = vpack.c.b16 %v3534, %v3533
        %v3560 = vpack.c.b16 %v3536, %v3535
        %v3561 = vpack.c.b16 %v3538, %v3537
        %v3562 = vpack.c.b16 %v3540, %v3539
        %v3563 = vpack.c.b16 %v3542, %v3541
        %v3564 = vpack.c.b16 %v3544, %v3543
        %v3565 = vpack.c.b16 %v3546, %v3545
        %v3566 = vpack.c.b16 %v3548, %v3547
        %v3567 = vpack.c.b16 %v3550, %v3549
        %v3568 = vpack.c.b16 %v3552, %v3551
        %3585 = vst [vmem:[#allocation3 + $0x10] sm:$0xff] %v3553
        %3586 = vst [vmem:[#allocation3 + $0x28] sm:$0xff] %v3554
        %3587 = vst [vmem:[#allocation3 + $0x40] sm:$0xff] %v3555
        %3588 = vst [vmem:[#allocation3 + $0x58] sm:$0xff] %v3556
        %3589 = vst [vmem:[#allocation3 + $0x70] sm:$0xff] %v3557
        %3590 = vst [vmem:[#allocation3 + $0x88] sm:$0xff] %v3558
        %3591 = vst [vmem:[#allocation3 + $0xa0] sm:$0xff] %v3559
        %3592 = vst [vmem:[#allocation3 + $0xb8] sm:$0xff] %v3560
        %3593 = vst [vmem:[#allocation3 + $0xd0] sm:$0xff] %v3561
        %3594 = vst [vmem:[#allocation3 + $0xe8] sm:$0xff] %v3562
        %3595 = vst [vmem:[#allocation3 + $0x100] sm:$0xff] %v3563
        %3596 = vst [vmem:[#allocation3 + $0x118] sm:$0xff] %v3564
        %3597 = vst [vmem:[#allocation3 + $0x130] sm:$0xff] %v3565
        %3598 = vst [vmem:[#allocation3 + $0x148] sm:$0xff] %v3566
        %3599 = vst [vmem:[#allocation3 + $0x160] sm:$0xff] %v3567
        %3600 = vst [vmem:[#allocation3 + $0x178] sm:$0xff] %v3568
        %v3601 = vld [vmem:[#allocation3] sm:$0xff]
        %v3602 = vld [vmem:[#allocation3 + $0x8] sm:$0xff]
        %v3603 = vld [vmem:[#allocation3 + $0x10] sm:$0xff]
        %v3604 = vld [vmem:[#allocation3 + $0x18] sm:$0xff]
        %v3605 = vld [vmem:[#allocation3 + $0x20] sm:$0xff]
        %v3606 = vld [vmem:[#allocation3 + $0x28] sm:$0xff]
        %v3607 = vld [vmem:[#allocation3 + $0x30] sm:$0xff]
        %v3608 = vld [vmem:[#allocation3 + $0x38] sm:$0xff]
        %v3609 = vld [vmem:[#allocation3 + $0x40] sm:$0xff]
        %v3610 = vld [vmem:[#allocation3 + $0x48] sm:$0xff]
        %v3611 = vld [vmem:[#allocation3 + $0x50] sm:$0xff]
        %v3612 = vld [vmem:[#allocation3 + $0x58] sm:$0xff]
        %v3613 = vld [vmem:[#allocation3 + $0x60] sm:$0xff]
        %v3614 = vld [vmem:[#allocation3 + $0x68] sm:$0xff]
        %v3615 = vld [vmem:[#allocation3 + $0x70] sm:$0xff]
        %v3616 = vld [vmem:[#allocation3 + $0x78] sm:$0xff]
        %v3617 = vld [vmem:[#allocation3 + $0x80] sm:$0xff]
        %v3618 = vld [vmem:[#allocation3 + $0x88] sm:$0xff]
        %v3619 = vld [vmem:[#allocation3 + $0x90] sm:$0xff]
        %v3620 = vld [vmem:[#allocation3 + $0x98] sm:$0xff]
        %v3621 = vld [vmem:[#allocation3 + $0xa0] sm:$0xff]
        %v3622 = vld [vmem:[#allocation3 + $0xa8] sm:$0xff]
        %v3623 = vld [vmem:[#allocation3 + $0xb0] sm:$0xff]
        %v3624 = vld [vmem:[#allocation3 + $0xb8] sm:$0xff]
        %v3625 = vld [vmem:[#allocation3 + $0xc0] sm:$0xff]
        %v3626 = vld [vmem:[#allocation3 + $0xc8] sm:$0xff]
        %v3627 = vld [vmem:[#allocation3 + $0xd0] sm:$0xff]
        %v3628 = vld [vmem:[#allocation3 + $0xd8] sm:$0xff]
        %v3629 = vld [vmem:[#allocation3 + $0xe0] sm:$0xff]
        %v3630 = vld [vmem:[#allocation3 + $0xe8] sm:$0xff]
        %v3631 = vld [vmem:[#allocation3 + $0xf0] sm:$0xff]
        %v3632 = vld [vmem:[#allocation3 + $0xf8] sm:$0xff]
        %v3633 = vld [vmem:[#allocation3 + $0x100] sm:$0xff]
        %v3634 = vld [vmem:[#allocation3 + $0x108] sm:$0xff]
        %v3635 = vld [vmem:[#allocation3 + $0x110] sm:$0xff]
        %v3636 = vld [vmem:[#allocation3 + $0x118] sm:$0xff]
        %v3637 = vld [vmem:[#allocation3 + $0x120] sm:$0xff]
        %v3638 = vld [vmem:[#allocation3 + $0x128] sm:$0xff]
        %v3639 = vld [vmem:[#allocation3 + $0x130] sm:$0xff]
        %v3640 = vld [vmem:[#allocation3 + $0x138] sm:$0xff]
        %v3641 = vld [vmem:[#allocation3 + $0x140] sm:$0xff]
        %v3642 = vld [vmem:[#allocation3 + $0x148] sm:$0xff]
        %v3643 = vld [vmem:[#allocation3 + $0x150] sm:$0xff]
        %v3644 = vld [vmem:[#allocation3 + $0x158] sm:$0xff]
        %v3645 = vld [vmem:[#allocation3 + $0x160] sm:$0xff]
        %v3646 = vld [vmem:[#allocation3 + $0x168] sm:$0xff]
        %v3647 = vld [vmem:[#allocation3 + $0x170] sm:$0xff]
        %v3648 = vld [vmem:[#allocation3 + $0x178] sm:$0xff]
        %s3649 = scalar_lea.vmem [#allocation7], 192
        %v3650 = vld [vmem:[%s3649] sm:$0xf]
        %v3651 = vld [vmem:[%s3649 + $0x4] sm:$0xf]
        %v3652 = vld [vmem:[%s3649 + $0x8] sm:$0xf]
        %v3653 = vld [vmem:[%s3649 + $0xc] sm:$0xf]
        %v3654 = vld [vmem:[%s3649 + $0x10] sm:$0xf]
        %v3655 = vld [vmem:[%s3649 + $0x14] sm:$0xf]
        %v3656 = vld [vmem:[%s3649 + $0x18] sm:$0xf]
        %v3657 = vld [vmem:[%s3649 + $0x1c] sm:$0xf]
        %v3658 = vld [vmem:[%s3649 + $0x20] sm:$0xf]
        %v3659 = vld [vmem:[%s3649 + $0x24] sm:$0xf]
        %v3660 = vld [vmem:[%s3649 + $0x28] sm:$0xf]
        %v3661 = vld [vmem:[%s3649 + $0x2c] sm:$0xf]
        %v3662 = vld [vmem:[%s3649 + $0x30] sm:$0xf]
        %v3663 = vld [vmem:[%s3649 + $0x34] sm:$0xf]
        %v3664 = vld [vmem:[%s3649 + $0x38] sm:$0xf]
        %v3665 = vld [vmem:[%s3649 + $0x3c] sm:$0xf]
        %v3666 = vld [vmem:[%s3649 + $0x40] sm:$0xf]
        %v3667 = vld [vmem:[%s3649 + $0x44] sm:$0xf]
        %v3668 = vld [vmem:[%s3649 + $0x48] sm:$0xf]
        %v3669 = vld [vmem:[%s3649 + $0x4c] sm:$0xf]
        %v3670 = vld [vmem:[%s3649 + $0x50] sm:$0xf]
        %v3671 = vld [vmem:[%s3649 + $0x54] sm:$0xf]
        %v3672 = vld [vmem:[%s3649 + $0x58] sm:$0xf]
        %v3673 = vld [vmem:[%s3649 + $0x5c] sm:$0xf]
        %v3674 = vld [vmem:[%s3649 + $0x60] sm:$0xf]
        %v3675 = vld [vmem:[%s3649 + $0x64] sm:$0xf]
        %v3676 = vld [vmem:[%s3649 + $0x68] sm:$0xf]
        %v3677 = vld [vmem:[%s3649 + $0x6c] sm:$0xf]
        %v3678 = vld [vmem:[%s3649 + $0x70] sm:$0xf]
        %v3679 = vld [vmem:[%s3649 + $0x74] sm:$0xf]
        %v3680 = vld [vmem:[%s3649 + $0x78] sm:$0xf]
        %v3681 = vld [vmem:[%s3649 + $0x7c] sm:$0xf]
        %v3682 = vld [vmem:[%s3649 + $0x80] sm:$0xf]
        %v3683 = vld [vmem:[%s3649 + $0x84] sm:$0xf]
        %v3684 = vld [vmem:[%s3649 + $0x88] sm:$0xf]
        %v3685 = vld [vmem:[%s3649 + $0x8c] sm:$0xf]
        %v3686 = vld [vmem:[%s3649 + $0x90] sm:$0xf]
        %v3687 = vld [vmem:[%s3649 + $0x94] sm:$0xf]
        %v3688 = vld [vmem:[%s3649 + $0x98] sm:$0xf]
        %v3689 = vld [vmem:[%s3649 + $0x9c] sm:$0xf]
        %v3690 = vld [vmem:[%s3649 + $0xa0] sm:$0xf]
        %v3691 = vld [vmem:[%s3649 + $0xa4] sm:$0xf]
        %v3692 = vld [vmem:[%s3649 + $0xa8] sm:$0xf]
        %v3693 = vld [vmem:[%s3649 + $0xac] sm:$0xf]
        %v3694 = vld [vmem:[%s3649 + $0xb0] sm:$0xf]
        %v3695 = vld [vmem:[%s3649 + $0xb4] sm:$0xf]
        %v3696 = vld [vmem:[%s3649 + $0xb8] sm:$0xf]
        %v3697 = vld [vmem:[%s3649 + $0xbc] sm:$0xf]
        %v3746 = vunpack.c.l.b16 %v3650
        %v3747 = vunpack.c.l.b16 %v3651
        %v3748 = vunpack.c.l.b16 %v3652
        %v3749 = vunpack.c.l.b16 %v3653
        %v3750 = vunpack.c.l.b16 %v3654
        %v3751 = vunpack.c.l.b16 %v3655
        %v3752 = vunpack.c.l.b16 %v3656
        %v3753 = vunpack.c.l.b16 %v3657
        %v3754 = vunpack.c.l.b16 %v3658
        %v3755 = vunpack.c.l.b16 %v3659
        %v3756 = vunpack.c.l.b16 %v3660
        %v3757 = vunpack.c.l.b16 %v3661
        %v3758 = vunpack.c.l.b16 %v3662
        %v3759 = vunpack.c.l.b16 %v3663
        %v3760 = vunpack.c.l.b16 %v3664
        %v3761 = vunpack.c.l.b16 %v3665
        %v3762 = vunpack.c.l.b16 %v3666
        %v3763 = vunpack.c.l.b16 %v3667
        %v3764 = vunpack.c.l.b16 %v3668
        %v3765 = vunpack.c.l.b16 %v3669
        %v3766 = vunpack.c.l.b16 %v3670
        %v3767 = vunpack.c.l.b16 %v3671
        %v3768 = vunpack.c.l.b16 %v3672
        %v3769 = vunpack.c.l.b16 %v3673
        %v3770 = vunpack.c.l.b16 %v3674
        %v3771 = vunpack.c.l.b16 %v3675
        %v3772 = vunpack.c.l.b16 %v3676
        %v3773 = vunpack.c.l.b16 %v3677
        %v3774 = vunpack.c.l.b16 %v3678
        %v3775 = vunpack.c.l.b16 %v3679
        %v3776 = vunpack.c.l.b16 %v3680
        %v3777 = vunpack.c.l.b16 %v3681
        %v3778 = vunpack.c.l.b16 %v3682
        %v3779 = vunpack.c.l.b16 %v3683
        %v3780 = vunpack.c.l.b16 %v3684
        %v3781 = vunpack.c.l.b16 %v3685
        %v3782 = vunpack.c.l.b16 %v3686
        %v3783 = vunpack.c.l.b16 %v3687
        %v3784 = vunpack.c.l.b16 %v3688
        %v3785 = vunpack.c.l.b16 %v3689
        %v3786 = vunpack.c.l.b16 %v3690
        %v3787 = vunpack.c.l.b16 %v3691
        %v3788 = vunpack.c.l.b16 %v3692
        %v3789 = vunpack.c.l.b16 %v3693
        %v3790 = vunpack.c.l.b16 %v3694
        %v3791 = vunpack.c.l.b16 %v3695
        %v3792 = vunpack.c.l.b16 %v3696
        %v3793 = vunpack.c.l.b16 %v3697
        %v3794 = vpack.c.b16 %v3747, %v3746
        %v3795 = vpack.c.b16 %v3749, %v3748
        %v3796 = vpack.c.b16 %v3751, %v3750
        %v3797 = vpack.c.b16 %v3753, %v3752
        %v3798 = vpack.c.b16 %v3755, %v3754
        %v3799 = vpack.c.b16 %v3757, %v3756
        %v3800 = vpack.c.b16 %v3759, %v3758
        %v3801 = vpack.c.b16 %v3761, %v3760
        %v3802 = vpack.c.b16 %v3763, %v3762
        %v3803 = vpack.c.b16 %v3765, %v3764
        %v3804 = vpack.c.b16 %v3767, %v3766
        %v3805 = vpack.c.b16 %v3769, %v3768
        %v3806 = vpack.c.b16 %v3771, %v3770
        %v3807 = vpack.c.b16 %v3773, %v3772
        %v3808 = vpack.c.b16 %v3775, %v3774
        %v3809 = vpack.c.b16 %v3777, %v3776
        %v3810 = vpack.c.b16 %v3779, %v3778
        %v3811 = vpack.c.b16 %v3781, %v3780
        %v3812 = vpack.c.b16 %v3783, %v3782
        %v3813 = vpack.c.b16 %v3785, %v3784
        %v3814 = vpack.c.b16 %v3787, %v3786
        %v3815 = vpack.c.b16 %v3789, %v3788
        %v3816 = vpack.c.b16 %v3791, %v3790
        %v3817 = vpack.c.b16 %v3793, %v3792
        %3842 = vmatprep.subr.bf16.mxu0 0
        %3843 = vmatpush1.bf16.msra.mxu0 %v3794
        %3844 = vmatprep.subr.bf16.mxu0 0
        %3845 = vmatpush1.bf16.msra.mxu0 %v3795
        %3846 = vmatprep.subr.bf16.mxu0 0
        %3847 = vmatpush1.bf16.msra.mxu0 %v3796
        %3848 = vmatprep.subr.bf16.mxu0 0
        %3849 = vmatpush1.bf16.msra.mxu0 %v3797
        %3850 = vmatprep.subr.bf16.mxu0 0
        %3851 = vmatpush1.bf16.msra.mxu0 %v3798
        %3852 = vmatprep.subr.bf16.mxu0 0
        %3853 = vmatpush1.bf16.msra.mxu0 %v3799
        %3854 = vmatprep.subr.bf16.mxu0 0
        %3855 = vmatpush1.bf16.msra.mxu0 %v3800
        %3856 = vmatprep.subr.bf16.mxu0 0
        %3857 = vmatpush1.bf16.msra.mxu0 %v3801
        %3858 = vmatprep.subr.bf16.mxu0 0
        %3859 = vmatpush1.bf16.msra.mxu0 %v3802
        %3860 = vmatprep.subr.bf16.mxu0 0
        %3861 = vmatpush1.bf16.msra.mxu0 %v3803
        %3862 = vmatprep.subr.bf16.mxu0 0
        %3863 = vmatpush1.bf16.msra.mxu0 %v3804
        %3864 = vmatprep.subr.bf16.mxu0 0
        %3865 = vmatpush1.bf16.msra.mxu0 %v3805
        %3866 = vmatprep.subr.bf16.mxu0 0
        %3867 = vmatpush1.bf16.msra.mxu0 %v3806
        %3868 = vmatprep.subr.bf16.mxu0 0
        %3869 = vmatpush1.bf16.msra.mxu0 %v3807
        %3870 = vmatprep.subr.bf16.mxu0 0
        %3871 = vmatpush1.bf16.msra.mxu0 %v3808
        %3872 = vmatprep.subr.bf16.mxu0 0
        %3873 = vmatpush1.bf16.msra.mxu0 %v3809
        %3874 = vmatprep.mubr.bf16.mxu0 %v3602
        %3875 = vmatmul.mubr.bf16.gmra.mrb[0].mxu0 %v3601
        %v3876 = vpop.f32.mrb[0].mxu0
        %v3877 = vadd.f32 0.0, %v3876
        %v3878 = vpop.f32.mrb[0].mxu0
        %v3879 = vpop.f32.mrb[0].mxu0
        %v3880 = vadd.f32 0.0, %v3879
        %v3881 = vpop.f32.mrb[0].mxu0
        %3882 = vmatprep.mubr.bf16.mxu0 %v3605
        %3883 = vmatmul.mubr.bf16.gmra.mrb[0].mxu0 %v3604
        %v3884 = vpop.f32.mrb[0].mxu0
        %v3885 = vadd.f32 0.0, %v3884
        %v3886 = vpop.f32.mrb[0].mxu0
        %v3887 = vpop.f32.mrb[0].mxu0
        %v3888 = vadd.f32 0.0, %v3887
        %v3889 = vpop.f32.mrb[0].mxu0
        %3890 = vmatprep.mubr.bf16.mxu0 %v3608
        %3891 = vmatmul.mubr.bf16.gmra.mrb[0].mxu0 %v3607
        %v3892 = vpop.f32.mrb[0].mxu0
        %v3893 = vadd.f32 0.0, %v3892
        %v3894 = vpop.f32.mrb[0].mxu0
        %v3895 = vpop.f32.mrb[0].mxu0
        %v3896 = vadd.f32 0.0, %v3895
        %v3897 = vpop.f32.mrb[0].mxu0
        %3898 = vmatprep.mubr.bf16.mxu0 %v3611
        %3899 = vmatmul.mubr.bf16.gmra.mrb[0].mxu0 %v3610
        %v3900 = vpop.f32.mrb[0].mxu0
        %v3901 = vadd.f32 0.0, %v3900
        %v3902 = vpop.f32.mrb[0].mxu0
        %v3903 = vpop.f32.mrb[0].mxu0
        %v3904 = vadd.f32 0.0, %v3903
        %v3905 = vpop.f32.mrb[0].mxu0
        %3906 = vmatprep.mubr.bf16.mxu0 %v3614
        %3907 = vmatmul.mubr.bf16.gmra.mrb[0].mxu0 %v3613
        %v3908 = vpop.f32.mrb[0].mxu0
        %v3909 = vadd.f32 0.0, %v3908
        %v3910 = vpop.f32.mrb[0].mxu0
        %v3911 = vpop.f32.mrb[0].mxu0
        %v3912 = vadd.f32 0.0, %v3911
        %v3913 = vpop.f32.mrb[0].mxu0
        %3914 = vmatprep.mubr.bf16.mxu0 %v3617
        %3915 = vmatmul.mubr.bf16.gmra.mrb[0].mxu0 %v3616
        %v3916 = vpop.f32.mrb[0].mxu0
        %v3917 = vadd.f32 0.0, %v3916
        %v3918 = vpop.f32.mrb[0].mxu0
        %v3919 = vpop.f32.mrb[0].mxu0
        %v3920 = vadd.f32 0.0, %v3919
        %v3921 = vpop.f32.mrb[0].mxu0
        %3922 = vmatprep.mubr.bf16.mxu0 %v3620
        %3923 = vmatmul.mubr.bf16.gmra.mrb[0].mxu0 %v3619
        %v3924 = vpop.f32.mrb[0].mxu0
        %v3925 = vadd.f32 0.0, %v3924
        %v3926 = vpop.f32.mrb[0].mxu0
        %v3927 = vpop.f32.mrb[0].mxu0
        %v3928 = vadd.f32 0.0, %v3927
        %v3929 = vpop.f32.mrb[0].mxu0
        %3930 = vmatprep.mubr.bf16.mxu0 %v3623
        %3931 = vmatmul.mubr.bf16.gmra.mrb[0].mxu0 %v3622
        %v3932 = vpop.f32.mrb[0].mxu0
        %v3933 = vadd.f32 0.0, %v3932
        %v3934 = vpop.f32.mrb[0].mxu0
        %v3935 = vpop.f32.mrb[0].mxu0
        %v3936 = vadd.f32 0.0, %v3935
        %v3937 = vpop.f32.mrb[0].mxu0
        %3938 = vmatprep.mubr.bf16.mxu0 %v3626
        %3939 = vmatmul.mubr.bf16.gmra.mrb[0].mxu0 %v3625
        %v3940 = vpop.f32.mrb[0].mxu0
        %v3941 = vadd.f32 0.0, %v3940
        %v3942 = vpop.f32.mrb[0].mxu0
        %v3943 = vpop.f32.mrb[0].mxu0
        %v3944 = vadd.f32 0.0, %v3943
        %v3945 = vpop.f32.mrb[0].mxu0
        %3946 = vmatprep.mubr.bf16.mxu0 %v3629
        %3947 = vmatmul.mubr.bf16.gmra.mrb[0].mxu0 %v3628
        %v3948 = vpop.f32.mrb[0].mxu0
        %v3949 = vadd.f32 0.0, %v3948
        %v3950 = vpop.f32.mrb[0].mxu0
        %v3951 = vpop.f32.mrb[0].mxu0
        %v3952 = vadd.f32 0.0, %v3951
        %v3953 = vpop.f32.mrb[0].mxu0
        %3954 = vmatprep.mubr.bf16.mxu0 %v3632
        %3955 = vmatmul.mubr.bf16.gmra.mrb[0].mxu0 %v3631
        %v3956 = vpop.f32.mrb[0].mxu0
        %v3957 = vadd.f32 0.0, %v3956
        %v3958 = vpop.f32.mrb[0].mxu0
        %v3959 = vpop.f32.mrb[0].mxu0
        %v3960 = vadd.f32 0.0, %v3959
        %v3961 = vpop.f32.mrb[0].mxu0
        %3962 = vmatprep.mubr.bf16.mxu0 %v3635
        %3963 = vmatmul.mubr.bf16.gmra.mrb[0].mxu0 %v3634
        %v3964 = vpop.f32.mrb[0].mxu0
        %v3965 = vadd.f32 0.0, %v3964
        %v3966 = vpop.f32.mrb[0].mxu0
        %v3967 = vpop.f32.mrb[0].mxu0
        %v3968 = vadd.f32 0.0, %v3967
        %v3969 = vpop.f32.mrb[0].mxu0
        %3970 = vmatprep.mubr.bf16.mxu0 %v3638
        %3971 = vmatmul.mubr.bf16.gmra.mrb[0].mxu0 %v3637
        %v3972 = vpop.f32.mrb[0].mxu0
        %v3973 = vadd.f32 0.0, %v3972
        %v3974 = vpop.f32.mrb[0].mxu0
        %v3975 = vpop.f32.mrb[0].mxu0
        %v3976 = vadd.f32 0.0, %v3975
        %v3977 = vpop.f32.mrb[0].mxu0
        %3978 = vmatprep.mubr.bf16.mxu0 %v3641
        %3979 = vmatmul.mubr.bf16.gmra.mrb[0].mxu0 %v3640
        %v3980 = vpop.f32.mrb[0].mxu0
        %v3981 = vadd.f32 0.0, %v3980
        %v3982 = vpop.f32.mrb[0].mxu0
        %v3983 = vpop.f32.mrb[0].mxu0
        %v3984 = vadd.f32 0.0, %v3983
        %v3985 = vpop.f32.mrb[0].mxu0
        %3986 = vmatprep.mubr.bf16.mxu0 %v3644
        %3987 = vmatmul.mubr.bf16.gmra.mrb[0].mxu0 %v3643
        %v3988 = vpop.f32.mrb[0].mxu0
        %v3989 = vadd.f32 0.0, %v3988
        %v3990 = vpop.f32.mrb[0].mxu0
        %v3991 = vpop.f32.mrb[0].mxu0
        %v3992 = vadd.f32 0.0, %v3991
        %v3993 = vpop.f32.mrb[0].mxu0
        %3994 = vmatprep.mubr.bf16.mxu0 %v3647
        %3995 = vmatmul.mubr.bf16.gmra.mrb[0].mxu0 %v3646
        %v3996 = vpop.f32.mrb[0].mxu0
        %v3997 = vadd.f32 0.0, %v3996
        %v3998 = vpop.f32.mrb[0].mxu0
        %v3999 = vpop.f32.mrb[0].mxu0
        %v4000 = vadd.f32 0.0, %v3999
        %v4001 = vpop.f32.mrb[0].mxu0
        %4002 = vdwg.mxu0
        %4003 = vmatprep.subr.bf16.mxu0 0
        %4004 = vmatpush1.bf16.msra.mxu0 %v3810
        %4005 = vmatprep.subr.bf16.mxu0 0
        %4006 = vmatpush1.bf16.msra.mxu0 %v3811
        %4007 = vmatprep.subr.bf16.mxu0 0
        %4008 = vmatpush1.bf16.msra.mxu0 %v3812
        %4009 = vmatprep.subr.bf16.mxu0 0
        %4010 = vmatpush1.bf16.msra.mxu0 %v3813
        %4011 = vmatprep.subr.bf16.mxu0 0
        %4012 = vmatpush1.bf16.msra.mxu0 %v3814
        %4013 = vmatprep.subr.bf16.mxu0 0
        %4014 = vmatpush1.bf16.msra.mxu0 %v3815
        %4015 = vmatprep.subr.bf16.mxu0 0
        %4016 = vmatpush1.bf16.msra.mxu0 %v3816
        %4017 = vmatprep.subr.bf16.mxu0 0
        %4018 = vmatpush1.bf16.msra.mxu0 %v3817
        %4019 = vmatprep.subr.bf16.mxu0 0
        %4020 = vmatpush1.bf16.msra.mxu0 0
        %4021 = vmatprep.subr.bf16.mxu0 0
        %4022 = vmatpush1.bf16.msra.mxu0 0
        %4023 = vmatprep.subr.bf16.mxu0 0
        %4024 = vmatpush1.bf16.msra.mxu0 0
        %4025 = vmatprep.subr.bf16.mxu0 0
        %4026 = vmatpush1.bf16.msra.mxu0 0
        %4027 = vmatprep.subr.bf16.mxu0 0
        %4028 = vmatpush1.bf16.msra.mxu0 0
        %4029 = vmatprep.subr.bf16.mxu0 0
        %4030 = vmatpush1.bf16.msra.mxu0 0
        %4031 = vmatprep.subr.bf16.mxu0 0
        %4032 = vmatpush1.bf16.msra.mxu0 0
        %4033 = vmatprep.subr.bf16.mxu0 0
        %4034 = vmatpush1.bf16.msra.mxu0 0
        %4035 = vmatprep.mubr.bf16.mxu0 0
        %4036 = vmatmul.mubr.bf16.gmra.mrb[0].mxu0 %v3603
        %v4037 = vpop.f32.mrb[0].mxu0
        %v4038 = vadd.f32 %v3877, %v4037
        %v4039 = vpop.f32.mrb[0].mxu0
        %v4040 = vpop.f32.mrb[0].mxu0
        %v4041 = vadd.f32 %v3880, %v4040
        %v4042 = vpop.f32.mrb[0].mxu0
        %4043 = vmatprep.mubr.bf16.mxu0 0
        %4044 = vmatmul.mubr.bf16.gmra.mrb[0].mxu0 %v3606
        %v4045 = vpop.f32.mrb[0].mxu0
        %v4046 = vadd.f32 %v3885, %v4045
        %v4047 = vpop.f32.mrb[0].mxu0
        %v4048 = vpop.f32.mrb[0].mxu0
        %v4049 = vadd.f32 %v3888, %v4048
        %v4050 = vpop.f32.mrb[0].mxu0
        %4051 = vmatprep.mubr.bf16.mxu0 0
        %4052 = vmatmul.mubr.bf16.gmra.mrb[0].mxu0 %v3609
        %v4053 = vpop.f32.mrb[0].mxu0
        %v4054 = vadd.f32 %v3893, %v4053
        %v4055 = vpop.f32.mrb[0].mxu0
        %v4056 = vpop.f32.mrb[0].mxu0
        %v4057 = vadd.f32 %v3896, %v4056
        %v4058 = vpop.f32.mrb[0].mxu0
        %4059 = vmatprep.mubr.bf16.mxu0 0
        %4060 = vmatmul.mubr.bf16.gmra.mrb[0].mxu0 %v3612
        %v4061 = vpop.f32.mrb[0].mxu0
        %v4062 = vadd.f32 %v3901, %v4061
        %v4063 = vpop.f32.mrb[0].mxu0
        %v4064 = vpop.f32.mrb[0].mxu0
        %v4065 = vadd.f32 %v3904, %v4064
        %v4066 = vpop.f32.mrb[0].mxu0
        %4067 = vmatprep.mubr.bf16.mxu0 0
        %4068 = vmatmul.mubr.bf16.gmra.mrb[0].mxu0 %v3615
        %v4069 = vpop.f32.mrb[0].mxu0
        %v4070 = vadd.f32 %v3909, %v4069
        %v4071 = vpop.f32.mrb[0].mxu0
        %v4072 = vpop.f32.mrb[0].mxu0
        %v4073 = vadd.f32 %v3912, %v4072
        %v4074 = vpop.f32.mrb[0].mxu0
        %4075 = vmatprep.mubr.bf16.mxu0 0
        %4076 = vmatmul.mubr.bf16.gmra.mrb[0].mxu0 %v3618
        %v4077 = vpop.f32.mrb[0].mxu0
        %v4078 = vadd.f32 %v3917, %v4077
        %v4079 = vpop.f32.mrb[0].mxu0
        %v4080 = vpop.f32.mrb[0].mxu0
        %v4081 = vadd.f32 %v3920, %v4080
        %v4082 = vpop.f32.mrb[0].mxu0
        %4083 = vmatprep.mubr.bf16.mxu0 0
        %4084 = vmatmul.mubr.bf16.gmra.mrb[0].mxu0 %v3621
        %v4085 = vpop.f32.mrb[0].mxu0
        %v4086 = vadd.f32 %v3925, %v4085
        %v4087 = vpop.f32.mrb[0].mxu0
        %v4088 = vpop.f32.mrb[0].mxu0
        %v4089 = vadd.f32 %v3928, %v4088
        %v4090 = vpop.f32.mrb[0].mxu0
        %4091 = vmatprep.mubr.bf16.mxu0 0
        %4092 = vmatmul.mubr.bf16.gmra.mrb[0].mxu0 %v3624
        %v4093 = vpop.f32.mrb[0].mxu0
        %v4094 = vadd.f32 %v3933, %v4093
        %v4095 = vpop.f32.mrb[0].mxu0
        %v4096 = vpop.f32.mrb[0].mxu0
        %v4097 = vadd.f32 %v3936, %v4096
        %v4098 = vpop.f32.mrb[0].mxu0
        %4099 = vmatprep.mubr.bf16.mxu0 0
        %4100 = vmatmul.mubr.bf16.gmra.mrb[0].mxu0 %v3627
        %v4101 = vpop.f32.mrb[0].mxu0
        %v4102 = vadd.f32 %v3941, %v4101
        %v4103 = vpop.f32.mrb[0].mxu0
        %v4104 = vpop.f32.mrb[0].mxu0
        %v4105 = vadd.f32 %v3944, %v4104
        %v4106 = vpop.f32.mrb[0].mxu0
        %4107 = vmatprep.mubr.bf16.mxu0 0
        %4108 = vmatmul.mubr.bf16.gmra.mrb[0].mxu0 %v3630
        %v4109 = vpop.f32.mrb[0].mxu0
        %v4110 = vadd.f32 %v3949, %v4109
        %v4111 = vpop.f32.mrb[0].mxu0
        %v4112 = vpop.f32.mrb[0].mxu0
        %v4113 = vadd.f32 %v3952, %v4112
        %v4114 = vpop.f32.mrb[0].mxu0
        %4115 = vmatprep.mubr.bf16.mxu0 0
        %4116 = vmatmul.mubr.bf16.gmra.mrb[0].mxu0 %v3633
        %v4117 = vpop.f32.mrb[0].mxu0
        %v4118 = vadd.f32 %v3957, %v4117
        %v4119 = vpop.f32.mrb[0].mxu0
        %v4120 = vpop.f32.mrb[0].mxu0
        %v4121 = vadd.f32 %v3960, %v4120
        %v4122 = vpop.f32.mrb[0].mxu0
        %4123 = vmatprep.mubr.bf16.mxu0 0
        %4124 = vmatmul.mubr.bf16.gmra.mrb[0].mxu0 %v3636
        %v4125 = vpop.f32.mrb[0].mxu0
        %v4126 = vadd.f32 %v3965, %v4125
        %v4127 = vpop.f32.mrb[0].mxu0
        %v4128 = vpop.f32.mrb[0].mxu0
        %v4129 = vadd.f32 %v3968, %v4128
        %v4130 = vpop.f32.mrb[0].mxu0
        %4131 = vmatprep.mubr.bf16.mxu0 0
        %4132 = vmatmul.mubr.bf16.gmra.mrb[0].mxu0 %v3639
        %v4133 = vpop.f32.mrb[0].mxu0
        %v4134 = vadd.f32 %v3973, %v4133
        %v4135 = vpop.f32.mrb[0].mxu0
        %v4136 = vpop.f32.mrb[0].mxu0
        %v4137 = vadd.f32 %v3976, %v4136
        %v4138 = vpop.f32.mrb[0].mxu0
        %4139 = vmatprep.mubr.bf16.mxu0 0
        %4140 = vmatmul.mubr.bf16.gmra.mrb[0].mxu0 %v3642
        %v4141 = vpop.f32.mrb[0].mxu0
        %v4142 = vadd.f32 %v3981, %v4141
        %v4143 = vpop.f32.mrb[0].mxu0
        %v4144 = vpop.f32.mrb[0].mxu0
        %v4145 = vadd.f32 %v3984, %v4144
        %v4146 = vpop.f32.mrb[0].mxu0
        %4147 = vmatprep.mubr.bf16.mxu0 0
        %4148 = vmatmul.mubr.bf16.gmra.mrb[0].mxu0 %v3645
        %v4149 = vpop.f32.mrb[0].mxu0
        %v4150 = vadd.f32 %v3989, %v4149
        %v4151 = vpop.f32.mrb[0].mxu0
        %v4152 = vpop.f32.mrb[0].mxu0
        %v4153 = vadd.f32 %v3992, %v4152
        %v4154 = vpop.f32.mrb[0].mxu0
        %4155 = vmatprep.mubr.bf16.mxu0 0
        %4156 = vmatmul.mubr.bf16.gmra.mrb[0].mxu0 %v3648
        %v4157 = vpop.f32.mrb[0].mxu0
        %v4158 = vadd.f32 %v3997, %v4157
        %v4159 = vpop.f32.mrb[0].mxu0
        %v4160 = vpop.f32.mrb[0].mxu0
        %v4161 = vadd.f32 %v4000, %v4160
        %v4162 = vpop.f32.mrb[0].mxu0
        %4163 = vdwg.mxu0
        %v4164 = vld [vmem:[%s278] sm:$0xff]
        %v4165 = vld [vmem:[%s278 + $0x8] sm:$0xff]
        %v4166 = vld [vmem:[%s278 + $0x10] sm:$0xff]
        %v4167 = vld [vmem:[%s278 + $0x18] sm:$0xff]
        %v4168 = vld [vmem:[%s278 + $0x20] sm:$0xff]
        %v4169 = vld [vmem:[%s278 + $0x28] sm:$0xff]
        %v4170 = vld [vmem:[%s278 + $0x30] sm:$0xff]
        %v4171 = vld [vmem:[%s278 + $0x38] sm:$0xff]
        %v4172 = vld [vmem:[%s278 + $0x40] sm:$0xff]
        %v4173 = vld [vmem:[%s278 + $0x48] sm:$0xff]
        %v4174 = vld [vmem:[%s278 + $0x50] sm:$0xff]
        %v4175 = vld [vmem:[%s278 + $0x58] sm:$0xff]
        %v4176 = vld [vmem:[%s278 + $0x60] sm:$0xff]
        %v4177 = vld [vmem:[%s278 + $0x68] sm:$0xff]
        %v4178 = vld [vmem:[%s278 + $0x70] sm:$0xff]
        %v4179 = vld [vmem:[%s278 + $0x78] sm:$0xff]
        %v4180 = vld [vmem:[%s278 + $0x80] sm:$0xff]
        %v4181 = vld [vmem:[%s278 + $0x88] sm:$0xff]
        %v4182 = vld [vmem:[%s278 + $0x90] sm:$0xff]
        %v4183 = vld [vmem:[%s278 + $0x98] sm:$0xff]
        %v4184 = vld [vmem:[%s278 + $0xa0] sm:$0xff]
        %v4185 = vld [vmem:[%s278 + $0xa8] sm:$0xff]
        %v4186 = vld [vmem:[%s278 + $0xb0] sm:$0xff]
        %v4187 = vld [vmem:[%s278 + $0xb8] sm:$0xff]
        %v4188 = vld [vmem:[%s278 + $0xc0] sm:$0xff]
        %v4189 = vld [vmem:[%s278 + $0xc8] sm:$0xff]
        %v4190 = vld [vmem:[%s278 + $0xd0] sm:$0xff]
        %v4191 = vld [vmem:[%s278 + $0xd8] sm:$0xff]
        %v4192 = vld [vmem:[%s278 + $0xe0] sm:$0xff]
        %v4193 = vld [vmem:[%s278 + $0xe8] sm:$0xff]
        %v4194 = vld [vmem:[%s278 + $0xf0] sm:$0xff]
        %v4195 = vld [vmem:[%s278 + $0xf8] sm:$0xff]
        %v4196 = vadd.f32 %v4164, %v4038
        %v4197 = vadd.f32 %v4165, %v4041
        %v4198 = vadd.f32 %v4166, %v4046
        %v4199 = vadd.f32 %v4167, %v4049
        %v4200 = vadd.f32 %v4168, %v4054
        %v4201 = vadd.f32 %v4169, %v4057
        %v4202 = vadd.f32 %v4170, %v4062
        %v4203 = vadd.f32 %v4171, %v4065
        %v4204 = vadd.f32 %v4172, %v4070
        %v4205 = vadd.f32 %v4173, %v4073
        %v4206 = vadd.f32 %v4174, %v4078
        %v4207 = vadd.f32 %v4175, %v4081
        %v4208 = vadd.f32 %v4176, %v4086
        %v4209 = vadd.f32 %v4177, %v4089
        %v4210 = vadd.f32 %v4178, %v4094
        %v4211 = vadd.f32 %v4179, %v4097
        %v4212 = vadd.f32 %v4180, %v4102
        %v4213 = vadd.f32 %v4181, %v4105
        %v4214 = vadd.f32 %v4182, %v4110
        %v4215 = vadd.f32 %v4183, %v4113
        %v4216 = vadd.f32 %v4184, %v4118
        %v4217 = vadd.f32 %v4185, %v4121
        %v4218 = vadd.f32 %v4186, %v4126
        %v4219 = vadd.f32 %v4187, %v4129
        %v4220 = vadd.f32 %v4188, %v4134
        %v4221 = vadd.f32 %v4189, %v4137
        %v4222 = vadd.f32 %v4190, %v4142
        %v4223 = vadd.f32 %v4191, %v4145
        %v4224 = vadd.f32 %v4192, %v4150
        %v4225 = vadd.f32 %v4193, %v4153
        %v4226 = vadd.f32 %v4194, %v4158
        %v4227 = vadd.f32 %v4195, %v4161
        %4228 = vst [vmem:[%s278] sm:$0xff] %v4196
        %4229 = vst [vmem:[%s278 + $0x8] sm:$0xff] %v4197
        %4230 = vst [vmem:[%s278 + $0x10] sm:$0xff] %v4198
        %4231 = vst [vmem:[%s278 + $0x18] sm:$0xff] %v4199
        %4232 = vst [vmem:[%s278 + $0x20] sm:$0xff] %v4200
        %4233 = vst [vmem:[%s278 + $0x28] sm:$0xff] %v4201
        %4234 = vst [vmem:[%s278 + $0x30] sm:$0xff] %v4202
        %4235 = vst [vmem:[%s278 + $0x38] sm:$0xff] %v4203
        %4236 = vst [vmem:[%s278 + $0x40] sm:$0xff] %v4204
        %4237 = vst [vmem:[%s278 + $0x48] sm:$0xff] %v4205
        %4238 = vst [vmem:[%s278 + $0x50] sm:$0xff] %v4206
        %4239 = vst [vmem:[%s278 + $0x58] sm:$0xff] %v4207
        %4240 = vst [vmem:[%s278 + $0x60] sm:$0xff] %v4208
        %4241 = vst [vmem:[%s278 + $0x68] sm:$0xff] %v4209
        %4242 = vst [vmem:[%s278 + $0x70] sm:$0xff] %v4210
        %4243 = vst [vmem:[%s278 + $0x78] sm:$0xff] %v4211
        %4244 = vst [vmem:[%s278 + $0x80] sm:$0xff] %v4212
        %4245 = vst [vmem:[%s278 + $0x88] sm:$0xff] %v4213
        %4246 = vst [vmem:[%s278 + $0x90] sm:$0xff] %v4214
        %4247 = vst [vmem:[%s278 + $0x98] sm:$0xff] %v4215
        %4248 = vst [vmem:[%s278 + $0xa0] sm:$0xff] %v4216
        %4249 = vst [vmem:[%s278 + $0xa8] sm:$0xff] %v4217
        %4250 = vst [vmem:[%s278 + $0xb0] sm:$0xff] %v4218
        %4251 = vst [vmem:[%s278 + $0xb8] sm:$0xff] %v4219
        %4252 = vst [vmem:[%s278 + $0xc0] sm:$0xff] %v4220
        %4253 = vst [vmem:[%s278 + $0xc8] sm:$0xff] %v4221
        %4254 = vst [vmem:[%s278 + $0xd0] sm:$0xff] %v4222
        %4255 = vst [vmem:[%s278 + $0xd8] sm:$0xff] %v4223
        %4256 = vst [vmem:[%s278 + $0xe0] sm:$0xff] %v4224
        %4257 = vst [vmem:[%s278 + $0xe8] sm:$0xff] %v4225
        %4258 = vst [vmem:[%s278 + $0xf0] sm:$0xff] %v4226
        %4259 = vst [vmem:[%s278 + $0xf8] sm:$0xff] %v4227
        %s4260 = scalar_lea.vmem [#allocation2], 24
        %v4261 = vld [vmem:[%s4260] sm:$0xf]
        %v4262 = vld [vmem:[%s4260 + $0x4] sm:$0xf]
        %v4263 = vld [vmem:[%s4260 + $0xc] sm:$0xf]
        %v4264 = vld [vmem:[%s4260 + $0x10] sm:$0xf]
        %v4265 = vld [vmem:[%s4260 + $0x18] sm:$0xf]
        %v4266 = vld [vmem:[%s4260 + $0x1c] sm:$0xf]
        %v4267 = vld [vmem:[%s4260 + $0x24] sm:$0xf]
        %v4268 = vld [vmem:[%s4260 + $0x28] sm:$0xf]
        %v4269 = vld [vmem:[%s4260 + $0x30] sm:$0xf]
        %v4270 = vld [vmem:[%s4260 + $0x34] sm:$0xf]
        %v4271 = vld [vmem:[%s4260 + $0x3c] sm:$0xf]
        %v4272 = vld [vmem:[%s4260 + $0x40] sm:$0xf]
        %v4273 = vld [vmem:[%s4260 + $0x48] sm:$0xf]
        %v4274 = vld [vmem:[%s4260 + $0x4c] sm:$0xf]
        %v4275 = vld [vmem:[%s4260 + $0x54] sm:$0xf]
        %v4276 = vld [vmem:[%s4260 + $0x58] sm:$0xf]
        %v4277 = vld [vmem:[%s4260 + $0x60] sm:$0xf]
        %v4278 = vld [vmem:[%s4260 + $0x64] sm:$0xf]
        %v4279 = vld [vmem:[%s4260 + $0x6c] sm:$0xf]
        %v4280 = vld [vmem:[%s4260 + $0x70] sm:$0xf]
        %v4281 = vld [vmem:[%s4260 + $0x78] sm:$0xf]
        %v4282 = vld [vmem:[%s4260 + $0x7c] sm:$0xf]
        %v4283 = vld [vmem:[%s4260 + $0x84] sm:$0xf]
        %v4284 = vld [vmem:[%s4260 + $0x88] sm:$0xf]
        %v4285 = vld [vmem:[%s4260 + $0x90] sm:$0xf]
        %v4286 = vld [vmem:[%s4260 + $0x94] sm:$0xf]
        %v4287 = vld [vmem:[%s4260 + $0x9c] sm:$0xf]
        %v4288 = vld [vmem:[%s4260 + $0xa0] sm:$0xf]
        %v4289 = vld [vmem:[%s4260 + $0xa8] sm:$0xf]
        %v4290 = vld [vmem:[%s4260 + $0xac] sm:$0xf]
        %v4291 = vld [vmem:[%s4260 + $0xb4] sm:$0xf]
        %v4292 = vld [vmem:[%s4260 + $0xb8] sm:$0xf]
        %v4325 = vunpack.c.l.b16 %v4261
        %v4326 = vunpack.c.l.b16 %v4262
        %v4327 = vunpack.c.l.b16 %v4263
        %v4328 = vunpack.c.l.b16 %v4264
        %v4329 = vunpack.c.l.b16 %v4265
        %v4330 = vunpack.c.l.b16 %v4266
        %v4331 = vunpack.c.l.b16 %v4267
        %v4332 = vunpack.c.l.b16 %v4268
        %v4333 = vunpack.c.l.b16 %v4269
        %v4334 = vunpack.c.l.b16 %v4270
        %v4335 = vunpack.c.l.b16 %v4271
        %v4336 = vunpack.c.l.b16 %v4272
        %v4337 = vunpack.c.l.b16 %v4273
        %v4338 = vunpack.c.l.b16 %v4274
        %v4339 = vunpack.c.l.b16 %v4275
        %v4340 = vunpack.c.l.b16 %v4276
        %v4341 = vunpack.c.l.b16 %v4277
        %v4342 = vunpack.c.l.b16 %v4278
        %v4343 = vunpack.c.l.b16 %v4279
        %v4344 = vunpack.c.l.b16 %v4280
        %v4345 = vunpack.c.l.b16 %v4281
        %v4346 = vunpack.c.l.b16 %v4282
        %v4347 = vunpack.c.l.b16 %v4283
        %v4348 = vunpack.c.l.b16 %v4284
        %v4349 = vunpack.c.l.b16 %v4285
        %v4350 = vunpack.c.l.b16 %v4286
        %v4351 = vunpack.c.l.b16 %v4287
        %v4352 = vunpack.c.l.b16 %v4288
        %v4353 = vunpack.c.l.b16 %v4289
        %v4354 = vunpack.c.l.b16 %v4290
        %v4355 = vunpack.c.l.b16 %v4291
        %v4356 = vunpack.c.l.b16 %v4292
        %v4357 = vpack.c.b16 %v4326, %v4325
        %v4358 = vpack.c.b16 %v4328, %v4327
        %v4359 = vpack.c.b16 %v4330, %v4329
        %v4360 = vpack.c.b16 %v4332, %v4331
        %v4361 = vpack.c.b16 %v4334, %v4333
        %v4362 = vpack.c.b16 %v4336, %v4335
        %v4363 = vpack.c.b16 %v4338, %v4337
        %v4364 = vpack.c.b16 %v4340, %v4339
        %v4365 = vpack.c.b16 %v4342, %v4341
        %v4366 = vpack.c.b16 %v4344, %v4343
        %v4367 = vpack.c.b16 %v4346, %v4345
        %v4368 = vpack.c.b16 %v4348, %v4347
        %v4369 = vpack.c.b16 %v4350, %v4349
        %v4370 = vpack.c.b16 %v4352, %v4351
        %v4371 = vpack.c.b16 %v4354, %v4353
        %v4372 = vpack.c.b16 %v4356, %v4355
        %4389 = vst [vmem:[#allocation3] sm:$0xff] %v4357
        %4390 = vst [vmem:[#allocation3 + $0x18] sm:$0xff] %v4358
        %4391 = vst [vmem:[#allocation3 + $0x30] sm:$0xff] %v4359
        %4392 = vst [vmem:[#allocation3 + $0x48] sm:$0xff] %v4360
        %4393 = vst [vmem:[#allocation3 + $0x60] sm:$0xff] %v4361
        %4394 = vst [vmem:[#allocation3 + $0x78] sm:$0xff] %v4362
        %4395 = vst [vmem:[#allocation3 + $0x90] sm:$0xff] %v4363
        %4396 = vst [vmem:[#allocation3 + $0xa8] sm:$0xff] %v4364
        %4397 = vst [vmem:[#allocation3 + $0xc0] sm:$0xff] %v4365
        %4398 = vst [vmem:[#allocation3 + $0xd8] sm:$0xff] %v4366
        %4399 = vst [vmem:[#allocation3 + $0xf0] sm:$0xff] %v4367
        %4400 = vst [vmem:[#allocation3 + $0x108] sm:$0xff] %v4368
        %4401 = vst [vmem:[#allocation3 + $0x120] sm:$0xff] %v4369
        %4402 = vst [vmem:[#allocation3 + $0x138] sm:$0xff] %v4370
        %4403 = vst [vmem:[#allocation3 + $0x150] sm:$0xff] %v4371
        %4404 = vst [vmem:[#allocation3 + $0x168] sm:$0xff] %v4372
        %v4405 = vld [vmem:[%s4260] sm:$0xf]
        %v4406 = vld [vmem:[%s4260 + $0x4] sm:$0xf]
        %v4407 = vld [vmem:[%s4260 + $0x8] sm:$0x1]
        %v4408 = vld [vmem:[%s4260 + $0xc] sm:$0xf]
        %v4409 = vld [vmem:[%s4260 + $0x10] sm:$0xf]
        %v4410 = vld [vmem:[%s4260 + $0x14] sm:$0x1]
        %v4411 = vld [vmem:[%s4260 + $0x18] sm:$0xf]
        %v4412 = vld [vmem:[%s4260 + $0x1c] sm:$0xf]
        %v4413 = vld [vmem:[%s4260 + $0x20] sm:$0x1]
        %v4414 = vld [vmem:[%s4260 + $0x24] sm:$0xf]
        %v4415 = vld [vmem:[%s4260 + $0x28] sm:$0xf]
        %v4416 = vld [vmem:[%s4260 + $0x2c] sm:$0x1]
        %v4417 = vld [vmem:[%s4260 + $0x30] sm:$0xf]
        %v4418 = vld [vmem:[%s4260 + $0x34] sm:$0xf]
        %v4419 = vld [vmem:[%s4260 + $0x38] sm:$0x1]
        %v4420 = vld [vmem:[%s4260 + $0x3c] sm:$0xf]
        %v4421 = vld [vmem:[%s4260 + $0x40] sm:$0xf]
        %v4422 = vld [vmem:[%s4260 + $0x44] sm:$0x1]
        %v4423 = vld [vmem:[%s4260 + $0x48] sm:$0xf]
        %v4424 = vld [vmem:[%s4260 + $0x4c] sm:$0xf]
        %v4425 = vld [vmem:[%s4260 + $0x50] sm:$0x1]
        %v4426 = vld [vmem:[%s4260 + $0x54] sm:$0xf]
        %v4427 = vld [vmem:[%s4260 + $0x58] sm:$0xf]
        %v4428 = vld [vmem:[%s4260 + $0x5c] sm:$0x1]
        %v4429 = vld [vmem:[%s4260 + $0x60] sm:$0xf]
        %v4430 = vld [vmem:[%s4260 + $0x64] sm:$0xf]
        %v4431 = vld [vmem:[%s4260 + $0x68] sm:$0x1]
        %v4432 = vld [vmem:[%s4260 + $0x6c] sm:$0xf]
        %v4433 = vld [vmem:[%s4260 + $0x70] sm:$0xf]
        %v4434 = vld [vmem:[%s4260 + $0x74] sm:$0x1]
        %v4435 = vld [vmem:[%s4260 + $0x78] sm:$0xf]
        %v4436 = vld [vmem:[%s4260 + $0x7c] sm:$0xf]
        %v4437 = vld [vmem:[%s4260 + $0x80] sm:$0x1]
        %v4438 = vld [vmem:[%s4260 + $0x84] sm:$0xf]
        %v4439 = vld [vmem:[%s4260 + $0x88] sm:$0xf]
        %v4440 = vld [vmem:[%s4260 + $0x8c] sm:$0x1]
        %v4441 = vld [vmem:[%s4260 + $0x90] sm:$0xf]
        %v4442 = vld [vmem:[%s4260 + $0x94] sm:$0xf]
        %v4443 = vld [vmem:[%s4260 + $0x98] sm:$0x1]
        %v4444 = vld [vmem:[%s4260 + $0x9c] sm:$0xf]
        %v4445 = vld [vmem:[%s4260 + $0xa0] sm:$0xf]
        %v4446 = vld [vmem:[%s4260 + $0xa4] sm:$0x1]
        %v4447 = vld [vmem:[%s4260 + $0xa8] sm:$0xf]
        %v4448 = vld [vmem:[%s4260 + $0xac] sm:$0xf]
        %v4449 = vld [vmem:[%s4260 + $0xb0] sm:$0x1]
        %v4450 = vld [vmem:[%s4260 + $0xb4] sm:$0xf]
        %v4451 = vld [vmem:[%s4260 + $0xb8] sm:$0xf]
        %v4452 = vld [vmem:[%s4260 + $0xbc] sm:$0x1]
        %v4454 = vshrl.u32 %v4405, 16
        %v4456 = vrot.slane %v4454, 4
        %v4457 = vshll.u32 %v4405, 16
        %v4459 = vrot.slane %v4457, 5
        %v4460 = vor.u32 %v4456, %v4459
        %v4461 = vrot.slane %v4460, 4
        %v4463 = vshll.u32 %v4406, 16
        %v4465 = vrot.slane %v4463, 5
        %v4466 = vsel %vm1307, %v4461, %v4465
        %v4467 = vshrl.u32 %v4406, 16
        %v4469 = vrot.slane %v4467, 4
        %v4470 = vor.u32 %v4469, %v4465
        %v4471 = vrot.slane %v4470, 4
        %v4473 = vshll.u32 %v4407, 16
        %v4475 = vrot.slane %v4473, 5
        %v4476 = vsel %vm1307, %v4471, %v4475
        %v4478 = vshrl.u32 %v4408, 16
        %v4480 = vrot.slane %v4478, 4
        %v4481 = vshll.u32 %v4408, 16
        %v4483 = vrot.slane %v4481, 5
        %v4484 = vor.u32 %v4480, %v4483
        %v4485 = vrot.slane %v4484, 4
        %v4487 = vshll.u32 %v4409, 16
        %v4489 = vrot.slane %v4487, 5
        %v4490 = vsel %vm1307, %v4485, %v4489
        %v4491 = vshrl.u32 %v4409, 16
        %v4493 = vrot.slane %v4491, 4
        %v4494 = vor.u32 %v4493, %v4489
        %v4495 = vrot.slane %v4494, 4
        %v4497 = vshll.u32 %v4410, 16
        %v4499 = vrot.slane %v4497, 5
        %v4500 = vsel %vm1307, %v4495, %v4499
        %v4502 = vshrl.u32 %v4411, 16
        %v4504 = vrot.slane %v4502, 4
        %v4505 = vshll.u32 %v4411, 16
        %v4507 = vrot.slane %v4505, 5
        %v4508 = vor.u32 %v4504, %v4507
        %v4509 = vrot.slane %v4508, 4
        %v4511 = vshll.u32 %v4412, 16
        %v4513 = vrot.slane %v4511, 5
        %v4514 = vsel %vm1307, %v4509, %v4513
        %v4515 = vshrl.u32 %v4412, 16
        %v4517 = vrot.slane %v4515, 4
        %v4518 = vor.u32 %v4517, %v4513
        %v4519 = vrot.slane %v4518, 4
        %v4521 = vshll.u32 %v4413, 16
        %v4523 = vrot.slane %v4521, 5
        %v4524 = vsel %vm1307, %v4519, %v4523
        %v4526 = vshrl.u32 %v4414, 16
        %v4528 = vrot.slane %v4526, 4
        %v4529 = vshll.u32 %v4414, 16
        %v4531 = vrot.slane %v4529, 5
        %v4532 = vor.u32 %v4528, %v4531
        %v4533 = vrot.slane %v4532, 4
        %v4535 = vshll.u32 %v4415, 16
        %v4537 = vrot.slane %v4535, 5
        %v4538 = vsel %vm1307, %v4533, %v4537
        %v4539 = vshrl.u32 %v4415, 16
        %v4541 = vrot.slane %v4539, 4
        %v4542 = vor.u32 %v4541, %v4537
        %v4543 = vrot.slane %v4542, 4
        %v4545 = vshll.u32 %v4416, 16
        %v4547 = vrot.slane %v4545, 5
        %v4548 = vsel %vm1307, %v4543, %v4547
        %v4550 = vshrl.u32 %v4417, 16
        %v4552 = vrot.slane %v4550, 4
        %v4553 = vshll.u32 %v4417, 16
        %v4555 = vrot.slane %v4553, 5
        %v4556 = vor.u32 %v4552, %v4555
        %v4557 = vrot.slane %v4556, 4
        %v4559 = vshll.u32 %v4418, 16
        %v4561 = vrot.slane %v4559, 5
        %v4562 = vsel %vm1307, %v4557, %v4561
        %v4563 = vshrl.u32 %v4418, 16
        %v4565 = vrot.slane %v4563, 4
        %v4566 = vor.u32 %v4565, %v4561
        %v4567 = vrot.slane %v4566, 4
        %v4569 = vshll.u32 %v4419, 16
        %v4571 = vrot.slane %v4569, 5
        %v4572 = vsel %vm1307, %v4567, %v4571
        %v4574 = vshrl.u32 %v4420, 16
        %v4576 = vrot.slane %v4574, 4
        %v4577 = vshll.u32 %v4420, 16
        %v4579 = vrot.slane %v4577, 5
        %v4580 = vor.u32 %v4576, %v4579
        %v4581 = vrot.slane %v4580, 4
        %v4583 = vshll.u32 %v4421, 16
        %v4585 = vrot.slane %v4583, 5
        %v4586 = vsel %vm1307, %v4581, %v4585
        %v4587 = vshrl.u32 %v4421, 16
        %v4589 = vrot.slane %v4587, 4
        %v4590 = vor.u32 %v4589, %v4585
        %v4591 = vrot.slane %v4590, 4
        %v4593 = vshll.u32 %v4422, 16
        %v4595 = vrot.slane %v4593, 5
        %v4596 = vsel %vm1307, %v4591, %v4595
        %v4598 = vshrl.u32 %v4423, 16
        %v4600 = vrot.slane %v4598, 4
        %v4601 = vshll.u32 %v4423, 16
        %v4603 = vrot.slane %v4601, 5
        %v4604 = vor.u32 %v4600, %v4603
        %v4605 = vrot.slane %v4604, 4
        %v4607 = vshll.u32 %v4424, 16
        %v4609 = vrot.slane %v4607, 5
        %v4610 = vsel %vm1307, %v4605, %v4609
        %v4611 = vshrl.u32 %v4424, 16
        %v4613 = vrot.slane %v4611, 4
        %v4614 = vor.u32 %v4613, %v4609
        %v4615 = vrot.slane %v4614, 4
        %v4617 = vshll.u32 %v4425, 16
        %v4619 = vrot.slane %v4617, 5
        %v4620 = vsel %vm1307, %v4615, %v4619
        %v4622 = vshrl.u32 %v4426, 16
        %v4624 = vrot.slane %v4622, 4
        %v4625 = vshll.u32 %v4426, 16
        %v4627 = vrot.slane %v4625, 5
        %v4628 = vor.u32 %v4624, %v4627
        %v4629 = vrot.slane %v4628, 4
        %v4631 = vshll.u32 %v4427, 16
        %v4633 = vrot.slane %v4631, 5
        %v4634 = vsel %vm1307, %v4629, %v4633
        %v4635 = vshrl.u32 %v4427, 16
        %v4637 = vrot.slane %v4635, 4
        %v4638 = vor.u32 %v4637, %v4633
        %v4639 = vrot.slane %v4638, 4
        %v4641 = vshll.u32 %v4428, 16
        %v4643 = vrot.slane %v4641, 5
        %v4644 = vsel %vm1307, %v4639, %v4643
        %v4646 = vshrl.u32 %v4429, 16
        %v4648 = vrot.slane %v4646, 4
        %v4649 = vshll.u32 %v4429, 16
        %v4651 = vrot.slane %v4649, 5
        %v4652 = vor.u32 %v4648, %v4651
        %v4653 = vrot.slane %v4652, 4
        %v4655 = vshll.u32 %v4430, 16
        %v4657 = vrot.slane %v4655, 5
        %v4658 = vsel %vm1307, %v4653, %v4657
        %v4659 = vshrl.u32 %v4430, 16
        %v4661 = vrot.slane %v4659, 4
        %v4662 = vor.u32 %v4661, %v4657
        %v4663 = vrot.slane %v4662, 4
        %v4665 = vshll.u32 %v4431, 16
        %v4667 = vrot.slane %v4665, 5
        %v4668 = vsel %vm1307, %v4663, %v4667
        %v4670 = vshrl.u32 %v4432, 16
        %v4672 = vrot.slane %v4670, 4
        %v4673 = vshll.u32 %v4432, 16
        %v4675 = vrot.slane %v4673, 5
        %v4676 = vor.u32 %v4672, %v4675
        %v4677 = vrot.slane %v4676, 4
        %v4679 = vshll.u32 %v4433, 16
        %v4681 = vrot.slane %v4679, 5
        %v4682 = vsel %vm1307, %v4677, %v4681
        %v4683 = vshrl.u32 %v4433, 16
        %v4685 = vrot.slane %v4683, 4
        %v4686 = vor.u32 %v4685, %v4681
        %v4687 = vrot.slane %v4686, 4
        %v4689 = vshll.u32 %v4434, 16
        %v4691 = vrot.slane %v4689, 5
        %v4692 = vsel %vm1307, %v4687, %v4691
        %v4694 = vshrl.u32 %v4435, 16
        %v4696 = vrot.slane %v4694, 4
        %v4697 = vshll.u32 %v4435, 16
        %v4699 = vrot.slane %v4697, 5
        %v4700 = vor.u32 %v4696, %v4699
        %v4701 = vrot.slane %v4700, 4
        %v4703 = vshll.u32 %v4436, 16
        %v4705 = vrot.slane %v4703, 5
        %v4706 = vsel %vm1307, %v4701, %v4705
        %v4707 = vshrl.u32 %v4436, 16
        %v4709 = vrot.slane %v4707, 4
        %v4710 = vor.u32 %v4709, %v4705
        %v4711 = vrot.slane %v4710, 4
        %v4713 = vshll.u32 %v4437, 16
        %v4715 = vrot.slane %v4713, 5
        %v4716 = vsel %vm1307, %v4711, %v4715
        %v4718 = vshrl.u32 %v4438, 16
        %v4720 = vrot.slane %v4718, 4
        %v4721 = vshll.u32 %v4438, 16
        %v4723 = vrot.slane %v4721, 5
        %v4724 = vor.u32 %v4720, %v4723
        %v4725 = vrot.slane %v4724, 4
        %v4727 = vshll.u32 %v4439, 16
        %v4729 = vrot.slane %v4727, 5
        %v4730 = vsel %vm1307, %v4725, %v4729
        %v4731 = vshrl.u32 %v4439, 16
        %v4733 = vrot.slane %v4731, 4
        %v4734 = vor.u32 %v4733, %v4729
        %v4735 = vrot.slane %v4734, 4
        %v4737 = vshll.u32 %v4440, 16
        %v4739 = vrot.slane %v4737, 5
        %v4740 = vsel %vm1307, %v4735, %v4739
        %v4742 = vshrl.u32 %v4441, 16
        %v4744 = vrot.slane %v4742, 4
        %v4745 = vshll.u32 %v4441, 16
        %v4747 = vrot.slane %v4745, 5
        %v4748 = vor.u32 %v4744, %v4747
        %v4749 = vrot.slane %v4748, 4
        %v4751 = vshll.u32 %v4442, 16
        %v4753 = vrot.slane %v4751, 5
        %v4754 = vsel %vm1307, %v4749, %v4753
        %v4755 = vshrl.u32 %v4442, 16
        %v4757 = vrot.slane %v4755, 4
        %v4758 = vor.u32 %v4757, %v4753
        %v4759 = vrot.slane %v4758, 4
        %v4761 = vshll.u32 %v4443, 16
        %v4763 = vrot.slane %v4761, 5
        %v4764 = vsel %vm1307, %v4759, %v4763
        %v4766 = vshrl.u32 %v4444, 16
        %v4768 = vrot.slane %v4766, 4
        %v4769 = vshll.u32 %v4444, 16
        %v4771 = vrot.slane %v4769, 5
        %v4772 = vor.u32 %v4768, %v4771
        %v4773 = vrot.slane %v4772, 4
        %v4775 = vshll.u32 %v4445, 16
        %v4777 = vrot.slane %v4775, 5
        %v4778 = vsel %vm1307, %v4773, %v4777
        %v4779 = vshrl.u32 %v4445, 16
        %v4781 = vrot.slane %v4779, 4
        %v4782 = vor.u32 %v4781, %v4777
        %v4783 = vrot.slane %v4782, 4
        %v4785 = vshll.u32 %v4446, 16
        %v4787 = vrot.slane %v4785, 5
        %v4788 = vsel %vm1307, %v4783, %v4787
        %v4790 = vshrl.u32 %v4447, 16
        %v4792 = vrot.slane %v4790, 4
        %v4793 = vshll.u32 %v4447, 16
        %v4795 = vrot.slane %v4793, 5
        %v4796 = vor.u32 %v4792, %v4795
        %v4797 = vrot.slane %v4796, 4
        %v4799 = vshll.u32 %v4448, 16
        %v4801 = vrot.slane %v4799, 5
        %v4802 = vsel %vm1307, %v4797, %v4801
        %v4803 = vshrl.u32 %v4448, 16
        %v4805 = vrot.slane %v4803, 4
        %v4806 = vor.u32 %v4805, %v4801
        %v4807 = vrot.slane %v4806, 4
        %v4809 = vshll.u32 %v4449, 16
        %v4811 = vrot.slane %v4809, 5
        %v4812 = vsel %vm1307, %v4807, %v4811
        %v4814 = vshrl.u32 %v4450, 16
        %v4816 = vrot.slane %v4814, 4
        %v4817 = vshll.u32 %v4450, 16
        %v4819 = vrot.slane %v4817, 5
        %v4820 = vor.u32 %v4816, %v4819
        %v4821 = vrot.slane %v4820, 4
        %v4823 = vshll.u32 %v4451, 16
        %v4825 = vrot.slane %v4823, 5
        %v4826 = vsel %vm1307, %v4821, %v4825
        %v4827 = vshrl.u32 %v4451, 16
        %v4829 = vrot.slane %v4827, 4
        %v4830 = vor.u32 %v4829, %v4825
        %v4831 = vrot.slane %v4830, 4
        %v4833 = vshll.u32 %v4452, 16
        %v4835 = vrot.slane %v4833, 5
        %v4836 = vsel %vm1307, %v4831, %v4835
        %v4837 = vunpack.c.l.b16 %v4466
        %v4838 = vunpack.c.l.b16 %v4476
        %v4839 = vunpack.c.l.b16 %v4490
        %v4840 = vunpack.c.l.b16 %v4500
        %v4841 = vunpack.c.l.b16 %v4514
        %v4842 = vunpack.c.l.b16 %v4524
        %v4843 = vunpack.c.l.b16 %v4538
        %v4844 = vunpack.c.l.b16 %v4548
        %v4845 = vunpack.c.l.b16 %v4562
        %v4846 = vunpack.c.l.b16 %v4572
        %v4847 = vunpack.c.l.b16 %v4586
        %v4848 = vunpack.c.l.b16 %v4596
        %v4849 = vunpack.c.l.b16 %v4610
        %v4850 = vunpack.c.l.b16 %v4620
        %v4851 = vunpack.c.l.b16 %v4634
        %v4852 = vunpack.c.l.b16 %v4644
        %v4853 = vunpack.c.l.b16 %v4658
        %v4854 = vunpack.c.l.b16 %v4668
        %v4855 = vunpack.c.l.b16 %v4682
        %v4856 = vunpack.c.l.b16 %v4692
        %v4857 = vunpack.c.l.b16 %v4706
        %v4858 = vunpack.c.l.b16 %v4716
        %v4859 = vunpack.c.l.b16 %v4730
        %v4860 = vunpack.c.l.b16 %v4740
        %v4861 = vunpack.c.l.b16 %v4754
        %v4862 = vunpack.c.l.b16 %v4764
        %v4863 = vunpack.c.l.b16 %v4778
        %v4864 = vunpack.c.l.b16 %v4788
        %v4865 = vunpack.c.l.b16 %v4802
        %v4866 = vunpack.c.l.b16 %v4812
        %v4867 = vunpack.c.l.b16 %v4826
        %v4868 = vunpack.c.l.b16 %v4836
        %v4869 = vpack.c.b16 %v4838, %v4837
        %v4870 = vpack.c.b16 %v4840, %v4839
        %v4871 = vpack.c.b16 %v4842, %v4841
        %v4872 = vpack.c.b16 %v4844, %v4843
        %v4873 = vpack.c.b16 %v4846, %v4845
        %v4874 = vpack.c.b16 %v4848, %v4847
        %v4875 = vpack.c.b16 %v4850, %v4849
        %v4876 = vpack.c.b16 %v4852, %v4851
        %v4877 = vpack.c.b16 %v4854, %v4853
        %v4878 = vpack.c.b16 %v4856, %v4855
        %v4879 = vpack.c.b16 %v4858, %v4857
        %v4880 = vpack.c.b16 %v4860, %v4859
        %v4881 = vpack.c.b16 %v4862, %v4861
        %v4882 = vpack.c.b16 %v4864, %v4863
        %v4883 = vpack.c.b16 %v4866, %v4865
        %v4884 = vpack.c.b16 %v4868, %v4867
        %4901 = vst [vmem:[#allocation3 + $0x8] sm:$0xff] %v4869
        %4902 = vst [vmem:[#allocation3 + $0x20] sm:$0xff] %v4870
        %4903 = vst [vmem:[#allocation3 + $0x38] sm:$0xff] %v4871
        %4904 = vst [vmem:[#allocation3 + $0x50] sm:$0xff] %v4872
        %4905 = vst [vmem:[#allocation3 + $0x68] sm:$0xff] %v4873
        %4906 = vst [vmem:[#allocation3 + $0x80] sm:$0xff] %v4874
        %4907 = vst [vmem:[#allocation3 + $0x98] sm:$0xff] %v4875
        %4908 = vst [vmem:[#allocation3 + $0xb0] sm:$0xff] %v4876
        %4909 = vst [vmem:[#allocation3 + $0xc8] sm:$0xff] %v4877
        %4910 = vst [vmem:[#allocation3 + $0xe0] sm:$0xff] %v4878
        %4911 = vst [vmem:[#allocation3 + $0xf8] sm:$0xff] %v4879
        %4912 = vst [vmem:[#allocation3 + $0x110] sm:$0xff] %v4880
        %4913 = vst [vmem:[#allocation3 + $0x128] sm:$0xff] %v4881
        %4914 = vst [vmem:[#allocation3 + $0x140] sm:$0xff] %v4882
        %4915 = vst [vmem:[#allocation3 + $0x158] sm:$0xff] %v4883
        %4916 = vst [vmem:[#allocation3 + $0x170] sm:$0xff] %v4884
        %v4917 = vld [vmem:[%s4260] sm:$0xe]
        %v4918 = vld [vmem:[%s4260 + $0x4] sm:$0xf]
        %v4919 = vld [vmem:[%s4260 + $0x8] sm:$0x1]
        %v4920 = vld [vmem:[%s4260 + $0xc] sm:$0xe]
        %v4921 = vld [vmem:[%s4260 + $0x10] sm:$0xf]
        %v4922 = vld [vmem:[%s4260 + $0x14] sm:$0x1]
        %v4923 = vld [vmem:[%s4260 + $0x18] sm:$0xe]
        %v4924 = vld [vmem:[%s4260 + $0x1c] sm:$0xf]
        %v4925 = vld [vmem:[%s4260 + $0x20] sm:$0x1]
        %v4926 = vld [vmem:[%s4260 + $0x24] sm:$0xe]
        %v4927 = vld [vmem:[%s4260 + $0x28] sm:$0xf]
        %v4928 = vld [vmem:[%s4260 + $0x2c] sm:$0x1]
        %v4929 = vld [vmem:[%s4260 + $0x30] sm:$0xe]
        %v4930 = vld [vmem:[%s4260 + $0x34] sm:$0xf]
        %v4931 = vld [vmem:[%s4260 + $0x38] sm:$0x1]
        %v4932 = vld [vmem:[%s4260 + $0x3c] sm:$0xe]
        %v4933 = vld [vmem:[%s4260 + $0x40] sm:$0xf]
        %v4934 = vld [vmem:[%s4260 + $0x44] sm:$0x1]
        %v4935 = vld [vmem:[%s4260 + $0x48] sm:$0xe]
        %v4936 = vld [vmem:[%s4260 + $0x4c] sm:$0xf]
        %v4937 = vld [vmem:[%s4260 + $0x50] sm:$0x1]
        %v4938 = vld [vmem:[%s4260 + $0x54] sm:$0xe]
        %v4939 = vld [vmem:[%s4260 + $0x58] sm:$0xf]
        %v4940 = vld [vmem:[%s4260 + $0x5c] sm:$0x1]
        %v4941 = vld [vmem:[%s4260 + $0x60] sm:$0xe]
        %v4942 = vld [vmem:[%s4260 + $0x64] sm:$0xf]
        %v4943 = vld [vmem:[%s4260 + $0x68] sm:$0x1]
        %v4944 = vld [vmem:[%s4260 + $0x6c] sm:$0xe]
        %v4945 = vld [vmem:[%s4260 + $0x70] sm:$0xf]
        %v4946 = vld [vmem:[%s4260 + $0x74] sm:$0x1]
        %v4947 = vld [vmem:[%s4260 + $0x78] sm:$0xe]
        %v4948 = vld [vmem:[%s4260 + $0x7c] sm:$0xf]
        %v4949 = vld [vmem:[%s4260 + $0x80] sm:$0x1]
        %v4950 = vld [vmem:[%s4260 + $0x84] sm:$0xe]
        %v4951 = vld [vmem:[%s4260 + $0x88] sm:$0xf]
        %v4952 = vld [vmem:[%s4260 + $0x8c] sm:$0x1]
        %v4953 = vld [vmem:[%s4260 + $0x90] sm:$0xe]
        %v4954 = vld [vmem:[%s4260 + $0x94] sm:$0xf]
        %v4955 = vld [vmem:[%s4260 + $0x98] sm:$0x1]
        %v4956 = vld [vmem:[%s4260 + $0x9c] sm:$0xe]
        %v4957 = vld [vmem:[%s4260 + $0xa0] sm:$0xf]
        %v4958 = vld [vmem:[%s4260 + $0xa4] sm:$0x1]
        %v4959 = vld [vmem:[%s4260 + $0xa8] sm:$0xe]
        %v4960 = vld [vmem:[%s4260 + $0xac] sm:$0xf]
        %v4961 = vld [vmem:[%s4260 + $0xb0] sm:$0x1]
        %v4962 = vld [vmem:[%s4260 + $0xb4] sm:$0xe]
        %v4963 = vld [vmem:[%s4260 + $0xb8] sm:$0xf]
        %v4964 = vld [vmem:[%s4260 + $0xbc] sm:$0x1]
        %v5013 = vrot.slane %v4917, 5
        %v5014 = vrot.slane %v5013, 4
        %v5015 = vrot.slane %v4918, 5
        %v5016 = vsel %vm1870, %v5014, %v5015
        %v5017 = vrot.slane %v5015, 4
        %v5018 = vrot.slane %v4919, 5
        %v5019 = vsel %vm1870, %v5017, %v5018
        %v5020 = vrot.slane %v4920, 5
        %v5021 = vrot.slane %v5020, 4
        %v5022 = vrot.slane %v4921, 5
        %v5023 = vsel %vm1870, %v5021, %v5022
        %v5024 = vrot.slane %v5022, 4
        %v5025 = vrot.slane %v4922, 5
        %v5026 = vsel %vm1870, %v5024, %v5025
        %v5027 = vrot.slane %v4923, 5
        %v5028 = vrot.slane %v5027, 4
        %v5029 = vrot.slane %v4924, 5
        %v5030 = vsel %vm1870, %v5028, %v5029
        %v5031 = vrot.slane %v5029, 4
        %v5032 = vrot.slane %v4925, 5
        %v5033 = vsel %vm1870, %v5031, %v5032
        %v5034 = vrot.slane %v4926, 5
        %v5035 = vrot.slane %v5034, 4
        %v5036 = vrot.slane %v4927, 5
        %v5037 = vsel %vm1870, %v5035, %v5036
        %v5038 = vrot.slane %v5036, 4
        %v5039 = vrot.slane %v4928, 5
        %v5040 = vsel %vm1870, %v5038, %v5039
        %v5041 = vrot.slane %v4929, 5
        %v5042 = vrot.slane %v5041, 4
        %v5043 = vrot.slane %v4930, 5
        %v5044 = vsel %vm1870, %v5042, %v5043
        %v5045 = vrot.slane %v5043, 4
        %v5046 = vrot.slane %v4931, 5
        %v5047 = vsel %vm1870, %v5045, %v5046
        %v5048 = vrot.slane %v4932, 5
        %v5049 = vrot.slane %v5048, 4
        %v5050 = vrot.slane %v4933, 5
        %v5051 = vsel %vm1870, %v5049, %v5050
        %v5052 = vrot.slane %v5050, 4
        %v5053 = vrot.slane %v4934, 5
        %v5054 = vsel %vm1870, %v5052, %v5053
        %v5055 = vrot.slane %v4935, 5
        %v5056 = vrot.slane %v5055, 4
        %v5057 = vrot.slane %v4936, 5
        %v5058 = vsel %vm1870, %v5056, %v5057
        %v5059 = vrot.slane %v5057, 4
        %v5060 = vrot.slane %v4937, 5
        %v5061 = vsel %vm1870, %v5059, %v5060
        %v5062 = vrot.slane %v4938, 5
        %v5063 = vrot.slane %v5062, 4
        %v5064 = vrot.slane %v4939, 5
        %v5065 = vsel %vm1870, %v5063, %v5064
        %v5066 = vrot.slane %v5064, 4
        %v5067 = vrot.slane %v4940, 5
        %v5068 = vsel %vm1870, %v5066, %v5067
        %v5069 = vrot.slane %v4941, 5
        %v5070 = vrot.slane %v5069, 4
        %v5071 = vrot.slane %v4942, 5
        %v5072 = vsel %vm1870, %v5070, %v5071
        %v5073 = vrot.slane %v5071, 4
        %v5074 = vrot.slane %v4943, 5
        %v5075 = vsel %vm1870, %v5073, %v5074
        %v5076 = vrot.slane %v4944, 5
        %v5077 = vrot.slane %v5076, 4
        %v5078 = vrot.slane %v4945, 5
        %v5079 = vsel %vm1870, %v5077, %v5078
        %v5080 = vrot.slane %v5078, 4
        %v5081 = vrot.slane %v4946, 5
        %v5082 = vsel %vm1870, %v5080, %v5081
        %v5083 = vrot.slane %v4947, 5
        %v5084 = vrot.slane %v5083, 4
        %v5085 = vrot.slane %v4948, 5
        %v5086 = vsel %vm1870, %v5084, %v5085
        %v5087 = vrot.slane %v5085, 4
        %v5088 = vrot.slane %v4949, 5
        %v5089 = vsel %vm1870, %v5087, %v5088
        %v5090 = vrot.slane %v4950, 5
        %v5091 = vrot.slane %v5090, 4
        %v5092 = vrot.slane %v4951, 5
        %v5093 = vsel %vm1870, %v5091, %v5092
        %v5094 = vrot.slane %v5092, 4
        %v5095 = vrot.slane %v4952, 5
        %v5096 = vsel %vm1870, %v5094, %v5095
        %v5097 = vrot.slane %v4953, 5
        %v5098 = vrot.slane %v5097, 4
        %v5099 = vrot.slane %v4954, 5
        %v5100 = vsel %vm1870, %v5098, %v5099
        %v5101 = vrot.slane %v5099, 4
        %v5102 = vrot.slane %v4955, 5
        %v5103 = vsel %vm1870, %v5101, %v5102
        %v5104 = vrot.slane %v4956, 5
        %v5105 = vrot.slane %v5104, 4
        %v5106 = vrot.slane %v4957, 5
        %v5107 = vsel %vm1870, %v5105, %v5106
        %v5108 = vrot.slane %v5106, 4
        %v5109 = vrot.slane %v4958, 5
        %v5110 = vsel %vm1870, %v5108, %v5109
        %v5111 = vrot.slane %v4959, 5
        %v5112 = vrot.slane %v5111, 4
        %v5113 = vrot.slane %v4960, 5
        %v5114 = vsel %vm1870, %v5112, %v5113
        %v5115 = vrot.slane %v5113, 4
        %v5116 = vrot.slane %v4961, 5
        %v5117 = vsel %vm1870, %v5115, %v5116
        %v5118 = vrot.slane %v4962, 5
        %v5119 = vrot.slane %v5118, 4
        %v5120 = vrot.slane %v4963, 5
        %v5121 = vsel %vm1870, %v5119, %v5120
        %v5122 = vrot.slane %v5120, 4
        %v5123 = vrot.slane %v4964, 5
        %v5124 = vsel %vm1870, %v5122, %v5123
        %v5125 = vunpack.c.l.b16 %v5016
        %v5126 = vunpack.c.l.b16 %v5019
        %v5127 = vunpack.c.l.b16 %v5023
        %v5128 = vunpack.c.l.b16 %v5026
        %v5129 = vunpack.c.l.b16 %v5030
        %v5130 = vunpack.c.l.b16 %v5033
        %v5131 = vunpack.c.l.b16 %v5037
        %v5132 = vunpack.c.l.b16 %v5040
        %v5133 = vunpack.c.l.b16 %v5044
        %v5134 = vunpack.c.l.b16 %v5047
        %v5135 = vunpack.c.l.b16 %v5051
        %v5136 = vunpack.c.l.b16 %v5054
        %v5137 = vunpack.c.l.b16 %v5058
        %v5138 = vunpack.c.l.b16 %v5061
        %v5139 = vunpack.c.l.b16 %v5065
        %v5140 = vunpack.c.l.b16 %v5068
        %v5141 = vunpack.c.l.b16 %v5072
        %v5142 = vunpack.c.l.b16 %v5075
        %v5143 = vunpack.c.l.b16 %v5079
        %v5144 = vunpack.c.l.b16 %v5082
        %v5145 = vunpack.c.l.b16 %v5086
        %v5146 = vunpack.c.l.b16 %v5089
        %v5147 = vunpack.c.l.b16 %v5093
        %v5148 = vunpack.c.l.b16 %v5096
        %v5149 = vunpack.c.l.b16 %v5100
        %v5150 = vunpack.c.l.b16 %v5103
        %v5151 = vunpack.c.l.b16 %v5107
        %v5152 = vunpack.c.l.b16 %v5110
        %v5153 = vunpack.c.l.b16 %v5114
        %v5154 = vunpack.c.l.b16 %v5117
        %v5155 = vunpack.c.l.b16 %v5121
        %v5156 = vunpack.c.l.b16 %v5124
        %v5157 = vpack.c.b16 %v5126, %v5125
        %v5158 = vpack.c.b16 %v5128, %v5127
        %v5159 = vpack.c.b16 %v5130, %v5129
        %v5160 = vpack.c.b16 %v5132, %v5131
        %v5161 = vpack.c.b16 %v5134, %v5133
        %v5162 = vpack.c.b16 %v5136, %v5135
        %v5163 = vpack.c.b16 %v5138, %v5137
        %v5164 = vpack.c.b16 %v5140, %v5139
        %v5165 = vpack.c.b16 %v5142, %v5141
        %v5166 = vpack.c.b16 %v5144, %v5143
        %v5167 = vpack.c.b16 %v5146, %v5145
        %v5168 = vpack.c.b16 %v5148, %v5147
        %v5169 = vpack.c.b16 %v5150, %v5149
        %v5170 = vpack.c.b16 %v5152, %v5151
        %v5171 = vpack.c.b16 %v5154, %v5153
        %v5172 = vpack.c.b16 %v5156, %v5155
        %5189 = vst [vmem:[#allocation3 + $0x10] sm:$0xff] %v5157
        %5190 = vst [vmem:[#allocation3 + $0x28] sm:$0xff] %v5158
        %5191 = vst [vmem:[#allocation3 + $0x40] sm:$0xff] %v5159
        %5192 = vst [vmem:[#allocation3 + $0x58] sm:$0xff] %v5160
        %5193 = vst [vmem:[#allocation3 + $0x70] sm:$0xff] %v5161
        %5194 = vst [vmem:[#allocation3 + $0x88] sm:$0xff] %v5162
        %5195 = vst [vmem:[#allocation3 + $0xa0] sm:$0xff] %v5163
        %5196 = vst [vmem:[#allocation3 + $0xb8] sm:$0xff] %v5164
        %5197 = vst [vmem:[#allocation3 + $0xd0] sm:$0xff] %v5165
        %5198 = vst [vmem:[#allocation3 + $0xe8] sm:$0xff] %v5166
        %5199 = vst [vmem:[#allocation3 + $0x100] sm:$0xff] %v5167
        %5200 = vst [vmem:[#allocation3 + $0x118] sm:$0xff] %v5168
        %5201 = vst [vmem:[#allocation3 + $0x130] sm:$0xff] %v5169
        %5202 = vst [vmem:[#allocation3 + $0x148] sm:$0xff] %v5170
        %5203 = vst [vmem:[#allocation3 + $0x160] sm:$0xff] %v5171
        %5204 = vst [vmem:[#allocation3 + $0x178] sm:$0xff] %v5172
        %v5205 = vld [vmem:[#allocation3] sm:$0xff]
        %v5206 = vld [vmem:[#allocation3 + $0x8] sm:$0xff]
        %v5207 = vld [vmem:[#allocation3 + $0x10] sm:$0xff]
        %v5208 = vld [vmem:[#allocation3 + $0x18] sm:$0xff]
        %v5209 = vld [vmem:[#allocation3 + $0x20] sm:$0xff]
        %v5210 = vld [vmem:[#allocation3 + $0x28] sm:$0xff]
        %v5211 = vld [vmem:[#allocation3 + $0x30] sm:$0xff]
        %v5212 = vld [vmem:[#allocation3 + $0x38] sm:$0xff]
        %v5213 = vld [vmem:[#allocation3 + $0x40] sm:$0xff]
        %v5214 = vld [vmem:[#allocation3 + $0x48] sm:$0xff]
        %v5215 = vld [vmem:[#allocation3 + $0x50] sm:$0xff]
        %v5216 = vld [vmem:[#allocation3 + $0x58] sm:$0xff]
        %v5217 = vld [vmem:[#allocation3 + $0x60] sm:$0xff]
        %v5218 = vld [vmem:[#allocation3 + $0x68] sm:$0xff]
        %v5219 = vld [vmem:[#allocation3 + $0x70] sm:$0xff]
        %v5220 = vld [vmem:[#allocation3 + $0x78] sm:$0xff]
        %v5221 = vld [vmem:[#allocation3 + $0x80] sm:$0xff]
        %v5222 = vld [vmem:[#allocation3 + $0x88] sm:$0xff]
        %v5223 = vld [vmem:[#allocation3 + $0x90] sm:$0xff]
        %v5224 = vld [vmem:[#allocation3 + $0x98] sm:$0xff]
        %v5225 = vld [vmem:[#allocation3 + $0xa0] sm:$0xff]
        %v5226 = vld [vmem:[#allocation3 + $0xa8] sm:$0xff]
        %v5227 = vld [vmem:[#allocation3 + $0xb0] sm:$0xff]
        %v5228 = vld [vmem:[#allocation3 + $0xb8] sm:$0xff]
        %v5229 = vld [vmem:[#allocation3 + $0xc0] sm:$0xff]
        %v5230 = vld [vmem:[#allocation3 + $0xc8] sm:$0xff]
        %v5231 = vld [vmem:[#allocation3 + $0xd0] sm:$0xff]
        %v5232 = vld [vmem:[#allocation3 + $0xd8] sm:$0xff]
        %v5233 = vld [vmem:[#allocation3 + $0xe0] sm:$0xff]
        %v5234 = vld [vmem:[#allocation3 + $0xe8] sm:$0xff]
        %v5235 = vld [vmem:[#allocation3 + $0xf0] sm:$0xff]
        %v5236 = vld [vmem:[#allocation3 + $0xf8] sm:$0xff]
        %v5237 = vld [vmem:[#allocation3 + $0x100] sm:$0xff]
        %v5238 = vld [vmem:[#allocation3 + $0x108] sm:$0xff]
        %v5239 = vld [vmem:[#allocation3 + $0x110] sm:$0xff]
        %v5240 = vld [vmem:[#allocation3 + $0x118] sm:$0xff]
        %v5241 = vld [vmem:[#allocation3 + $0x120] sm:$0xff]
        %v5242 = vld [vmem:[#allocation3 + $0x128] sm:$0xff]
        %v5243 = vld [vmem:[#allocation3 + $0x130] sm:$0xff]
        %v5244 = vld [vmem:[#allocation3 + $0x138] sm:$0xff]
        %v5245 = vld [vmem:[#allocation3 + $0x140] sm:$0xff]
        %v5246 = vld [vmem:[#allocation3 + $0x148] sm:$0xff]
        %v5247 = vld [vmem:[#allocation3 + $0x150] sm:$0xff]
        %v5248 = vld [vmem:[#allocation3 + $0x158] sm:$0xff]
        %v5249 = vld [vmem:[#allocation3 + $0x160] sm:$0xff]
        %v5250 = vld [vmem:[#allocation3 + $0x168] sm:$0xff]
        %v5251 = vld [vmem:[#allocation3 + $0x170] sm:$0xff]
        %v5252 = vld [vmem:[#allocation3 + $0x178] sm:$0xff]
        %s5253 = scalar_lea.vmem [#allocation7], 384
        %v5254 = vld [vmem:[%s5253] sm:$0xf]
        %v5255 = vld [vmem:[%s5253 + $0x4] sm:$0xf]
        %v5256 = vld [vmem:[%s5253 + $0x8] sm:$0xf]
        %v5257 = vld [vmem:[%s5253 + $0xc] sm:$0xf]
        %v5258 = vld [vmem:[%s5253 + $0x10] sm:$0xf]
        %v5259 = vld [vmem:[%s5253 + $0x14] sm:$0xf]
        %v5260 = vld [vmem:[%s5253 + $0x18] sm:$0xf]
        %v5261 = vld [vmem:[%s5253 + $0x1c] sm:$0xf]
        %v5262 = vld [vmem:[%s5253 + $0x20] sm:$0xf]
        %v5263 = vld [vmem:[%s5253 + $0x24] sm:$0xf]
        %v5264 = vld [vmem:[%s5253 + $0x28] sm:$0xf]
        %v5265 = vld [vmem:[%s5253 + $0x2c] sm:$0xf]
        %v5266 = vld [vmem:[%s5253 + $0x30] sm:$0xf]
        %v5267 = vld [vmem:[%s5253 + $0x34] sm:$0xf]
        %v5268 = vld [vmem:[%s5253 + $0x38] sm:$0xf]
        %v5269 = vld [vmem:[%s5253 + $0x3c] sm:$0xf]
        %v5270 = vld [vmem:[%s5253 + $0x40] sm:$0xf]
        %v5271 = vld [vmem:[%s5253 + $0x44] sm:$0xf]
        %v5272 = vld [vmem:[%s5253 + $0x48] sm:$0xf]
        %v5273 = vld [vmem:[%s5253 + $0x4c] sm:$0xf]
        %v5274 = vld [vmem:[%s5253 + $0x50] sm:$0xf]
        %v5275 = vld [vmem:[%s5253 + $0x54] sm:$0xf]
        %v5276 = vld [vmem:[%s5253 + $0x58] sm:$0xf]
        %v5277 = vld [vmem:[%s5253 + $0x5c] sm:$0xf]
        %v5278 = vld [vmem:[%s5253 + $0x60] sm:$0xf]
        %v5279 = vld [vmem:[%s5253 + $0x64] sm:$0xf]
        %v5280 = vld [vmem:[%s5253 + $0x68] sm:$0xf]
        %v5281 = vld [vmem:[%s5253 + $0x6c] sm:$0xf]
        %v5282 = vld [vmem:[%s5253 + $0x70] sm:$0xf]
        %v5283 = vld [vmem:[%s5253 + $0x74] sm:$0xf]
        %v5284 = vld [vmem:[%s5253 + $0x78] sm:$0xf]
        %v5285 = vld [vmem:[%s5253 + $0x7c] sm:$0xf]
        %v5286 = vld [vmem:[%s5253 + $0x80] sm:$0xf]
        %v5287 = vld [vmem:[%s5253 + $0x84] sm:$0xf]
        %v5288 = vld [vmem:[%s5253 + $0x88] sm:$0xf]
        %v5289 = vld [vmem:[%s5253 + $0x8c] sm:$0xf]
        %v5290 = vld [vmem:[%s5253 + $0x90] sm:$0xf]
        %v5291 = vld [vmem:[%s5253 + $0x94] sm:$0xf]
        %v5292 = vld [vmem:[%s5253 + $0x98] sm:$0xf]
        %v5293 = vld [vmem:[%s5253 + $0x9c] sm:$0xf]
        %v5294 = vld [vmem:[%s5253 + $0xa0] sm:$0xf]
        %v5295 = vld [vmem:[%s5253 + $0xa4] sm:$0xf]
        %v5296 = vld [vmem:[%s5253 + $0xa8] sm:$0xf]
        %v5297 = vld [vmem:[%s5253 + $0xac] sm:$0xf]
        %v5298 = vld [vmem:[%s5253 + $0xb0] sm:$0xf]
        %v5299 = vld [vmem:[%s5253 + $0xb4] sm:$0xf]
        %v5300 = vld [vmem:[%s5253 + $0xb8] sm:$0xf]
        %v5301 = vld [vmem:[%s5253 + $0xbc] sm:$0xf]
        %v5350 = vunpack.c.l.b16 %v5254
        %v5351 = vunpack.c.l.b16 %v5255
        %v5352 = vunpack.c.l.b16 %v5256
        %v5353 = vunpack.c.l.b16 %v5257
        %v5354 = vunpack.c.l.b16 %v5258
        %v5355 = vunpack.c.l.b16 %v5259
        %v5356 = vunpack.c.l.b16 %v5260
        %v5357 = vunpack.c.l.b16 %v5261
        %v5358 = vunpack.c.l.b16 %v5262
        %v5359 = vunpack.c.l.b16 %v5263
        %v5360 = vunpack.c.l.b16 %v5264
        %v5361 = vunpack.c.l.b16 %v5265
        %v5362 = vunpack.c.l.b16 %v5266
        %v5363 = vunpack.c.l.b16 %v5267
        %v5364 = vunpack.c.l.b16 %v5268
        %v5365 = vunpack.c.l.b16 %v5269
        %v5366 = vunpack.c.l.b16 %v5270
        %v5367 = vunpack.c.l.b16 %v5271
        %v5368 = vunpack.c.l.b16 %v5272
        %v5369 = vunpack.c.l.b16 %v5273
        %v5370 = vunpack.c.l.b16 %v5274
        %v5371 = vunpack.c.l.b16 %v5275
        %v5372 = vunpack.c.l.b16 %v5276
        %v5373 = vunpack.c.l.b16 %v5277
        %v5374 = vunpack.c.l.b16 %v5278
        %v5375 = vunpack.c.l.b16 %v5279
        %v5376 = vunpack.c.l.b16 %v5280
        %v5377 = vunpack.c.l.b16 %v5281
        %v5378 = vunpack.c.l.b16 %v5282
        %v5379 = vunpack.c.l.b16 %v5283
        %v5380 = vunpack.c.l.b16 %v5284
        %v5381 = vunpack.c.l.b16 %v5285
        %v5382 = vunpack.c.l.b16 %v5286
        %v5383 = vunpack.c.l.b16 %v5287
        %v5384 = vunpack.c.l.b16 %v5288
        %v5385 = vunpack.c.l.b16 %v5289
        %v5386 = vunpack.c.l.b16 %v5290
        %v5387 = vunpack.c.l.b16 %v5291
        %v5388 = vunpack.c.l.b16 %v5292
        %v5389 = vunpack.c.l.b16 %v5293
        %v5390 = vunpack.c.l.b16 %v5294
        %v5391 = vunpack.c.l.b16 %v5295
        %v5392 = vunpack.c.l.b16 %v5296
        %v5393 = vunpack.c.l.b16 %v5297
        %v5394 = vunpack.c.l.b16 %v5298
        %v5395 = vunpack.c.l.b16 %v5299
        %v5396 = vunpack.c.l.b16 %v5300
        %v5397 = vunpack.c.l.b16 %v5301
        %v5398 = vpack.c.b16 %v5351, %v5350
        %v5399 = vpack.c.b16 %v5353, %v5352
        %v5400 = vpack.c.b16 %v5355, %v5354
        %v5401 = vpack.c.b16 %v5357, %v5356
        %v5402 = vpack.c.b16 %v5359, %v5358
        %v5403 = vpack.c.b16 %v5361, %v5360
        %v5404 = vpack.c.b16 %v5363, %v5362
        %v5405 = vpack.c.b16 %v5365, %v5364
        %v5406 = vpack.c.b16 %v5367, %v5366
        %v5407 = vpack.c.b16 %v5369, %v5368
        %v5408 = vpack.c.b16 %v5371, %v5370
        %v5409 = vpack.c.b16 %v5373, %v5372
        %v5410 = vpack.c.b16 %v5375, %v5374
        %v5411 = vpack.c.b16 %v5377, %v5376
        %v5412 = vpack.c.b16 %v5379, %v5378
        %v5413 = vpack.c.b16 %v5381, %v5380
        %v5414 = vpack.c.b16 %v5383, %v5382
        %v5415 = vpack.c.b16 %v5385, %v5384
        %v5416 = vpack.c.b16 %v5387, %v5386
        %v5417 = vpack.c.b16 %v5389, %v5388
        %v5418 = vpack.c.b16 %v5391, %v5390
        %v5419 = vpack.c.b16 %v5393, %v5392
        %v5420 = vpack.c.b16 %v5395, %v5394
        %v5421 = vpack.c.b16 %v5397, %v5396
        %5446 = vmatprep.subr.bf16.mxu0 0
        %5447 = vmatpush1.bf16.msra.mxu0 %v5398
        %5448 = vmatprep.subr.bf16.mxu0 0
        %5449 = vmatpush1.bf16.msra.mxu0 %v5399
        %5450 = vmatprep.subr.bf16.mxu0 0
        %5451 = vmatpush1.bf16.msra.mxu0 %v5400
        %5452 = vmatprep.subr.bf16.mxu0 0
        %5453 = vmatpush1.bf16.msra.mxu0 %v5401
        %5454 = vmatprep.subr.bf16.mxu0 0
        %5455 = vmatpush1.bf16.msra.mxu0 %v5402
        %5456 = vmatprep.subr.bf16.mxu0 0
        %5457 = vmatpush1.bf16.msra.mxu0 %v5403
        %5458 = vmatprep.subr.bf16.mxu0 0
        %5459 = vmatpush1.bf16.msra.mxu0 %v5404
        %5460 = vmatprep.subr.bf16.mxu0 0
        %5461 = vmatpush1.bf16.msra.mxu0 %v5405
        %5462 = vmatprep.subr.bf16.mxu0 0
        %5463 = vmatpush1.bf16.msra.mxu0 %v5406
        %5464 = vmatprep.subr.bf16.mxu0 0
        %5465 = vmatpush1.bf16.msra.mxu0 %v5407
        %5466 = vmatprep.subr.bf16.mxu0 0
        %5467 = vmatpush1.bf16.msra.mxu0 %v5408
        %5468 = vmatprep.subr.bf16.mxu0 0
        %5469 = vmatpush1.bf16.msra.mxu0 %v5409
        %5470 = vmatprep.subr.bf16.mxu0 0
        %5471 = vmatpush1.bf16.msra.mxu0 %v5410
        %5472 = vmatprep.subr.bf16.mxu0 0
        %5473 = vmatpush1.bf16.msra.mxu0 %v5411
        %5474 = vmatprep.subr.bf16.mxu0 0
        %5475 = vmatpush1.bf16.msra.mxu0 %v5412
        %5476 = vmatprep.subr.bf16.mxu0 0
        %5477 = vmatpush1.bf16.msra.mxu0 %v5413
        %5478 = vmatprep.mubr.bf16.mxu0 %v5206
        %5479 = vmatmul.mubr.bf16.gmra.mrb[0].mxu0 %v5205
        %v5480 = vpop.f32.mrb[0].mxu0
        %v5481 = vadd.f32 0.0, %v5480
        %v5482 = vpop.f32.mrb[0].mxu0
        %v5483 = vpop.f32.mrb[0].mxu0
        %v5484 = vadd.f32 0.0, %v5483
        %v5485 = vpop.f32.mrb[0].mxu0
        %5486 = vmatprep.mubr.bf16.mxu0 %v5209
        %5487 = vmatmul.mubr.bf16.gmra.mrb[0].mxu0 %v5208
        %v5488 = vpop.f32.mrb[0].mxu0
        %v5489 = vadd.f32 0.0, %v5488
        %v5490 = vpop.f32.mrb[0].mxu0
        %v5491 = vpop.f32.mrb[0].mxu0
        %v5492 = vadd.f32 0.0, %v5491
        %v5493 = vpop.f32.mrb[0].mxu0
        %5494 = vmatprep.mubr.bf16.mxu0 %v5212
        %5495 = vmatmul.mubr.bf16.gmra.mrb[0].mxu0 %v5211
        %v5496 = vpop.f32.mrb[0].mxu0
        %v5497 = vadd.f32 0.0, %v5496
        %v5498 = vpop.f32.mrb[0].mxu0
        %v5499 = vpop.f32.mrb[0].mxu0
        %v5500 = vadd.f32 0.0, %v5499
        %v5501 = vpop.f32.mrb[0].mxu0
        %5502 = vmatprep.mubr.bf16.mxu0 %v5215
        %5503 = vmatmul.mubr.bf16.gmra.mrb[0].mxu0 %v5214
        %v5504 = vpop.f32.mrb[0].mxu0
        %v5505 = vadd.f32 0.0, %v5504
        %v5506 = vpop.f32.mrb[0].mxu0
        %v5507 = vpop.f32.mrb[0].mxu0
        %v5508 = vadd.f32 0.0, %v5507
        %v5509 = vpop.f32.mrb[0].mxu0
        %5510 = vmatprep.mubr.bf16.mxu0 %v5218
        %5511 = vmatmul.mubr.bf16.gmra.mrb[0].mxu0 %v5217
        %v5512 = vpop.f32.mrb[0].mxu0
        %v5513 = vadd.f32 0.0, %v5512
        %v5514 = vpop.f32.mrb[0].mxu0
        %v5515 = vpop.f32.mrb[0].mxu0
        %v5516 = vadd.f32 0.0, %v5515
        %v5517 = vpop.f32.mrb[0].mxu0
        %5518 = vmatprep.mubr.bf16.mxu0 %v5221
        %5519 = vmatmul.mubr.bf16.gmra.mrb[0].mxu0 %v5220
        %v5520 = vpop.f32.mrb[0].mxu0
        %v5521 = vadd.f32 0.0, %v5520
        %v5522 = vpop.f32.mrb[0].mxu0
        %v5523 = vpop.f32.mrb[0].mxu0
        %v5524 = vadd.f32 0.0, %v5523
        %v5525 = vpop.f32.mrb[0].mxu0
        %5526 = vmatprep.mubr.bf16.mxu0 %v5224
        %5527 = vmatmul.mubr.bf16.gmra.mrb[0].mxu0 %v5223
        %v5528 = vpop.f32.mrb[0].mxu0
        %v5529 = vadd.f32 0.0, %v5528
        %v5530 = vpop.f32.mrb[0].mxu0
        %v5531 = vpop.f32.mrb[0].mxu0
        %v5532 = vadd.f32 0.0, %v5531
        %v5533 = vpop.f32.mrb[0].mxu0
        %5534 = vmatprep.mubr.bf16.mxu0 %v5227
        %5535 = vmatmul.mubr.bf16.gmra.mrb[0].mxu0 %v5226
        %v5536 = vpop.f32.mrb[0].mxu0
        %v5537 = vadd.f32 0.0, %v5536
        %v5538 = vpop.f32.mrb[0].mxu0
        %v5539 = vpop.f32.mrb[0].mxu0
        %v5540 = vadd.f32 0.0, %v5539
        %v5541 = vpop.f32.mrb[0].mxu0
        %5542 = vmatprep.mubr.bf16.mxu0 %v5230
        %5543 = vmatmul.mubr.bf16.gmra.mrb[0].mxu0 %v5229
        %v5544 = vpop.f32.mrb[0].mxu0
        %v5545 = vadd.f32 0.0, %v5544
        %v5546 = vpop.f32.mrb[0].mxu0
        %v5547 = vpop.f32.mrb[0].mxu0
        %v5548 = vadd.f32 0.0, %v5547
        %v5549 = vpop.f32.mrb[0].mxu0
        %5550 = vmatprep.mubr.bf16.mxu0 %v5233
        %5551 = vmatmul.mubr.bf16.gmra.mrb[0].mxu0 %v5232
        %v5552 = vpop.f32.mrb[0].mxu0
        %v5553 = vadd.f32 0.0, %v5552
        %v5554 = vpop.f32.mrb[0].mxu0
        %v5555 = vpop.f32.mrb[0].mxu0
        %v5556 = vadd.f32 0.0, %v5555
        %v5557 = vpop.f32.mrb[0].mxu0
        %5558 = vmatprep.mubr.bf16.mxu0 %v5236
        %5559 = vmatmul.mubr.bf16.gmra.mrb[0].mxu0 %v5235
        %v5560 = vpop.f32.mrb[0].mxu0
        %v5561 = vadd.f32 0.0, %v5560
        %v5562 = vpop.f32.mrb[0].mxu0
        %v5563 = vpop.f32.mrb[0].mxu0
        %v5564 = vadd.f32 0.0, %v5563
        %v5565 = vpop.f32.mrb[0].mxu0
        %5566 = vmatprep.mubr.bf16.mxu0 %v5239
        %5567 = vmatmul.mubr.bf16.gmra.mrb[0].mxu0 %v5238
        %v5568 = vpop.f32.mrb[0].mxu0
        %v5569 = vadd.f32 0.0, %v5568
        %v5570 = vpop.f32.mrb[0].mxu0
        %v5571 = vpop.f32.mrb[0].mxu0
        %v5572 = vadd.f32 0.0, %v5571
        %v5573 = vpop.f32.mrb[0].mxu0
        %5574 = vmatprep.mubr.bf16.mxu0 %v5242
        %5575 = vmatmul.mubr.bf16.gmra.mrb[0].mxu0 %v5241
        %v5576 = vpop.f32.mrb[0].mxu0
        %v5577 = vadd.f32 0.0, %v5576
        %v5578 = vpop.f32.mrb[0].mxu0
        %v5579 = vpop.f32.mrb[0].mxu0
        %v5580 = vadd.f32 0.0, %v5579
        %v5581 = vpop.f32.mrb[0].mxu0
        %5582 = vmatprep.mubr.bf16.mxu0 %v5245
        %5583 = vmatmul.mubr.bf16.gmra.mrb[0].mxu0 %v5244
        %v5584 = vpop.f32.mrb[0].mxu0
        %v5585 = vadd.f32 0.0, %v5584
        %v5586 = vpop.f32.mrb[0].mxu0
        %v5587 = vpop.f32.mrb[0].mxu0
        %v5588 = vadd.f32 0.0, %v5587
        %v5589 = vpop.f32.mrb[0].mxu0
        %5590 = vmatprep.mubr.bf16.mxu0 %v5248
        %5591 = vmatmul.mubr.bf16.gmra.mrb[0].mxu0 %v5247
        %v5592 = vpop.f32.mrb[0].mxu0
        %v5593 = vadd.f32 0.0, %v5592
        %v5594 = vpop.f32.mrb[0].mxu0
        %v5595 = vpop.f32.mrb[0].mxu0
        %v5596 = vadd.f32 0.0, %v5595
        %v5597 = vpop.f32.mrb[0].mxu0
        %5598 = vmatprep.mubr.bf16.mxu0 %v5251
        %5599 = vmatmul.mubr.bf16.gmra.mrb[0].mxu0 %v5250
        %v5600 = vpop.f32.mrb[0].mxu0
        %v5601 = vadd.f32 0.0, %v5600
        %v5602 = vpop.f32.mrb[0].mxu0
        %v5603 = vpop.f32.mrb[0].mxu0
        %v5604 = vadd.f32 0.0, %v5603
        %v5605 = vpop.f32.mrb[0].mxu0
        %5606 = vdwg.mxu0
        %5607 = vmatprep.subr.bf16.mxu0 0
        %5608 = vmatpush1.bf16.msra.mxu0 %v5414
        %5609 = vmatprep.subr.bf16.mxu0 0
        %5610 = vmatpush1.bf16.msra.mxu0 %v5415
        %5611 = vmatprep.subr.bf16.mxu0 0
        %5612 = vmatpush1.bf16.msra.mxu0 %v5416
        %5613 = vmatprep.subr.bf16.mxu0 0
        %5614 = vmatpush1.bf16.msra.mxu0 %v5417
        %5615 = vmatprep.subr.bf16.mxu0 0
        %5616 = vmatpush1.bf16.msra.mxu0 %v5418
        %5617 = vmatprep.subr.bf16.mxu0 0
        %5618 = vmatpush1.bf16.msra.mxu0 %v5419
        %5619 = vmatprep.subr.bf16.mxu0 0
        %5620 = vmatpush1.bf16.msra.mxu0 %v5420
        %5621 = vmatprep.subr.bf16.mxu0 0
        %5622 = vmatpush1.bf16.msra.mxu0 %v5421
        %5623 = vmatprep.subr.bf16.mxu0 0
        %5624 = vmatpush1.bf16.msra.mxu0 0
        %5625 = vmatprep.subr.bf16.mxu0 0
        %5626 = vmatpush1.bf16.msra.mxu0 0
        %5627 = vmatprep.subr.bf16.mxu0 0
        %5628 = vmatpush1.bf16.msra.mxu0 0
        %5629 = vmatprep.subr.bf16.mxu0 0
        %5630 = vmatpush1.bf16.msra.mxu0 0
        %5631 = vmatprep.subr.bf16.mxu0 0
        %5632 = vmatpush1.bf16.msra.mxu0 0
        %5633 = vmatprep.subr.bf16.mxu0 0
        %5634 = vmatpush1.bf16.msra.mxu0 0
        %5635 = vmatprep.subr.bf16.mxu0 0
        %5636 = vmatpush1.bf16.msra.mxu0 0
        %5637 = vmatprep.subr.bf16.mxu0 0
        %5638 = vmatpush1.bf16.msra.mxu0 0
        %5639 = vmatprep.mubr.bf16.mxu0 0
        %5640 = vmatmul.mubr.bf16.gmra.mrb[0].mxu0 %v5207
        %v5641 = vpop.f32.mrb[0].mxu0
        %v5642 = vadd.f32 %v5481, %v5641
        %v5643 = vpop.f32.mrb[0].mxu0
        %v5644 = vpop.f32.mrb[0].mxu0
        %v5645 = vadd.f32 %v5484, %v5644
        %v5646 = vpop.f32.mrb[0].mxu0
        %5647 = vmatprep.mubr.bf16.mxu0 0
        %5648 = vmatmul.mubr.bf16.gmra.mrb[0].mxu0 %v5210
        %v5649 = vpop.f32.mrb[0].mxu0
        %v5650 = vadd.f32 %v5489, %v5649
        %v5651 = vpop.f32.mrb[0].mxu0
        %v5652 = vpop.f32.mrb[0].mxu0
        %v5653 = vadd.f32 %v5492, %v5652
        %v5654 = vpop.f32.mrb[0].mxu0
        %5655 = vmatprep.mubr.bf16.mxu0 0
        %5656 = vmatmul.mubr.bf16.gmra.mrb[0].mxu0 %v5213
        %v5657 = vpop.f32.mrb[0].mxu0
        %v5658 = vadd.f32 %v5497, %v5657
        %v5659 = vpop.f32.mrb[0].mxu0
        %v5660 = vpop.f32.mrb[0].mxu0
        %v5661 = vadd.f32 %v5500, %v5660
        %v5662 = vpop.f32.mrb[0].mxu0
        %5663 = vmatprep.mubr.bf16.mxu0 0
        %5664 = vmatmul.mubr.bf16.gmra.mrb[0].mxu0 %v5216
        %v5665 = vpop.f32.mrb[0].mxu0
        %v5666 = vadd.f32 %v5505, %v5665
        %v5667 = vpop.f32.mrb[0].mxu0
        %v5668 = vpop.f32.mrb[0].mxu0
        %v5669 = vadd.f32 %v5508, %v5668
        %v5670 = vpop.f32.mrb[0].mxu0
        %5671 = vmatprep.mubr.bf16.mxu0 0
        %5672 = vmatmul.mubr.bf16.gmra.mrb[0].mxu0 %v5219
        %v5673 = vpop.f32.mrb[0].mxu0
        %v5674 = vadd.f32 %v5513, %v5673
        %v5675 = vpop.f32.mrb[0].mxu0
        %v5676 = vpop.f32.mrb[0].mxu0
        %v5677 = vadd.f32 %v5516, %v5676
        %v5678 = vpop.f32.mrb[0].mxu0
        %5679 = vmatprep.mubr.bf16.mxu0 0
        %5680 = vmatmul.mubr.bf16.gmra.mrb[0].mxu0 %v5222
        %v5681 = vpop.f32.mrb[0].mxu0
        %v5682 = vadd.f32 %v5521, %v5681
        %v5683 = vpop.f32.mrb[0].mxu0
        %v5684 = vpop.f32.mrb[0].mxu0
        %v5685 = vadd.f32 %v5524, %v5684
        %v5686 = vpop.f32.mrb[0].mxu0
        %5687 = vmatprep.mubr.bf16.mxu0 0
        %5688 = vmatmul.mubr.bf16.gmra.mrb[0].mxu0 %v5225
        %v5689 = vpop.f32.mrb[0].mxu0
        %v5690 = vadd.f32 %v5529, %v5689
        %v5691 = vpop.f32.mrb[0].mxu0
        %v5692 = vpop.f32.mrb[0].mxu0
        %v5693 = vadd.f32 %v5532, %v5692
        %v5694 = vpop.f32.mrb[0].mxu0
        %5695 = vmatprep.mubr.bf16.mxu0 0
        %5696 = vmatmul.mubr.bf16.gmra.mrb[0].mxu0 %v5228
        %v5697 = vpop.f32.mrb[0].mxu0
        %v5698 = vadd.f32 %v5537, %v5697
        %v5699 = vpop.f32.mrb[0].mxu0
        %v5700 = vpop.f32.mrb[0].mxu0
        %v5701 = vadd.f32 %v5540, %v5700
        %v5702 = vpop.f32.mrb[0].mxu0
        %5703 = vmatprep.mubr.bf16.mxu0 0
        %5704 = vmatmul.mubr.bf16.gmra.mrb[0].mxu0 %v5231
        %v5705 = vpop.f32.mrb[0].mxu0
        %v5706 = vadd.f32 %v5545, %v5705
        %v5707 = vpop.f32.mrb[0].mxu0
        %v5708 = vpop.f32.mrb[0].mxu0
        %v5709 = vadd.f32 %v5548, %v5708
        %v5710 = vpop.f32.mrb[0].mxu0
        %5711 = vmatprep.mubr.bf16.mxu0 0
        %5712 = vmatmul.mubr.bf16.gmra.mrb[0].mxu0 %v5234
        %v5713 = vpop.f32.mrb[0].mxu0
        %v5714 = vadd.f32 %v5553, %v5713
        %v5715 = vpop.f32.mrb[0].mxu0
        %v5716 = vpop.f32.mrb[0].mxu0
        %v5717 = vadd.f32 %v5556, %v5716
        %v5718 = vpop.f32.mrb[0].mxu0
        %5719 = vmatprep.mubr.bf16.mxu0 0
        %5720 = vmatmul.mubr.bf16.gmra.mrb[0].mxu0 %v5237
        %v5721 = vpop.f32.mrb[0].mxu0
        %v5722 = vadd.f32 %v5561, %v5721
        %v5723 = vpop.f32.mrb[0].mxu0
        %v5724 = vpop.f32.mrb[0].mxu0
        %v5725 = vadd.f32 %v5564, %v5724
        %v5726 = vpop.f32.mrb[0].mxu0
        %5727 = vmatprep.mubr.bf16.mxu0 0
        %5728 = vmatmul.mubr.bf16.gmra.mrb[0].mxu0 %v5240
        %v5729 = vpop.f32.mrb[0].mxu0
        %v5730 = vadd.f32 %v5569, %v5729
        %v5731 = vpop.f32.mrb[0].mxu0
        %v5732 = vpop.f32.mrb[0].mxu0
        %v5733 = vadd.f32 %v5572, %v5732
        %v5734 = vpop.f32.mrb[0].mxu0
        %5735 = vmatprep.mubr.bf16.mxu0 0
        %5736 = vmatmul.mubr.bf16.gmra.mrb[0].mxu0 %v5243
        %v5737 = vpop.f32.mrb[0].mxu0
        %v5738 = vadd.f32 %v5577, %v5737
        %v5739 = vpop.f32.mrb[0].mxu0
        %v5740 = vpop.f32.mrb[0].mxu0
        %v5741 = vadd.f32 %v5580, %v5740
        %v5742 = vpop.f32.mrb[0].mxu0
        %5743 = vmatprep.mubr.bf16.mxu0 0
        %5744 = vmatmul.mubr.bf16.gmra.mrb[0].mxu0 %v5246
        %v5745 = vpop.f32.mrb[0].mxu0
        %v5746 = vadd.f32 %v5585, %v5745
        %v5747 = vpop.f32.mrb[0].mxu0
        %v5748 = vpop.f32.mrb[0].mxu0
        %v5749 = vadd.f32 %v5588, %v5748
        %v5750 = vpop.f32.mrb[0].mxu0
        %5751 = vmatprep.mubr.bf16.mxu0 0
        %5752 = vmatmul.mubr.bf16.gmra.mrb[0].mxu0 %v5249
        %v5753 = vpop.f32.mrb[0].mxu0
        %v5754 = vadd.f32 %v5593, %v5753
        %v5755 = vpop.f32.mrb[0].mxu0
        %v5756 = vpop.f32.mrb[0].mxu0
        %v5757 = vadd.f32 %v5596, %v5756
        %v5758 = vpop.f32.mrb[0].mxu0
        %5759 = vmatprep.mubr.bf16.mxu0 0
        %5760 = vmatmul.mubr.bf16.gmra.mrb[0].mxu0 %v5252
        %v5761 = vpop.f32.mrb[0].mxu0
        %v5762 = vadd.f32 %v5601, %v5761
        %v5763 = vpop.f32.mrb[0].mxu0
        %v5764 = vpop.f32.mrb[0].mxu0
        %v5765 = vadd.f32 %v5604, %v5764
        %v5766 = vpop.f32.mrb[0].mxu0
        %5767 = vdwg.mxu0
        %v5768 = vld [vmem:[%s278] sm:$0xff]
        %v5769 = vld [vmem:[%s278 + $0x8] sm:$0xff]
        %v5770 = vld [vmem:[%s278 + $0x10] sm:$0xff]
        %v5771 = vld [vmem:[%s278 + $0x18] sm:$0xff]
        %v5772 = vld [vmem:[%s278 + $0x20] sm:$0xff]
        %v5773 = vld [vmem:[%s278 + $0x28] sm:$0xff]
        %v5774 = vld [vmem:[%s278 + $0x30] sm:$0xff]
        %v5775 = vld [vmem:[%s278 + $0x38] sm:$0xff]
        %v5776 = vld [vmem:[%s278 + $0x40] sm:$0xff]
        %v5777 = vld [vmem:[%s278 + $0x48] sm:$0xff]
        %v5778 = vld [vmem:[%s278 + $0x50] sm:$0xff]
        %v5779 = vld [vmem:[%s278 + $0x58] sm:$0xff]
        %v5780 = vld [vmem:[%s278 + $0x60] sm:$0xff]
        %v5781 = vld [vmem:[%s278 + $0x68] sm:$0xff]
        %v5782 = vld [vmem:[%s278 + $0x70] sm:$0xff]
        %v5783 = vld [vmem:[%s278 + $0x78] sm:$0xff]
        %v5784 = vld [vmem:[%s278 + $0x80] sm:$0xff]
        %v5785 = vld [vmem:[%s278 + $0x88] sm:$0xff]
        %v5786 = vld [vmem:[%s278 + $0x90] sm:$0xff]
        %v5787 = vld [vmem:[%s278 + $0x98] sm:$0xff]
        %v5788 = vld [vmem:[%s278 + $0xa0] sm:$0xff]
        %v5789 = vld [vmem:[%s278 + $0xa8] sm:$0xff]
        %v5790 = vld [vmem:[%s278 + $0xb0] sm:$0xff]
        %v5791 = vld [vmem:[%s278 + $0xb8] sm:$0xff]
        %v5792 = vld [vmem:[%s278 + $0xc0] sm:$0xff]
        %v5793 = vld [vmem:[%s278 + $0xc8] sm:$0xff]
        %v5794 = vld [vmem:[%s278 + $0xd0] sm:$0xff]
        %v5795 = vld [vmem:[%s278 + $0xd8] sm:$0xff]
        %v5796 = vld [vmem:[%s278 + $0xe0] sm:$0xff]
        %v5797 = vld [vmem:[%s278 + $0xe8] sm:$0xff]
        %v5798 = vld [vmem:[%s278 + $0xf0] sm:$0xff]
        %v5799 = vld [vmem:[%s278 + $0xf8] sm:$0xff]
        %v5800 = vadd.f32 %v5768, %v5642
        %v5801 = vadd.f32 %v5769, %v5645
        %v5802 = vadd.f32 %v5770, %v5650
        %v5803 = vadd.f32 %v5771, %v5653
        %v5804 = vadd.f32 %v5772, %v5658
        %v5805 = vadd.f32 %v5773, %v5661
        %v5806 = vadd.f32 %v5774, %v5666
        %v5807 = vadd.f32 %v5775, %v5669
        %v5808 = vadd.f32 %v5776, %v5674
        %v5809 = vadd.f32 %v5777, %v5677
        %v5810 = vadd.f32 %v5778, %v5682
        %v5811 = vadd.f32 %v5779, %v5685
        %v5812 = vadd.f32 %v5780, %v5690
        %v5813 = vadd.f32 %v5781, %v5693
        %v5814 = vadd.f32 %v5782, %v5698
        %v5815 = vadd.f32 %v5783, %v5701
        %v5816 = vadd.f32 %v5784, %v5706
        %v5817 = vadd.f32 %v5785, %v5709
        %v5818 = vadd.f32 %v5786, %v5714
        %v5819 = vadd.f32 %v5787, %v5717
        %v5820 = vadd.f32 %v5788, %v5722
        %v5821 = vadd.f32 %v5789, %v5725
        %v5822 = vadd.f32 %v5790, %v5730
        %v5823 = vadd.f32 %v5791, %v5733
        %v5824 = vadd.f32 %v5792, %v5738
        %v5825 = vadd.f32 %v5793, %v5741
        %v5826 = vadd.f32 %v5794, %v5746
        %v5827 = vadd.f32 %v5795, %v5749
        %v5828 = vadd.f32 %v5796, %v5754
        %v5829 = vadd.f32 %v5797, %v5757
        %v5830 = vadd.f32 %v5798, %v5762
        %v5831 = vadd.f32 %v5799, %v5765
        %5832 = vst [vmem:[%s278] sm:$0xff] %v5800
        %5833 = vst [vmem:[%s278 + $0x8] sm:$0xff] %v5801
        %5834 = vst [vmem:[%s278 + $0x10] sm:$0xff] %v5802
        %5835 = vst [vmem:[%s278 + $0x18] sm:$0xff] %v5803
        %5836 = vst [vmem:[%s278 + $0x20] sm:$0xff] %v5804
        %5837 = vst [vmem:[%s278 + $0x28] sm:$0xff] %v5805
        %5838 = vst [vmem:[%s278 + $0x30] sm:$0xff] %v5806
        %5839 = vst [vmem:[%s278 + $0x38] sm:$0xff] %v5807
        %5840 = vst [vmem:[%s278 + $0x40] sm:$0xff] %v5808
        %5841 = vst [vmem:[%s278 + $0x48] sm:$0xff] %v5809
        %5842 = vst [vmem:[%s278 + $0x50] sm:$0xff] %v5810
        %5843 = vst [vmem:[%s278 + $0x58] sm:$0xff] %v5811
        %5844 = vst [vmem:[%s278 + $0x60] sm:$0xff] %v5812
        %5845 = vst [vmem:[%s278 + $0x68] sm:$0xff] %v5813
        %5846 = vst [vmem:[%s278 + $0x70] sm:$0xff] %v5814
        %5847 = vst [vmem:[%s278 + $0x78] sm:$0xff] %v5815
        %5848 = vst [vmem:[%s278 + $0x80] sm:$0xff] %v5816
        %5849 = vst [vmem:[%s278 + $0x88] sm:$0xff] %v5817
        %5850 = vst [vmem:[%s278 + $0x90] sm:$0xff] %v5818
        %5851 = vst [vmem:[%s278 + $0x98] sm:$0xff] %v5819
        %5852 = vst [vmem:[%s278 + $0xa0] sm:$0xff] %v5820
        %5853 = vst [vmem:[%s278 + $0xa8] sm:$0xff] %v5821
        %5854 = vst [vmem:[%s278 + $0xb0] sm:$0xff] %v5822
        %5855 = vst [vmem:[%s278 + $0xb8] sm:$0xff] %v5823
        %5856 = vst [vmem:[%s278 + $0xc0] sm:$0xff] %v5824
        %5857 = vst [vmem:[%s278 + $0xc8] sm:$0xff] %v5825
        %5858 = vst [vmem:[%s278 + $0xd0] sm:$0xff] %v5826
        %5859 = vst [vmem:[%s278 + $0xd8] sm:$0xff] %v5827
        %5860 = vst [vmem:[%s278 + $0xe0] sm:$0xff] %v5828
        %5861 = vst [vmem:[%s278 + $0xe8] sm:$0xff] %v5829
        %5862 = vst [vmem:[%s278 + $0xf0] sm:$0xff] %v5830
        %5863 = vst [vmem:[%s278 + $0xf8] sm:$0xff] %v5831
        %s5864 = sand.u32 %s150, 1
        %s5865 = scalar_lea.sflag [#allocation6], %s5864
        %s5866 = sand.u32 %s150, 1
        %s5867 = smul.addr %s5866, 256
        %s5868 = scalar_lea.vmem [#allocation9], %s5867
        // Predicated region
        $region45: #{tpu_custom_call.1} parent=35 // pred_check
          %p5869 = pneg %p160
        $region46: #{tpu_custom_call.1} parent=35 // pred_check_branch
          %5871 = sbr.rel (%p5869) target = $region48
        $region47: #{tpu_custom_call.1} parent=35 // pred_region
          %s5873 = ssub.s32 4096, 4096
          %5874 = vsyncadd %s5865, %s5873
          %s5875 = smul.addr %s26, 32
          %s5876 = smul.addr %s27, 32
          %s5877 = sadd.s32 %s5875, %s5876
          %s5878 = smul.addr %s5877, 128
          %s5879 = scalar_lea.hbm %s4, %s5878
          %s5880 = sshll.u32 %s5868, 4
          %s5881 = int_to_ptr.vmem [resolvable:$true] %s5880
          %5886 = dma.vmem_to_hbm [thread:$0]  %s5881, 4096, %s5879, %s5865, 128, 128, 8
        $region48: #{tpu_custom_call.1} parent=35 // pred_fallthru
          _
      $region36: #{tpu_custom_call.1} parent=5 // pred_fallthru
        _
      %p5887 = scmp.le.s32.totalorder 2, %s17
      // Predicated region
      $region49: #{tpu_custom_call.1} parent=5 // pred_check
        %p5888 = pneg %p5887
      $region50: #{tpu_custom_call.1} parent=5 // pred_check_branch
        %5890 = sbr.rel (%p5888) target = $region52
      $region51: #{tpu_custom_call.1} parent=5 // pred_region
        %s5891 = ssub.s32 %s17, 2
        // Predicated region
        $region53: #{tpu_custom_call.1} parent=51 // pred_check
          %p5892 = pneg %p166
        $region54: #{tpu_custom_call.1} parent=51 // pred_check_branch
          %5894 = sbr.rel (%p5892) target = $region56
        $region55: #{tpu_custom_call.1} parent=51 // pred_region
          %s5895 = sand.u32 %s151, 1
          %s5896 = scalar_lea.sflag [#allocation6], %s5895
          %s5897 = sand.u32 %s151, 1
          %s5898 = smul.addr %s5897, 256
          %s5899 = scalar_lea.vmem [#allocation9], %s5898
          %5900 = dma.done %s5896, 4096
        $region56: #{tpu_custom_call.1} parent=51 // pred_fallthru
          _
      $region52: #{tpu_custom_call.1} parent=5 // pred_fallthru
        _
    $region6: #{tpu_custom_call.1} parent=1 // loop_footer
      %s21 = sadd.s32 1, %s17
    $region7: #{tpu_custom_call.1} parent=1 // loop_footer_branch
      %16 = sbr.rel target = $region3
    $region8: #{tpu_custom_call.1} parent=1 // loop_exit
      _
    %5901 = vsyncpa [#allocation5], 1
    %s5902 = scalar_lea.sflag [#allocation5], 1
    %5903 = vsyncpa %s5902, 1
    %5904 = vsyncpa [#allocation8], 1
    %5905 = vsyncpa [#allocation6], 1
    %s5906 = scalar_lea.sflag [#allocation6], 1
    %5907 = vsyncpa %s5906, 1

</llo_original>
